<compile_context>
chip_gen: v7x
topology: tpu7x:2x2x1
jax: 0.10.0
libtpu: 0.0.40
codegen_flags: <defaults>
</compile_context>

<pallas_src>
import functools
import math

import jax
import jax.numpy as jnp
import numpy as np
from jax import lax
from jax.experimental import pallas as pl
from jax.experimental.pallas import tpu as pltpu


def _layer_norm(x, gamma, beta, eps=1e-5):
    mean = jnp.mean(x, axis=-1, keepdims=True)
    var = jnp.mean(jnp.square(x - mean), axis=-1, keepdims=True)
    return (x - mean) * lax.rsqrt(var + eps) * gamma + beta


def clip_layer_kernel(x_ref, g1_ref, b1_ref, g2_ref, b2_ref,
                      wqkv_ref, bqkv_ref, wo_ref, bo_ref,
                      w1_ref, bl1_ref, w2_ref, bl2_ref,
                      o_ref, *, num_heads):
    TB, S, D = x_ref.shape
    H = num_heads
    dh = D // H
    N = TB * S
    cd = wqkv_ref.dtype                      # weights arrive pre-cast to the compute dtype

    # current row tile flattened to (N, D): every projection / MLP matmul is lane-dense and row-rich
    x = x_ref[...].astype(jnp.float32).reshape(N, D)
    residue = x                              # original input; used by BOTH residual adds (PyTorch source)

    def mm(a, w_ref):                        # MXU matmul, f32 accumulation; weights already in compute dtype
        return jnp.dot(a.astype(cd), w_ref[...], preferred_element_type=jnp.float32)

    # ---- LayerNorm 1 (f32) ----
    xn = _layer_norm(x, g1_ref[0], b1_ref[0])

    # ---- causal multi-head self-attention ----
    # fused QKV projection; 1/sqrt(dh) is already folded into the Q columns of wqkv / bqkv
    qkv = mm(xn, wqkv_ref) + bqkv_ref[...]                             # (N, 3D) f32

    def to_heads(t):                         # (N, D) -> (TB*H, S, dh): contiguous reshape + one swapaxes
        return jnp.swapaxes(t.reshape(TB, S, H, dh), 1, 2).reshape(TB * H, S, dh)

    q = to_heads(qkv[:, :D]).astype(cd)
    k = to_heads(qkv[:, D:2 * D]).astype(cd)
    v = to_heads(qkv[:, 2 * D:]).astype(cd)

    row = lax.broadcasted_iota(jnp.int32, (S, S), 0)
    col = lax.broadcasted_iota(jnp.int32, (S, S), 1)
    causal = (col <= row)[None, :, :]                                  # (1, S, S), broadcast over (b, h)

    # TODO(synk): for very long S, tile over query blocks with an online (flash-style) softmax so only
    # (tq, S) scores are live at a time (relevant on v7x's 64 MiB VMEM).
    s = jnp.einsum('gqd,gkd->gqk', q, k, preferred_element_type=jnp.float32)   # (TB*H, S, S)
    s = jnp.where(causal, s, -1e30)                                    # finite mask; scale pre-folded
    s = s - jnp.max(s, axis=-1, keepdims=True)
    p = jnp.exp(s)
    p = p * pl.reciprocal(jnp.sum(p, axis=-1, keepdims=True), approx=True)

    hout = jnp.einsum('gqk,gkd->gqd', p.astype(cd), v,
                      preferred_element_type=jnp.float32)              # (TB*H, S, dh)

    # merge heads back to (N, D) and run ONE full-width (N, D) @ (D, D) out-projection
    merged = jnp.swapaxes(hout.reshape(TB, H, S, dh), 1, 2).reshape(N, D)
    attn = jnp.dot(merged.astype(cd), wo_ref[...],
                   preferred_element_type=jnp.float32) + bo_ref[...]   # (N, D)

    x1 = attn + residue

    # ---- LayerNorm 2 + MLP (QuickGELU), f32 except matmul inputs ----
    # TODO(synk): at very large D on v7x, add a grid axis over the 4*D hidden dim (f32 accumulator with
    # pl.when init/finalize) instead of keeping the whole (N, 4D) hidden resident.
    xn2 = _layer_norm(x1, g2_ref[0], b2_ref[0])
    hdn = mm(xn2, w1_ref) + bl1_ref[...]                               # (N, 4D) lane-dense
    hdn = hdn * jax.nn.sigmoid(1.702 * hdn)
    out = mm(hdn, w2_ref) + bl2_ref[...]                               # (N, D)

    o_ref[...] = (out + residue).reshape(TB, S, D).astype(o_ref.dtype)


def _const_spec(a):
    """Full-array, resident weight block; single-buffered (its block index never changes)."""
    nd = a.ndim

    def idx(*_):
        return (0,) * nd

    try:
        return pl.BlockSpec(a.shape, idx, pipeline_mode=pl.Buffered(1))
    except TypeError:                        # older JAX without pipeline_mode: fall back to default buffering
        return pl.BlockSpec(a.shape, idx)


def _vmem_limit_bytes():
    try:
        cap = pltpu.get_tpu_info().vmem_capacity_bytes
    except Exception:
        cap = 64 * 1024 * 1024               # conservative fallback (v7x-sized)
    # leave headroom: ~48 MiB on v7x (64 MiB physical), ~96 MiB on v5e/v6e (128 MiB physical)
    return int(min(cap * 3 // 4, 100 * 1024 * 1024))


def _pick_batch_tile(B, S, target_rows=1024):
    """Largest divisor of B whose row count (tb * S) stays near the ~1024-row pipelining sweet spot."""
    tb = max(1, min(B, target_rows // max(S, 1)))
    while B % tb:
        tb -= 1
    return tb


def prepare_clip_params(ln1_g, ln1_b, ln2_g, ln2_b, w_in, b_in, w_out, b_out,
                        w_mlp1, b_mlp1, w_mlp2, b_mlp2, num_heads,
                        compute_dtype=jnp.float32):
    """Fold 1/sqrt(dh) into the Q columns of the fused QKV weight and pre-cast matmul weights.

    All weights use y = x @ W + b layout (torch Linear transpose already folded).
    """
    D = w_out.shape[0]
    dh = D // num_heads
    scale = 1.0 / math.sqrt(dh)
    w_qkv = jnp.concatenate([w_in[:, :D] * scale, w_in[:, D:]], axis=1)        # (D, 3D)
    b_qkv = jnp.concatenate([b_in[:D] * scale, b_in[D:]]).reshape(1, 3 * D)
    f32, cd = jnp.float32, compute_dtype
    return (ln1_g.reshape(1, D).astype(f32), ln1_b.reshape(1, D).astype(f32),
            ln2_g.reshape(1, D).astype(f32), ln2_b.reshape(1, D).astype(f32),
            w_qkv.astype(cd), b_qkv.astype(f32),
            w_out.astype(cd), b_out.reshape(1, D).astype(f32),
            w_mlp1.astype(cd), b_mlp1.reshape(1, 4 * D).astype(f32),
            w_mlp2.astype(cd), b_mlp2.reshape(1, D).astype(f32))


def clip_layer(x, params, num_heads, batch_tile=None):
    B, S, D = x.shape
    tb = batch_tile if batch_tile is not None else _pick_batch_tile(B, S)
    assert B % tb == 0, (B, tb)

    grid_spec = pltpu.PrefetchScalarGridSpec(
        num_scalar_prefetch=0,
        grid=(B // tb,),                                     # row tiles of N = B*S (tb full sequences)
        in_specs=[pl.BlockSpec((tb, S, D), lambda i: (i, 0, 0))]
                 + [_const_spec(a) for a in params],
        out_specs=pl.BlockSpec((tb, S, D), lambda i: (i, 0, 0)),
    )
    kernel = functools.partial(clip_layer_kernel, num_heads=num_heads)
    return pl.pallas_call(
        kernel,
        out_shape=jax.ShapeDtypeStruct((B, S, D), x.dtype),
        grid_spec=grid_spec,
        compiler_params=pltpu.CompilerParams(
            dimension_semantics=("parallel",),               # independent row tiles -> both v7x TCs
            vmem_limit_bytes=_vmem_limit_bytes()),
    )(x, *params)


def reference(x, g1, b1, g2, b2, win, bin_, wo, bo, w1, bl1, w2, bl2, num_heads):
    """Pure-JAX mirror of the PyTorch forward (torch Linear semantics already folded)."""
    B, S, D = x.shape
    dh = D // num_heads

    def ln(z, g, b):
        m = z.mean(-1, keepdims=True)
        v = ((z - m) ** 2).mean(-1, keepdims=True)
        return (z - m) / jnp.sqrt(v + 1e-5) * g + b

    residue = x
    xn = ln(x, g1, b1)
    qkv = xn @ win + bin_
    q, k, v = jnp.split(qkv, 3, axis=-1)
    q = q.reshape(B, S, num_heads, dh).transpose(0, 2, 1, 3)
    k = k.reshape(B, S, num_heads, dh).transpose(0, 2, 1, 3)
    v = v.reshape(B, S, num_heads, dh).transpose(0, 2, 1, 3)
    w = jnp.einsum('bhqd,bhkd->bhqk', q, k)
    mask = jnp.triu(jnp.ones((S, S), bool), k=1)
    w = jnp.where(mask, -jnp.inf, w)
    w = w / math.sqrt(dh)
    w = jax.nn.softmax(w, axis=-1)
    o = jnp.einsum('bhqk,bhkd->bhqd', w, v)
    o = o.transpose(0, 2, 1, 3).reshape(B, S, D)
    o = o @ wo + bo
    x1 = o + residue
    xn2 = ln(x1, g2, b2)
    h = xn2 @ w1 + bl1
    h = h * jax.nn.sigmoid(1.702 * h)
    h = h @ w2 + bl2
    return h + residue


if __name__ == "__main__":
    B, S, D, H = 2, 16, 64, 4                 # batch, seq, embedding, heads

    key = jax.random.PRNGKey(0)
    ks = jax.random.split(key, 13)
    x = jax.random.normal(ks[0], (B, S, D), jnp.float32)

    # deterministic synthetic parameters (y = x @ W + b layouts)
    g1 = 1.0 + 0.1 * jax.random.normal(ks[1], (D,), jnp.float32)
    b1 = 0.1 * jax.random.normal(ks[2], (D,), jnp.float32)
    g2 = 1.0 + 0.1 * jax.random.normal(ks[3], (D,), jnp.float32)
    b2 = 0.1 * jax.random.normal(ks[4], (D,), jnp.float32)
    win = 0.05 * jax.random.normal(ks[5], (D, 3 * D), jnp.float32)      # in_proj
    bin_ = 0.05 * jax.random.normal(ks[6], (3 * D,), jnp.float32)
    wo = 0.05 * jax.random.normal(ks[7], (D, D), jnp.float32)           # out_proj
    bo = 0.05 * jax.random.normal(ks[8], (D,), jnp.float32)
    w1 = 0.05 * jax.random.normal(ks[9], (D, 4 * D), jnp.float32)       # linear_1
    bl1 = 0.05 * jax.random.normal(ks[10], (4 * D,), jnp.float32)
    w2 = 0.05 * jax.random.normal(ks[11], (4 * D, D), jnp.float32)      # linear_2
    bl2 = 0.05 * jax.random.normal(ks[12], (D,), jnp.float32)

    ref = reference(x, g1, b1, g2, b2, win, bin_, wo, bo, w1, bl1, w2, bl2, H)

    # f32 matmul inputs, default row tile (single grid step at this toy size): tight check
    params_f32 = prepare_clip_params(g1, b1, g2, b2, win, bin_, wo, bo,
                                     w1, bl1, w2, bl2, H, jnp.float32)
    out_f32 = jax.block_until_ready(clip_layer(x, params_f32, num_heads=H))
    np.testing.assert_allclose(np.asarray(out_f32), np.asarray(ref), rtol=5e-3, atol=5e-3)

    # exercise the multi-step, row-tiled pipeline path (grid=(2,), weights resident across steps)
    out_tiled = jax.block_until_ready(clip_layer(x, params_f32, num_heads=H, batch_tile=1))
    np.testing.assert_allclose(np.asarray(out_tiled), np.asarray(ref), rtol=5e-3, atol=5e-3)

    # bf16 weight transport / matmul inputs (f32 accumulation): looser check
    params_bf16 = prepare_clip_params(g1, b1, g2, b2, win, bin_, wo, bo,
                                      w1, bl1, w2, bl2, H, jnp.bfloat16)
    out_bf16 = jax.block_until_ready(clip_layer(x, params_bf16, num_heads=H))
    np.testing.assert_allclose(np.asarray(out_bf16), np.asarray(ref), rtol=2e-2, atol=2e-2)

    print("KERNEL_OK")
</pallas_src>

<mosaic_0001>
module attributes {stable_mosaic.version = 11 : i64} {
  func.func @clip_layer_kernel(%arg0: i32, %arg1: memref<2x16x64xf32, #tpu.memory_space<vmem>>, %arg2: memref<1x64xf32, #tpu.memory_space<vmem>>, %arg3: memref<1x64xf32, #tpu.memory_space<vmem>>, %arg4: memref<1x64xf32, #tpu.memory_space<vmem>>, %arg5: memref<1x64xf32, #tpu.memory_space<vmem>>, %arg6: memref<64x192xf32, #tpu.memory_space<vmem>>, %arg7: memref<1x192xf32, #tpu.memory_space<vmem>>, %arg8: memref<64x64xf32, #tpu.memory_space<vmem>>, %arg9: memref<1x64xf32, #tpu.memory_space<vmem>>, %arg10: memref<64x256xf32, #tpu.memory_space<vmem>>, %arg11: memref<1x256xf32, #tpu.memory_space<vmem>>, %arg12: memref<256x64xf32, #tpu.memory_space<vmem>>, %arg13: memref<1x64xf32, #tpu.memory_space<vmem>>, %arg14: memref<2x16x64xf32, #tpu.memory_space<vmem>>) attributes {dimension_semantics = [#tpu.dimension_semantics<parallel>], iteration_bounds = array<i64: 1>, scalar_prefetch = 0 : i64, scratch_operands = 0 : i64, tpu.core_type = #tpu.core_type<tc>, window_params = [{transform_indices = @transform_0, window_bounds = array<i64: 2, 16, 64>}, {pipeline_mode = #tpu.pipeline_mode<synchronous>, transform_indices = @transform_1, window_bounds = array<i64: 1, 64>}, {pipeline_mode = #tpu.pipeline_mode<synchronous>, transform_indices = @transform_2, window_bounds = array<i64: 1, 64>}, {pipeline_mode = #tpu.pipeline_mode<synchronous>, transform_indices = @transform_3, window_bounds = array<i64: 1, 64>}, {pipeline_mode = #tpu.pipeline_mode<synchronous>, transform_indices = @transform_4, window_bounds = array<i64: 1, 64>}, {pipeline_mode = #tpu.pipeline_mode<synchronous>, transform_indices = @transform_5, window_bounds = array<i64: 64, 192>}, {pipeline_mode = #tpu.pipeline_mode<synchronous>, transform_indices = @transform_6, window_bounds = array<i64: 1, 192>}, {pipeline_mode = #tpu.pipeline_mode<synchronous>, transform_indices = @transform_7, window_bounds = array<i64: 64, 64>}, {pipeline_mode = #tpu.pipeline_mode<synchronous>, transform_indices = @transform_8, window_bounds = array<i64: 1, 64>}, {pipeline_mode = #tpu.pipeline_mode<synchronous>, transform_indices = @transform_9, window_bounds = array<i64: 64, 256>}, {pipeline_mode = #tpu.pipeline_mode<synchronous>, transform_indices = @transform_10, window_bounds = array<i64: 1, 256>}, {pipeline_mode = #tpu.pipeline_mode<synchronous>, transform_indices = @transform_11, window_bounds = array<i64: 256, 64>}, {pipeline_mode = #tpu.pipeline_mode<synchronous>, transform_indices = @transform_12, window_bounds = array<i64: 1, 64>}, {transform_indices = @transform_13, window_bounds = array<i64: 2, 16, 64>}]} {
    %c0 = arith.constant 0 : index
    %c0_0 = arith.constant 0 : index
    %c0_1 = arith.constant 0 : index
    %0 = vector.load %arg1[%c0, %c0_0, %c0_1] : memref<2x16x64xf32, #tpu.memory_space<vmem>>, vector<2x16x64xf32>
    %1 = vector.shape_cast %0 : vector<2x16x64xf32> to vector<32x64xf32>
    %c0_2 = arith.constant 0 : index
    %c0_3 = arith.constant 0 : index
    %2 = vector.load %arg2[%c0_2, %c0_3] : memref<1x64xf32, #tpu.memory_space<vmem>>, vector<1x64xf32>
    %3 = vector.shape_cast %2 : vector<1x64xf32> to vector<64xf32>
    %c0_4 = arith.constant 0 : index
    %c0_5 = arith.constant 0 : index
    %4 = vector.load %arg3[%c0_4, %c0_5] : memref<1x64xf32, #tpu.memory_space<vmem>>, vector<1x64xf32>
    %5 = vector.shape_cast %4 : vector<1x64xf32> to vector<64xf32>
    %cst = arith.constant dense<0.000000e+00> : vector<32xf32>
    %6 = vector.multi_reduction <add>, %1, %cst [1] : vector<32x64xf32> to vector<32xf32>
    %7 = vector.shape_cast %6 : vector<32xf32> to vector<32x1xf32>
    %cst_6 = arith.constant 6.400000e+01 : f32
    %8 = vector.broadcast %cst_6 : f32 to vector<32x1xf32>
    %9 = arith.divf %7, %8 : vector<32x1xf32>
    %10 = vector.broadcast %9 : vector<32x1xf32> to vector<32x64xf32>
    %11 = arith.subf %1, %10 : vector<32x64xf32>
    %12 = arith.mulf %11, %11 : vector<32x64xf32>
    %cst_7 = arith.constant dense<0.000000e+00> : vector<32xf32>
    %13 = vector.multi_reduction <add>, %12, %cst_7 [1] : vector<32x64xf32> to vector<32xf32>
    %14 = vector.shape_cast %13 : vector<32xf32> to vector<32x1xf32>
    %cst_8 = arith.constant 6.400000e+01 : f32
    %15 = vector.broadcast %cst_8 : f32 to vector<32x1xf32>
    %16 = arith.divf %14, %15 : vector<32x1xf32>
    %17 = vector.broadcast %9 : vector<32x1xf32> to vector<32x64xf32>
    %18 = arith.subf %1, %17 : vector<32x64xf32>
    %cst_9 = arith.constant 9.99999974E-6 : f32
    %19 = vector.broadcast %cst_9 : f32 to vector<32x1xf32>
    %20 = arith.addf %16, %19 : vector<32x1xf32>
    %21 = math.rsqrt %20 : vector<32x1xf32>
    %22 = vector.broadcast %21 : vector<32x1xf32> to vector<32x64xf32>
    %23 = arith.mulf %18, %22 : vector<32x64xf32>
    %24 = vector.shape_cast %3 : vector<64xf32> to vector<1x64xf32>
    %25 = vector.broadcast %24 : vector<1x64xf32> to vector<32x64xf32>
    %26 = arith.mulf %23, %25 : vector<32x64xf32>
    %27 = vector.shape_cast %5 : vector<64xf32> to vector<1x64xf32>
    %28 = vector.broadcast %27 : vector<1x64xf32> to vector<32x64xf32>
    %29 = arith.addf %26, %28 : vector<32x64xf32>
    %c0_10 = arith.constant 0 : index
    %c0_11 = arith.constant 0 : index
    %30 = vector.load %arg6[%c0_10, %c0_11] : memref<64x192xf32, #tpu.memory_space<vmem>>, vector<64x192xf32>
    %cst_12 = arith.constant dense<0.000000e+00> : vector<32x192xf32>
    %31 = tpu.matmul %29, %30, %cst_12 {dimension_numbers = #tpu.dot_dimension_numbers<[1], [0], [0], [1], [0, 0, 1, 1], [], []>} : vector<32x64xf32>, vector<64x192xf32>, vector<32x192xf32> -> vector<32x192xf32>
    %c0_13 = arith.constant 0 : index
    %c0_14 = arith.constant 0 : index
    %32 = vector.load %arg7[%c0_13, %c0_14] : memref<1x192xf32, #tpu.memory_space<vmem>>, vector<1x192xf32>
    %33 = vector.broadcast %32 : vector<1x192xf32> to vector<32x192xf32>
    %34 = arith.addf %31, %33 : vector<32x192xf32>
    %35 = vector.extract_strided_slice %34 {offsets = [0, 0], sizes = [32, 64], strides = [1, 1]} : vector<32x192xf32> to vector<32x64xf32>
    %36 = vector.shape_cast %35 : vector<32x64xf32> to vector<2x16x4x16xf32>
    %37 = tpu.transpose %36, [0, 2, 1, 3] : vector<2x16x4x16xf32> -> vector<2x4x16x16xf32>
    %38 = vector.shape_cast %37 : vector<2x4x16x16xf32> to vector<8x16x16xf32>
    %39 = vector.extract_strided_slice %34 {offsets = [0, 64], sizes = [32, 64], strides = [1, 1]} : vector<32x192xf32> to vector<32x64xf32>
    %40 = vector.shape_cast %39 : vector<32x64xf32> to vector<2x16x4x16xf32>
    %41 = tpu.transpose %40, [0, 2, 1, 3] : vector<2x16x4x16xf32> -> vector<2x4x16x16xf32>
    %42 = vector.shape_cast %41 : vector<2x4x16x16xf32> to vector<8x16x16xf32>
    %43 = vector.extract_strided_slice %34 {offsets = [0, 128], sizes = [32, 64], strides = [1, 1]} : vector<32x192xf32> to vector<32x64xf32>
    %44 = vector.shape_cast %43 : vector<32x64xf32> to vector<2x16x4x16xf32>
    %45 = tpu.transpose %44, [0, 2, 1, 3] : vector<2x16x4x16xf32> -> vector<2x4x16x16xf32>
    %46 = vector.shape_cast %45 : vector<2x4x16x16xf32> to vector<8x16x16xf32>
    %47 = tpu.iota {dimensions = array<i32: 0>} : vector<16x16xi32>
    %48 = tpu.iota {dimensions = array<i32: 1>} : vector<16x16xi32>
    %49 = arith.cmpi sle, %48, %47 : vector<16x16xi32>
    %50 = vector.shape_cast %49 : vector<16x16xi1> to vector<1x16x16xi1>
    "tpu.trace_start"() <{level = 10 : i32, message = "gqd,gkd->gqk"}> : () -> ()
    %cst_15 = arith.constant dense<0.000000e+00> : vector<8x16x16xf32>
    %51 = tpu.matmul %38, %42, %cst_15 {dimension_numbers = #tpu.dot_dimension_numbers<[2], [2], [1], [1], [0, 0, 0, 1, 1, 1], [0], [0]>} : vector<8x16x16xf32>, vector<8x16x16xf32>, vector<8x16x16xf32> -> vector<8x16x16xf32>
    %cst_16 = arith.constant -1.000000e+30 : f32
    "tpu.trace_stop"() : () -> ()
    %52 = vector.shape_cast %50 : vector<1x16x16xi1> to vector<1x16x16xi1>
    %53 = vector.broadcast %52 : vector<1x16x16xi1> to vector<8x16x16xi1>
    %54 = vector.broadcast %cst_16 : f32 to vector<8x16x16xf32>
    %55 = arith.select %53, %51, %54 : vector<8x16x16xi1>, vector<8x16x16xf32>
    %cst_17 = arith.constant dense<0xFF800000> : vector<8x16xf32>
    %56 = vector.multi_reduction <maximumf>, %55, %cst_17 [2] : vector<8x16x16xf32> to vector<8x16xf32>
    %57 = vector.shape_cast %56 : vector<8x16xf32> to vector<8x16x1xf32>
    %58 = vector.broadcast %57 : vector<8x16x1xf32> to vector<8x16x16xf32>
    %59 = arith.subf %55, %58 : vector<8x16x16xf32>
    %60 = math.exp %59 : vector<8x16x16xf32>
    %cst_18 = arith.constant dense<0.000000e+00> : vector<8x16xf32>
    %61 = vector.multi_reduction <add>, %60, %cst_18 [2] : vector<8x16x16xf32> to vector<8x16xf32>
    %62 = vector.shape_cast %61 : vector<8x16xf32> to vector<8x16x1xf32>
    %63 = tpu.reciprocal %62 {approx = true} : vector<8x16x1xf32> -> vector<8x16x1xf32>
    %64 = vector.broadcast %63 : vector<8x16x1xf32> to vector<8x16x16xf32>
    %65 = arith.mulf %60, %64 : vector<8x16x16xf32>
    "tpu.trace_start"() <{level = 10 : i32, message = "gqk,gkd->gqd"}> : () -> ()
    %cst_19 = arith.constant dense<0.000000e+00> : vector<8x16x16xf32>
    %66 = tpu.matmul %65, %46, %cst_19 {dimension_numbers = #tpu.dot_dimension_numbers<[2], [1], [1], [2], [0, 0, 0, 1, 1, 2], [0], [0]>} : vector<8x16x16xf32>, vector<8x16x16xf32>, vector<8x16x16xf32> -> vector<8x16x16xf32>
    "tpu.trace_stop"() : () -> ()
    %67 = vector.shape_cast %66 : vector<8x16x16xf32> to vector<2x4x16x16xf32>
    %68 = tpu.transpose %67, [0, 2, 1, 3] : vector<2x4x16x16xf32> -> vector<2x16x4x16xf32>
    %69 = vector.shape_cast %68 : vector<2x16x4x16xf32> to vector<32x64xf32>
    %c0_20 = arith.constant 0 : index
    %c0_21 = arith.constant 0 : index
    %70 = vector.load %arg8[%c0_20, %c0_21] : memref<64x64xf32, #tpu.memory_space<vmem>>, vector<64x64xf32>
    %cst_22 = arith.constant dense<0.000000e+00> : vector<32x64xf32>
    %71 = tpu.matmul %69, %70, %cst_22 {dimension_numbers = #tpu.dot_dimension_numbers<[1], [0], [0], [1], [0, 0, 1, 1], [], []>} : vector<32x64xf32>, vector<64x64xf32>, vector<32x64xf32> -> vector<32x64xf32>
    %c0_23 = arith.constant 0 : index
    %c0_24 = arith.constant 0 : index
    %72 = vector.load %arg9[%c0_23, %c0_24] : memref<1x64xf32, #tpu.memory_space<vmem>>, vector<1x64xf32>
    %73 = vector.broadcast %72 : vector<1x64xf32> to vector<32x64xf32>
    %74 = arith.addf %71, %73 : vector<32x64xf32>
    %75 = arith.addf %74, %1 : vector<32x64xf32>
    %c0_25 = arith.constant 0 : index
    %c0_26 = arith.constant 0 : index
    %76 = vector.load %arg4[%c0_25, %c0_26] : memref<1x64xf32, #tpu.memory_space<vmem>>, vector<1x64xf32>
    %77 = vector.shape_cast %76 : vector<1x64xf32> to vector<64xf32>
    %c0_27 = arith.constant 0 : index
    %c0_28 = arith.constant 0 : index
    %78 = vector.load %arg5[%c0_27, %c0_28] : memref<1x64xf32, #tpu.memory_space<vmem>>, vector<1x64xf32>
    %79 = vector.shape_cast %78 : vector<1x64xf32> to vector<64xf32>
    %cst_29 = arith.constant dense<0.000000e+00> : vector<32xf32>
    %80 = vector.multi_reduction <add>, %75, %cst_29 [1] : vector<32x64xf32> to vector<32xf32>
    %81 = vector.shape_cast %80 : vector<32xf32> to vector<32x1xf32>
    %cst_30 = arith.constant 6.400000e+01 : f32
    %82 = vector.broadcast %cst_30 : f32 to vector<32x1xf32>
    %83 = arith.divf %81, %82 : vector<32x1xf32>
    %84 = vector.broadcast %83 : vector<32x1xf32> to vector<32x64xf32>
    %85 = arith.subf %75, %84 : vector<32x64xf32>
    %86 = arith.mulf %85, %85 : vector<32x64xf32>
    %cst_31 = arith.constant dense<0.000000e+00> : vector<32xf32>
    %87 = vector.multi_reduction <add>, %86, %cst_31 [1] : vector<32x64xf32> to vector<32xf32>
    %88 = vector.shape_cast %87 : vector<32xf32> to vector<32x1xf32>
    %cst_32 = arith.constant 6.400000e+01 : f32
    %89 = vector.broadcast %cst_32 : f32 to vector<32x1xf32>
    %90 = arith.divf %88, %89 : vector<32x1xf32>
    %91 = vector.broadcast %83 : vector<32x1xf32> to vector<32x64xf32>
    %92 = arith.subf %75, %91 : vector<32x64xf32>
    %cst_33 = arith.constant 9.99999974E-6 : f32
    %93 = vector.broadcast %cst_33 : f32 to vector<32x1xf32>
    %94 = arith.addf %90, %93 : vector<32x1xf32>
    %95 = math.rsqrt %94 : vector<32x1xf32>
    %96 = vector.broadcast %95 : vector<32x1xf32> to vector<32x64xf32>
    %97 = arith.mulf %92, %96 : vector<32x64xf32>
    %98 = vector.shape_cast %77 : vector<64xf32> to vector<1x64xf32>
    %99 = vector.broadcast %98 : vector<1x64xf32> to vector<32x64xf32>
    %100 = arith.mulf %97, %99 : vector<32x64xf32>
    %101 = vector.shape_cast %79 : vector<64xf32> to vector<1x64xf32>
    %102 = vector.broadcast %101 : vector<1x64xf32> to vector<32x64xf32>
    %103 = arith.addf %100, %102 : vector<32x64xf32>
    %c0_34 = arith.constant 0 : index
    %c0_35 = arith.constant 0 : index
    %104 = vector.load %arg10[%c0_34, %c0_35] : memref<64x256xf32, #tpu.memory_space<vmem>>, vector<64x256xf32>
    %cst_36 = arith.constant dense<0.000000e+00> : vector<32x256xf32>
    %105 = tpu.matmul %103, %104, %cst_36 {dimension_numbers = #tpu.dot_dimension_numbers<[1], [0], [0], [1], [0, 0, 1, 1], [], []>} : vector<32x64xf32>, vector<64x256xf32>, vector<32x256xf32> -> vector<32x256xf32>
    %c0_37 = arith.constant 0 : index
    %c0_38 = arith.constant 0 : index
    %106 = vector.load %arg11[%c0_37, %c0_38] : memref<1x256xf32, #tpu.memory_space<vmem>>, vector<1x256xf32>
    %107 = vector.broadcast %106 : vector<1x256xf32> to vector<32x256xf32>
    %108 = arith.addf %105, %107 : vector<32x256xf32>
    %cst_39 = arith.constant 1.702000e+00 : f32
    %109 = vector.broadcast %cst_39 : f32 to vector<32x256xf32>
    %110 = arith.mulf %109, %108 : vector<32x256xf32>
    %111 = arith.negf %110 : vector<32x256xf32>
    %112 = math.exp %111 : vector<32x256xf32>
    %cst_40 = arith.constant 1.000000e+00 : f32
    %113 = vector.broadcast %cst_40 : f32 to vector<32x256xf32>
    %114 = arith.addf %113, %112 : vector<32x256xf32>
    %115 = arith.divf %113, %114 : vector<32x256xf32>
    %116 = arith.mulf %108, %115 : vector<32x256xf32>
    %c0_41 = arith.constant 0 : index
    %c0_42 = arith.constant 0 : index
    %117 = vector.load %arg12[%c0_41, %c0_42] : memref<256x64xf32, #tpu.memory_space<vmem>>, vector<256x64xf32>
    %cst_43 = arith.constant dense<0.000000e+00> : vector<32x64xf32>
    %118 = tpu.matmul %116, %117, %cst_43 {dimension_numbers = #tpu.dot_dimension_numbers<[1], [0], [0], [1], [0, 0, 1, 1], [], []>} : vector<32x256xf32>, vector<256x64xf32>, vector<32x64xf32> -> vector<32x64xf32>
    %c0_44 = arith.constant 0 : index
    %c0_45 = arith.constant 0 : index
    %119 = vector.load %arg13[%c0_44, %c0_45] : memref<1x64xf32, #tpu.memory_space<vmem>>, vector<1x64xf32>
    %120 = vector.broadcast %119 : vector<1x64xf32> to vector<32x64xf32>
    %121 = arith.addf %118, %120 : vector<32x64xf32>
    %122 = arith.addf %121, %1 : vector<32x64xf32>
    %123 = vector.shape_cast %122 : vector<32x64xf32> to vector<2x16x64xf32>
    %c0_46 = arith.constant 0 : index
    %c0_47 = arith.constant 0 : index
    %c0_48 = arith.constant 0 : index
    %124 = vector.load %arg14[%c0_46, %c0_47, %c0_48] : memref<2x16x64xf32, #tpu.memory_space<vmem>>, vector<2x16x64xf32>
    tpu.vector_store %arg14[%c0_46, %c0_47, %c0_48], %123 {strides = array<i32>} : memref<2x16x64xf32, #tpu.memory_space<vmem>>, vector<2x16x64xf32>,
    return
  }
  func.func @transform_0(%arg0: i32) -> (i32, i32, i32) {
    %c0_i32 = arith.constant 0 : i32
    %c0_i32_0 = arith.constant 0 : i32
    %c0_i32_1 = arith.constant 0 : i32
    return %arg0, %c0_i32, %c0_i32_0 : i32, i32, i32
  }
  func.func @transform_1(%arg0: i32) -> (i32, i32) {
    %c0_i32 = arith.constant 0 : i32
    %c0_i32_0 = arith.constant 0 : i32
    %c0_i32_1 = arith.constant 0 : i32
    return %c0_i32, %c0_i32_0 : i32, i32
  }
  func.func @transform_2(%arg0: i32) -> (i32, i32) {
    %c0_i32 = arith.constant 0 : i32
    %c0_i32_0 = arith.constant 0 : i32
    %c0_i32_1 = arith.constant 0 : i32
    return %c0_i32, %c0_i32_0 : i32, i32
  }
  func.func @transform_3(%arg0: i32) -> (i32, i32) {
    %c0_i32 = arith.constant 0 : i32
    %c0_i32_0 = arith.constant 0 : i32
    %c0_i32_1 = arith.constant 0 : i32
    return %c0_i32, %c0_i32_0 : i32, i32
  }
  func.func @transform_4(%arg0: i32) -> (i32, i32) {
    %c0_i32 = arith.constant 0 : i32
    %c0_i32_0 = arith.constant 0 : i32
    %c0_i32_1 = arith.constant 0 : i32
    return %c0_i32, %c0_i32_0 : i32, i32
  }
  func.func @transform_5(%arg0: i32) -> (i32, i32) {
    %c0_i32 = arith.constant 0 : i32
    %c0_i32_0 = arith.constant 0 : i32
    %c0_i32_1 = arith.constant 0 : i32
    return %c0_i32, %c0_i32_0 : i32, i32
  }
  func.func @transform_6(%arg0: i32) -> (i32, i32) {
    %c0_i32 = arith.constant 0 : i32
    %c0_i32_0 = arith.constant 0 : i32
    %c0_i32_1 = arith.constant 0 : i32
    return %c0_i32, %c0_i32_0 : i32, i32
  }
  func.func @transform_7(%arg0: i32) -> (i32, i32) {
    %c0_i32 = arith.constant 0 : i32
    %c0_i32_0 = arith.constant 0 : i32
    %c0_i32_1 = arith.constant 0 : i32
    return %c0_i32, %c0_i32_0 : i32, i32
  }
  func.func @transform_8(%arg0: i32) -> (i32, i32) {
    %c0_i32 = arith.constant 0 : i32
    %c0_i32_0 = arith.constant 0 : i32
    %c0_i32_1 = arith.constant 0 : i32
    return %c0_i32, %c0_i32_0 : i32, i32
  }
  func.func @transform_9(%arg0: i32) -> (i32, i32) {
    %c0_i32 = arith.constant 0 : i32
    %c0_i32_0 = arith.constant 0 : i32
    %c0_i32_1 = arith.constant 0 : i32
    return %c0_i32, %c0_i32_0 : i32, i32
  }
  func.func @transform_10(%arg0: i32) -> (i32, i32) {
    %c0_i32 = arith.constant 0 : i32
    %c0_i32_0 = arith.constant 0 : i32
    %c0_i32_1 = arith.constant 0 : i32
    return %c0_i32, %c0_i32_0 : i32, i32
  }
  func.func @transform_11(%arg0: i32) -> (i32, i32) {
    %c0_i32 = arith.constant 0 : i32
    %c0_i32_0 = arith.constant 0 : i32
    %c0_i32_1 = arith.constant 0 : i32
    return %c0_i32, %c0_i32_0 : i32, i32
  }
  func.func @transform_12(%arg0: i32) -> (i32, i32) {
    %c0_i32 = arith.constant 0 : i32
    %c0_i32_0 = arith.constant 0 : i32
    %c0_i32_1 = arith.constant 0 : i32
    return %c0_i32, %c0_i32_0 : i32, i32
  }
  func.func @transform_13(%arg0: i32) -> (i32, i32, i32) {
    %c0_i32 = arith.constant 0 : i32
    %c0_i32_0 = arith.constant 0 : i32
    %c0_i32_1 = arith.constant 0 : i32
    return %arg0, %c0_i32, %c0_i32_0 : i32, i32, i32
  }
}

</mosaic_0001>

<llo_original>
// kernel: tpu_custom_call.1
$region0: #{tpu_custom_call.1}
  #allocation0 [shape = 'u32[]', space=smem, size = 0x4, offset = 0x4, fixed_abs, tag = 'smem constant byte address 0x4 - core index']
  #allocation1 [shape = 'u32[144,128]{1,0:T(1,128)}', space=vmem, size = 0x12000, scoped, tag = 'internal scratch']
  %s0 = inlined_call_operand.vmem [shape: f32[2,16,64], index: 0, kind: input, shape index: {}]
  %s1 = inlined_call_operand.vmem [shape: f32[1,64], index: 1, kind: input, shape index: {}]
  %s2 = inlined_call_operand.vmem [shape: f32[1,64], index: 2, kind: input, shape index: {}]
  %s3 = inlined_call_operand.vmem [shape: f32[1,64], index: 3, kind: input, shape index: {}]
  %s4 = inlined_call_operand.vmem [shape: f32[1,64], index: 4, kind: input, shape index: {}]
  %s5 = inlined_call_operand.vmem [shape: f32[64,192], index: 5, kind: input, shape index: {}]
  %s6 = inlined_call_operand.vmem [shape: f32[1,192], index: 6, kind: input, shape index: {}]
  %s7 = inlined_call_operand.vmem [shape: f32[64,64], index: 7, kind: input, shape index: {}]
  %s8 = inlined_call_operand.vmem [shape: f32[1,64], index: 8, kind: input, shape index: {}]
  %s9 = inlined_call_operand.vmem [shape: f32[64,256], index: 9, kind: input, shape index: {}]
  %s10 = inlined_call_operand.vmem [shape: f32[1,256], index: 10, kind: input, shape index: {}]
  %s11 = inlined_call_operand.vmem [shape: f32[256,64], index: 11, kind: input, shape index: {}]
  %s12 = inlined_call_operand.vmem [shape: f32[1,64], index: 12, kind: input, shape index: {}]
  %s13 = inlined_call_operand.hbm [shape: f32[2,16,64], index: 13, kind: output, shape index: {}]
  %s14 = sld [smem:[#allocation0]]
  $region62: #{tpu_custom_call.1} parent=0
    _
  %s16 = ssub.s32 1, %s14
  %s17 = scalar_select 0, %s16, %s14
  $region1: #{tpu_custom_call.1} parent=0
    #allocation2 [shape = 'u8[16384]{0}', space=vmem, size = 0x4000, scoped, tag = 'output window, operand 0, single buffered']
    #allocation3 [shape = 's32[1]{0}', space=sflag, size = 0x4, scoped, tag = 'scoped memory for tpu_custom_call.1']
    %18 = vsyncpa [#allocation3], 0
    // Predicated region
    $region2: #{tpu_custom_call.1} parent=1 // pred_check
      _
    $region3: #{tpu_custom_call.1} parent=1 // pred_check_branch
      %20 = sbr.rel (0) target = $region5
    $region4: #{tpu_custom_call.1} parent=1 // pred_region
      _
    $region5: #{tpu_custom_call.1} parent=1 // pred_fallthru
      _
    // Predicated region
    $region6: #{tpu_custom_call.1} parent=1 // pred_check
      _
    $region7: #{tpu_custom_call.1} parent=1 // pred_check_branch
      %22 = sbr.rel (0) target = $region9
    $region8: #{tpu_custom_call.1} parent=1 // pred_region
      _
    $region9: #{tpu_custom_call.1} parent=1 // pred_fallthru
      _
    // Predicated region
    $region10: #{tpu_custom_call.1} parent=1 // pred_check
      _
    $region11: #{tpu_custom_call.1} parent=1 // pred_check_branch
      %24 = sbr.rel (0) target = $region13
    $region12: #{tpu_custom_call.1} parent=1 // pred_region
      _
    $region13: #{tpu_custom_call.1} parent=1 // pred_fallthru
      _
    // Predicated region
    $region14: #{tpu_custom_call.1} parent=1 // pred_check
      _
    $region15: #{tpu_custom_call.1} parent=1 // pred_check_branch
      %26 = sbr.rel (0) target = $region17
    $region16: #{tpu_custom_call.1} parent=1 // pred_region
      _
    $region17: #{tpu_custom_call.1} parent=1 // pred_fallthru
      _
    // Predicated region
    $region18: #{tpu_custom_call.1} parent=1 // pred_check
      _
    $region19: #{tpu_custom_call.1} parent=1 // pred_check_branch
      %28 = sbr.rel (0) target = $region21
    $region20: #{tpu_custom_call.1} parent=1 // pred_region
      _
    $region21: #{tpu_custom_call.1} parent=1 // pred_fallthru
      _
    // Predicated region
    $region22: #{tpu_custom_call.1} parent=1 // pred_check
      _
    $region23: #{tpu_custom_call.1} parent=1 // pred_check_branch
      %30 = sbr.rel (0) target = $region25
    $region24: #{tpu_custom_call.1} parent=1 // pred_region
      _
    $region25: #{tpu_custom_call.1} parent=1 // pred_fallthru
      _
    // Predicated region
    $region26: #{tpu_custom_call.1} parent=1 // pred_check
      _
    $region27: #{tpu_custom_call.1} parent=1 // pred_check_branch
      %32 = sbr.rel (0) target = $region29
    $region28: #{tpu_custom_call.1} parent=1 // pred_region
      _
    $region29: #{tpu_custom_call.1} parent=1 // pred_fallthru
      _
    // Predicated region
    $region30: #{tpu_custom_call.1} parent=1 // pred_check
      _
    $region31: #{tpu_custom_call.1} parent=1 // pred_check_branch
      %34 = sbr.rel (0) target = $region33
    $region32: #{tpu_custom_call.1} parent=1 // pred_region
      _
    $region33: #{tpu_custom_call.1} parent=1 // pred_fallthru
      _
    // Predicated region
    $region34: #{tpu_custom_call.1} parent=1 // pred_check
      _
    $region35: #{tpu_custom_call.1} parent=1 // pred_check_branch
      %36 = sbr.rel (0) target = $region37
    $region36: #{tpu_custom_call.1} parent=1 // pred_region
      _
    $region37: #{tpu_custom_call.1} parent=1 // pred_fallthru
      _
    // Predicated region
    $region38: #{tpu_custom_call.1} parent=1 // pred_check
      _
    $region39: #{tpu_custom_call.1} parent=1 // pred_check_branch
      %38 = sbr.rel (0) target = $region41
    $region40: #{tpu_custom_call.1} parent=1 // pred_region
      _
    $region41: #{tpu_custom_call.1} parent=1 // pred_fallthru
      _
    // Predicated region
    $region42: #{tpu_custom_call.1} parent=1 // pred_check
      _
    $region43: #{tpu_custom_call.1} parent=1 // pred_check_branch
      %40 = sbr.rel (0) target = $region45
    $region44: #{tpu_custom_call.1} parent=1 // pred_region
      _
    $region45: #{tpu_custom_call.1} parent=1 // pred_fallthru
      _
    // Predicated region
    $region46: #{tpu_custom_call.1} parent=1 // pred_check
      _
    $region47: #{tpu_custom_call.1} parent=1 // pred_check_branch
      %42 = sbr.rel (0) target = $region49
    $region48: #{tpu_custom_call.1} parent=1 // pred_region
      _
    $region49: #{tpu_custom_call.1} parent=1 // pred_fallthru
      _
    // Predicated region
    $region50: #{tpu_custom_call.1} parent=1 // pred_check
      _
    $region51: #{tpu_custom_call.1} parent=1 // pred_check_branch
      %44 = sbr.rel (0) target = $region53
    $region52: #{tpu_custom_call.1} parent=1 // pred_region
      _
    $region53: #{tpu_custom_call.1} parent=1 // pred_fallthru
      _
    %v45 = vld [vmem:[%s0] sm:$0xff]
    %v46 = vld [vmem:[%s0 + $0x8] sm:$0xff]
    %v47 = vld [vmem:[%s0 + $0x10] sm:$0xff]
    %v48 = vld [vmem:[%s0 + $0x18] sm:$0xff]
    %v49 = vld [vmem:[%s1] sm:$0x1]
    %v50 = vld [vmem:[%s2] sm:$0x1]
    %vm51 = vcmask 523264
    %v52 = vsel %vm51, %v45, 0.0
    %53 = vadd.xlane.f32.xlu0 %v52
    %v54 = vpop.xlane.xlu0 %53
    %v55 = vsel %vm51, %v46, 0.0
    %56 = vadd.xlane.f32.xlu0 %v55
    %v57 = vpop.xlane.xlu0 %56
    %v58 = vsel %vm51, %v47, 0.0
    %59 = vadd.xlane.f32.xlu0 %v58
    %v60 = vpop.xlane.xlu0 %59
    %v61 = vsel %vm51, %v48, 0.0
    %62 = vadd.xlane.f32.xlu0 %v61
    %v63 = vpop.xlane.xlu0 %62
    %v64 = vrcp.pop 64.0
    %v65 = vmul.f32 %v54, %v64
    %v66 = vmul.f32 %v57, %v64
    %v67 = vmul.f32 %v60, %v64
    %v68 = vmul.f32 %v63, %v64
    %v69 = vsub.f32 %v45, %v65
    %v70 = vsub.f32 %v46, %v66
    %v71 = vsub.f32 %v47, %v67
    %v72 = vsub.f32 %v48, %v68
    %v73 = vmul.f32 %v69, %v69
    %v74 = vmul.f32 %v70, %v70
    %v75 = vmul.f32 %v71, %v71
    %v76 = vmul.f32 %v72, %v72
    %v77 = vsel %vm51, %v73, 0.0
    %78 = vadd.xlane.f32.xlu0 %v77
    %v79 = vpop.xlane.xlu0 %78
    %v80 = vsel %vm51, %v74, 0.0
    %81 = vadd.xlane.f32.xlu0 %v80
    %v82 = vpop.xlane.xlu0 %81
    %v83 = vsel %vm51, %v75, 0.0
    %84 = vadd.xlane.f32.xlu0 %v83
    %v85 = vpop.xlane.xlu0 %84
    %v86 = vsel %vm51, %v76, 0.0
    %87 = vadd.xlane.f32.xlu0 %v86
    %v88 = vpop.xlane.xlu0 %87
    %v89 = vmul.f32 %v79, %v64
    %v90 = vmul.f32 %v82, %v64
    %v91 = vmul.f32 %v85, %v64
    %v92 = vmul.f32 %v88, %v64
    %v93 = vadd.f32 %v89, 1e-05
    %v94 = vadd.f32 %v90, 1e-05
    %v95 = vadd.f32 %v91, 1e-05
    %v96 = vadd.f32 %v92, 1e-05
    %v97 = vrsqrt.pop %v93
    %v98 = vrsqrt.pop %v94
    %v99 = vrsqrt.pop %v95
    %v100 = vrsqrt.pop %v96
    %v101 = vmul.f32 %v69, %v97
    %v102 = vmul.f32 %v70, %v98
    %v103 = vmul.f32 %v71, %v99
    %v104 = vmul.f32 %v72, %v100
    %v106 = vlaneseq
    %v107 = vshrl.u32 %v106, 7
    %v108 = vsub.s32 0, %v107
    %v109 = vrot.slane %v49, %v108
    %v111 = vmul.f32 %v101, %v109
    %v112 = vmul.f32 %v102, %v109
    %v113 = vmul.f32 %v103, %v109
    %v114 = vmul.f32 %v104, %v109
    %v116 = vlaneseq
    %v117 = vshrl.u32 %v116, 7
    %v118 = vsub.s32 0, %v117
    %v119 = vrot.slane %v50, %v118
    %v121 = vadd.f32 %v111, %v119
    %v122 = vadd.f32 %v112, %v119
    %v123 = vadd.f32 %v113, %v119
    %v124 = vadd.f32 %v114, %v119
    %v125 = vld [vmem:[%s5] sm:$0xff]
    %v126 = vld [vmem:[%s5 + $0x8] sm:$0xff]
    %v127 = vld [vmem:[%s5 + $0x10] sm:$0xff]
    %v128 = vld [vmem:[%s5 + $0x18] sm:$0xff]
    %v129 = vld [vmem:[%s5 + $0x20] sm:$0xff]
    %v130 = vld [vmem:[%s5 + $0x28] sm:$0xff]
    %v131 = vld [vmem:[%s5 + $0x30] sm:$0xff]
    %v132 = vld [vmem:[%s5 + $0x38] sm:$0xff]
    %v133 = vld [vmem:[%s5 + $0x40] sm:$0xff]
    %v134 = vld [vmem:[%s5 + $0x48] sm:$0xff]
    %v135 = vld [vmem:[%s5 + $0x50] sm:$0xff]
    %v136 = vld [vmem:[%s5 + $0x58] sm:$0xff]
    %v137 = vld [vmem:[%s5 + $0x60] sm:$0xff]
    %v138 = vld [vmem:[%s5 + $0x68] sm:$0xff]
    %v139 = vld [vmem:[%s5 + $0x70] sm:$0xff]
    %v140 = vld [vmem:[%s5 + $0x78] sm:$0xff]
    %v141 = vld [vmem:[%s6] sm:$0x3]
    %v143 = vlaneseq
    %v144 = vshrl.u32 %v143, 7
    %v145 = vsub.s32 0, %v144
    %v146 = vrot.slane %v141, %v145
    %v147 = vlaneseq
    %v148 = vshrl.u32 %v147, 7
    %v149 = vsub.s32 1, %v148
    %v150 = vrot.slane %v141, %v149
    %v154 = vsel %vm51, %v121, 0
    %v157 = vsel %vm51, %v122, 0
    %v160 = vsel %vm51, %v123, 0
    %v163 = vsel %vm51, %v124, 0
    %165 = vmatprep.subr.mxu0 %v126
    %166 = vmatpush1.msra.mxu0 %v125
    %167 = vmatprep.subr.mxu0 %v128
    %168 = vmatpush1.msra.mxu0 %v127
    %169 = vmatprep.subr.mxu0 %v130
    %170 = vmatpush1.msra.mxu0 %v129
    %171 = vmatprep.subr.mxu0 %v132
    %172 = vmatpush1.msra.mxu0 %v131
    %173 = vmatprep.subr.mxu0 %v134
    %174 = vmatpush1.msra.mxu0 %v133
    %175 = vmatprep.subr.mxu0 %v136
    %176 = vmatpush1.msra.mxu0 %v135
    %177 = vmatprep.subr.mxu0 %v138
    %178 = vmatpush1.msra.mxu0 %v137
    %179 = vmatprep.subr.mxu0 %v140
    %180 = vmatpush1.msra.mxu0 %v139
    %181 = vmatprep.subr.mxu0 0.0
    %182 = vmatpush1.msra.mxu0 0.0
    %183 = vmatprep.subr.mxu0 0.0
    %184 = vmatpush1.msra.mxu0 0.0
    %185 = vmatprep.subr.mxu0 0.0
    %186 = vmatpush1.msra.mxu0 0.0
    %187 = vmatprep.subr.mxu0 0.0
    %188 = vmatpush1.msra.mxu0 0.0
    %189 = vmatprep.subr.mxu0 0.0
    %190 = vmatpush1.msra.mxu0 0.0
    %191 = vmatprep.subr.mxu0 0.0
    %192 = vmatpush1.msra.mxu0 0.0
    %193 = vmatprep.subr.mxu0 0.0
    %194 = vmatpush1.msra.mxu0 0.0
    %195 = vmatprep.subr.mxu0 0.0
    %196 = vmatpush1.msra.mxu0 0.0
    %197 = vmatprep.subr.mxu0 0.0
    %198 = vmatpush1.msra.mxu0 0.0
    %199 = vmatprep.subr.mxu0 0.0
    %200 = vmatpush1.msra.mxu0 0.0
    %201 = vmatprep.subr.mxu0 0.0
    %202 = vmatpush1.msra.mxu0 0.0
    %203 = vmatprep.subr.mxu0 0.0
    %204 = vmatpush1.msra.mxu0 0.0
    %205 = vmatprep.subr.mxu0 0.0
    %206 = vmatpush1.msra.mxu0 0.0
    %207 = vmatprep.subr.mxu0 0.0
    %208 = vmatpush1.msra.mxu0 0.0
    %209 = vmatprep.subr.mxu0 0.0
    %210 = vmatpush1.msra.mxu0 0.0
    %211 = vmatprep.subr.mxu0 0.0
    %212 = vmatpush1.msra.mxu0 0.0
    %213 = vmatprep.subr.mxu0 0.0
    %214 = vmatpush1.msra.mxu0 0.0
    %215 = vmatprep.subr.mxu0 0.0
    %216 = vmatpush1.msra.mxu0 0.0
    %217 = vmatprep.subr.mxu0 0.0
    %218 = vmatpush1.msra.mxu0 0.0
    %219 = vmatprep.subr.mxu0 0.0
    %220 = vmatpush1.msra.mxu0 0.0
    %221 = vmatprep.subr.mxu0 0.0
    %222 = vmatpush1.msra.mxu0 0.0
    %223 = vmatprep.subr.mxu0 0.0
    %224 = vmatpush1.msra.mxu0 0.0
    %225 = vmatprep.subr.mxu0 0.0
    %226 = vmatpush1.msra.mxu0 0.0
    %227 = vmatprep.subr.mxu0 0.0
    %228 = vmatpush1.msra.mxu0 0.0
    %229 = vmatprep.mubr.f32.mxu0 0.0
    %230 = vmatmul.mubr.f32.gmra.mrb[0].mxu0 %v154
    %v231 = vpop.f32.mrb[0].mxu0
    %v232 = vadd.f32 %v146, %v231
    %v233 = vpop.f32.mrb[0].mxu0
    %v234 = vadd.f32 %v150, %v233
    %235 = vmatprep.mubr.f32.mxu0 0.0
    %236 = vmatmul.mubr.f32.gmra.mrb[0].mxu0 %v157
    %v237 = vpop.f32.mrb[0].mxu0
    %v238 = vadd.f32 %v146, %v237
    %v239 = vpop.f32.mrb[0].mxu0
    %v240 = vadd.f32 %v150, %v239
    %241 = vmatprep.mubr.f32.mxu0 0.0
    %242 = vmatmul.mubr.f32.gmra.mrb[0].mxu0 %v160
    %v243 = vpop.f32.mrb[0].mxu0
    %v244 = vadd.f32 %v146, %v243
    %v245 = vpop.f32.mrb[0].mxu0
    %v246 = vadd.f32 %v150, %v245
    %247 = vmatprep.mubr.f32.mxu0 0.0
    %248 = vmatmul.mubr.f32.gmra.mrb[0].mxu0 %v163
    %v249 = vpop.f32.mrb[0].mxu0
    %v250 = vadd.f32 %v146, %v249
    %v251 = vpop.f32.mrb[0].mxu0
    %v252 = vadd.f32 %v150, %v251
    %253 = vdwg.mxu0
    %258 = vrot.lane.b32.xlu0 %v232, 112
    %v259 = vpop.permute.xlu0 %258
    %260 = vrot.lane.b32.xlu0 %v238, 112
    %v261 = vpop.permute.xlu0 %260
    %262 = vrot.lane.b32.xlu0 %v244, 112
    %v263 = vpop.permute.xlu0 %262
    %264 = vrot.lane.b32.xlu0 %v250, 112
    %v265 = vpop.permute.xlu0 %264
    %270 = vrot.lane.b32.xlu0 %v232, 96
    %v271 = vpop.permute.xlu0 %270
    %272 = vrot.lane.b32.xlu0 %v238, 96
    %v273 = vpop.permute.xlu0 %272
    %274 = vrot.lane.b32.xlu0 %v244, 96
    %v275 = vpop.permute.xlu0 %274
    %276 = vrot.lane.b32.xlu0 %v250, 96
    %v277 = vpop.permute.xlu0 %276
    %282 = vrot.lane.b32.xlu0 %v232, 80
    %v283 = vpop.permute.xlu0 %282
    %284 = vrot.lane.b32.xlu0 %v238, 80
    %v285 = vpop.permute.xlu0 %284
    %286 = vrot.lane.b32.xlu0 %v244, 80
    %v287 = vpop.permute.xlu0 %286
    %288 = vrot.lane.b32.xlu0 %v250, 80
    %v289 = vpop.permute.xlu0 %288
    %v294 = vcombine.low %v232, %v271
    %v295 = vcombine.high %v232, %v271
    %v297 = vunpack.c.l.s4 1983009808
    %v298 = vunpack.c.0.s8 %v297
    %v299 = vlaneseq
    %v300 = vshrl.u32 %v299, 7
    %v301 = vsub.s32 %v298, %v300
    %v302 = vrot.slane %v294, %v301
    %v304 = vunpack.c.l.s4 1983009808
    %v305 = vunpack.c.0.s8 %v304
    %v306 = vlaneseq
    %v307 = vshrl.u32 %v306, 7
    %v308 = vsub.s32 %v305, %v307
    %v309 = vrot.slane %v295, %v308
    %v310 = vcombine.low %v259, %v283
    %v311 = vcombine.high %v259, %v283
    %v313 = vunpack.c.l.s4 1983009808
    %v314 = vunpack.c.0.s8 %v313
    %v315 = vlaneseq
    %v316 = vshrl.u32 %v315, 7
    %v317 = vsub.s32 %v314, %v316
    %v318 = vrot.slane %v310, %v317
    %v320 = vunpack.c.l.s4 1983009808
    %v321 = vunpack.c.0.s8 %v320
    %v322 = vlaneseq
    %v323 = vshrl.u32 %v322, 7
    %v324 = vsub.s32 %v321, %v323
    %v325 = vrot.slane %v311, %v324
    %v326 = vcombine.low %v302, %v318
    %v327 = vcombine.high %v302, %v318
    %v329 = vunpack.c.l.s4 1934713408
    %v330 = vunpack.c.0.s8 %v329
    %v331 = vlaneseq
    %v332 = vshrl.u32 %v331, 7
    %v333 = vsub.s32 %v330, %v332
    %v334 = vrot.slane %v326, %v333
    %v336 = vunpack.c.l.s4 1934713408
    %v337 = vunpack.c.0.s8 %v336
    %v338 = vlaneseq
    %v339 = vshrl.u32 %v338, 7
    %v340 = vsub.s32 %v337, %v339
    %v341 = vrot.slane %v327, %v340
    %v342 = vcombine.low %v309, %v325
    %v343 = vcombine.high %v309, %v325
    %v345 = vunpack.c.l.s4 1934713408
    %v346 = vunpack.c.0.s8 %v345
    %v347 = vlaneseq
    %v348 = vshrl.u32 %v347, 7
    %v349 = vsub.s32 %v346, %v348
    %v350 = vrot.slane %v342, %v349
    %v352 = vunpack.c.l.s4 1934713408
    %v353 = vunpack.c.0.s8 %v352
    %v354 = vlaneseq
    %v355 = vshrl.u32 %v354, 7
    %v356 = vsub.s32 %v353, %v355
    %v357 = vrot.slane %v343, %v356
    %v358 = vcombine.high %v334, 0.0
    %v359 = vcombine.high %v341, 0.0
    %v360 = vcombine.high %v350, 0.0
    %v361 = vcombine.high %v357, 0.0
    %v362 = vcombine.low %v238, %v273
    %v363 = vcombine.high %v238, %v273
    %v365 = vunpack.c.l.s4 1983009808
    %v366 = vunpack.c.0.s8 %v365
    %v367 = vlaneseq
    %v368 = vshrl.u32 %v367, 7
    %v369 = vsub.s32 %v366, %v368
    %v370 = vrot.slane %v362, %v369
    %v372 = vunpack.c.l.s4 1983009808
    %v373 = vunpack.c.0.s8 %v372
    %v374 = vlaneseq
    %v375 = vshrl.u32 %v374, 7
    %v376 = vsub.s32 %v373, %v375
    %v377 = vrot.slane %v363, %v376
    %v378 = vcombine.low %v261, %v285
    %v379 = vcombine.high %v261, %v285
    %v381 = vunpack.c.l.s4 1983009808
    %v382 = vunpack.c.0.s8 %v381
    %v383 = vlaneseq
    %v384 = vshrl.u32 %v383, 7
    %v385 = vsub.s32 %v382, %v384
    %v386 = vrot.slane %v378, %v385
    %v388 = vunpack.c.l.s4 1983009808
    %v389 = vunpack.c.0.s8 %v388
    %v390 = vlaneseq
    %v391 = vshrl.u32 %v390, 7
    %v392 = vsub.s32 %v389, %v391
    %v393 = vrot.slane %v379, %v392
    %v394 = vcombine.low %v370, %v386
    %v395 = vcombine.high %v370, %v386
    %v397 = vunpack.c.l.s4 1934713408
    %v398 = vunpack.c.0.s8 %v397
    %v399 = vlaneseq
    %v400 = vshrl.u32 %v399, 7
    %v401 = vsub.s32 %v398, %v400
    %v402 = vrot.slane %v394, %v401
    %v404 = vunpack.c.l.s4 1934713408
    %v405 = vunpack.c.0.s8 %v404
    %v406 = vlaneseq
    %v407 = vshrl.u32 %v406, 7
    %v408 = vsub.s32 %v405, %v407
    %v409 = vrot.slane %v395, %v408
    %v410 = vcombine.low %v377, %v393
    %v411 = vcombine.high %v377, %v393
    %v413 = vunpack.c.l.s4 1934713408
    %v414 = vunpack.c.0.s8 %v413
    %v415 = vlaneseq
    %v416 = vshrl.u32 %v415, 7
    %v417 = vsub.s32 %v414, %v416
    %v418 = vrot.slane %v410, %v417
    %v420 = vunpack.c.l.s4 1934713408
    %v421 = vunpack.c.0.s8 %v420
    %v422 = vlaneseq
    %v423 = vshrl.u32 %v422, 7
    %v424 = vsub.s32 %v421, %v423
    %v425 = vrot.slane %v411, %v424
    %v426 = vcombine.high %v402, 0.0
    %v427 = vcombine.high %v409, 0.0
    %v428 = vcombine.high %v418, 0.0
    %v429 = vcombine.high %v425, 0.0
    %v430 = vcombine.low %v244, %v275
    %v431 = vcombine.high %v244, %v275
    %v433 = vunpack.c.l.s4 1983009808
    %v434 = vunpack.c.0.s8 %v433
    %v435 = vlaneseq
    %v436 = vshrl.u32 %v435, 7
    %v437 = vsub.s32 %v434, %v436
    %v438 = vrot.slane %v430, %v437
    %v440 = vunpack.c.l.s4 1983009808
    %v441 = vunpack.c.0.s8 %v440
    %v442 = vlaneseq
    %v443 = vshrl.u32 %v442, 7
    %v444 = vsub.s32 %v441, %v443
    %v445 = vrot.slane %v431, %v444
    %v446 = vcombine.low %v263, %v287
    %v447 = vcombine.high %v263, %v287
    %v449 = vunpack.c.l.s4 1983009808
    %v450 = vunpack.c.0.s8 %v449
    %v451 = vlaneseq
    %v452 = vshrl.u32 %v451, 7
    %v453 = vsub.s32 %v450, %v452
    %v454 = vrot.slane %v446, %v453
    %v456 = vunpack.c.l.s4 1983009808
    %v457 = vunpack.c.0.s8 %v456
    %v458 = vlaneseq
    %v459 = vshrl.u32 %v458, 7
    %v460 = vsub.s32 %v457, %v459
    %v461 = vrot.slane %v447, %v460
    %v462 = vcombine.low %v438, %v454
    %v463 = vcombine.high %v438, %v454
    %v465 = vunpack.c.l.s4 1934713408
    %v466 = vunpack.c.0.s8 %v465
    %v467 = vlaneseq
    %v468 = vshrl.u32 %v467, 7
    %v469 = vsub.s32 %v466, %v468
    %v470 = vrot.slane %v462, %v469
    %v472 = vunpack.c.l.s4 1934713408
    %v473 = vunpack.c.0.s8 %v472
    %v474 = vlaneseq
    %v475 = vshrl.u32 %v474, 7
    %v476 = vsub.s32 %v473, %v475
    %v477 = vrot.slane %v463, %v476
    %v478 = vcombine.low %v445, %v461
    %v479 = vcombine.high %v445, %v461
    %v481 = vunpack.c.l.s4 1934713408
    %v482 = vunpack.c.0.s8 %v481
    %v483 = vlaneseq
    %v484 = vshrl.u32 %v483, 7
    %v485 = vsub.s32 %v482, %v484
    %v486 = vrot.slane %v478, %v485
    %v488 = vunpack.c.l.s4 1934713408
    %v489 = vunpack.c.0.s8 %v488
    %v490 = vlaneseq
    %v491 = vshrl.u32 %v490, 7
    %v492 = vsub.s32 %v489, %v491
    %v493 = vrot.slane %v479, %v492
    %v494 = vcombine.high %v470, 0.0
    %v495 = vcombine.high %v477, 0.0
    %v496 = vcombine.high %v486, 0.0
    %v497 = vcombine.high %v493, 0.0
    %v498 = vcombine.low %v250, %v277
    %v499 = vcombine.high %v250, %v277
    %v501 = vunpack.c.l.s4 1983009808
    %v502 = vunpack.c.0.s8 %v501
    %v503 = vlaneseq
    %v504 = vshrl.u32 %v503, 7
    %v505 = vsub.s32 %v502, %v504
    %v506 = vrot.slane %v498, %v505
    %v508 = vunpack.c.l.s4 1983009808
    %v509 = vunpack.c.0.s8 %v508
    %v510 = vlaneseq
    %v511 = vshrl.u32 %v510, 7
    %v512 = vsub.s32 %v509, %v511
    %v513 = vrot.slane %v499, %v512
    %v514 = vcombine.low %v265, %v289
    %v515 = vcombine.high %v265, %v289
    %v517 = vunpack.c.l.s4 1983009808
    %v518 = vunpack.c.0.s8 %v517
    %v519 = vlaneseq
    %v520 = vshrl.u32 %v519, 7
    %v521 = vsub.s32 %v518, %v520
    %v522 = vrot.slane %v514, %v521
    %v524 = vunpack.c.l.s4 1983009808
    %v525 = vunpack.c.0.s8 %v524
    %v526 = vlaneseq
    %v527 = vshrl.u32 %v526, 7
    %v528 = vsub.s32 %v525, %v527
    %v529 = vrot.slane %v515, %v528
    %v530 = vcombine.low %v506, %v522
    %v531 = vcombine.high %v506, %v522
    %v533 = vunpack.c.l.s4 1934713408
    %v534 = vunpack.c.0.s8 %v533
    %v535 = vlaneseq
    %v536 = vshrl.u32 %v535, 7
    %v537 = vsub.s32 %v534, %v536
    %v538 = vrot.slane %v530, %v537
    %v540 = vunpack.c.l.s4 1934713408
    %v541 = vunpack.c.0.s8 %v540
    %v542 = vlaneseq
    %v543 = vshrl.u32 %v542, 7
    %v544 = vsub.s32 %v541, %v543
    %v545 = vrot.slane %v531, %v544
    %v546 = vcombine.low %v513, %v529
    %v547 = vcombine.high %v513, %v529
    %v549 = vunpack.c.l.s4 1934713408
    %v550 = vunpack.c.0.s8 %v549
    %v551 = vlaneseq
    %v552 = vshrl.u32 %v551, 7
    %v553 = vsub.s32 %v550, %v552
    %v554 = vrot.slane %v546, %v553
    %v556 = vunpack.c.l.s4 1934713408
    %v557 = vunpack.c.0.s8 %v556
    %v558 = vlaneseq
    %v559 = vshrl.u32 %v558, 7
    %v560 = vsub.s32 %v557, %v559
    %v561 = vrot.slane %v547, %v560
    %v562 = vcombine.high %v538, 0.0
    %v563 = vcombine.high %v545, 0.0
    %v564 = vcombine.high %v554, 0.0
    %v565 = vcombine.high %v561, 0.0
    %v566 = vcombine.low %v334, %v341
    %v568 = vunpack.c.l.s4 1983009808
    %v569 = vunpack.c.0.s8 %v568
    %v570 = vlaneseq
    %v571 = vshrl.u32 %v570, 7
    %v572 = vsub.s32 %v569, %v571
    %v573 = vrot.slane %v566, %v572
    %v574 = vcombine.low %v358, %v359
    %v576 = vunpack.c.l.s4 1983009808
    %v577 = vunpack.c.0.s8 %v576
    %v578 = vlaneseq
    %v579 = vshrl.u32 %v578, 7
    %v580 = vsub.s32 %v577, %v579
    %v581 = vrot.slane %v574, %v580
    %v582 = vcombine.low %v350, %v357
    %v584 = vunpack.c.l.s4 1983009808
    %v585 = vunpack.c.0.s8 %v584
    %v586 = vlaneseq
    %v587 = vshrl.u32 %v586, 7
    %v588 = vsub.s32 %v585, %v587
    %v589 = vrot.slane %v582, %v588
    %v590 = vcombine.low %v360, %v361
    %v592 = vunpack.c.l.s4 1983009808
    %v593 = vunpack.c.0.s8 %v592
    %v594 = vlaneseq
    %v595 = vshrl.u32 %v594, 7
    %v596 = vsub.s32 %v593, %v595
    %v597 = vrot.slane %v590, %v596
    %v598 = vcombine.low %v573, %v581
    %v599 = vcombine.high %v573, %v581
    %v601 = vunpack.c.l.s4 1934713408
    %v602 = vunpack.c.0.s8 %v601
    %v603 = vlaneseq
    %v604 = vshrl.u32 %v603, 7
    %v605 = vsub.s32 %v602, %v604
    %v606 = vrot.slane %v598, %v605
    %v608 = vunpack.c.l.s4 1934713408
    %v609 = vunpack.c.0.s8 %v608
    %v610 = vlaneseq
    %v611 = vshrl.u32 %v610, 7
    %v612 = vsub.s32 %v609, %v611
    %v613 = vrot.slane %v599, %v612
    %v614 = vcombine.low %v589, %v597
    %v615 = vcombine.high %v589, %v597
    %v617 = vunpack.c.l.s4 1934713408
    %v618 = vunpack.c.0.s8 %v617
    %v619 = vlaneseq
    %v620 = vshrl.u32 %v619, 7
    %v621 = vsub.s32 %v618, %v620
    %v622 = vrot.slane %v614, %v621
    %v624 = vunpack.c.l.s4 1934713408
    %v625 = vunpack.c.0.s8 %v624
    %v626 = vlaneseq
    %v627 = vshrl.u32 %v626, 7
    %v628 = vsub.s32 %v625, %v627
    %v629 = vrot.slane %v615, %v628
    %v630 = vcombine.low %v606, %v622
    %v631 = vcombine.high %v606, %v622
    %v632 = vcombine.low %v613, %v629
    %v633 = vcombine.high %v613, %v629
    %v634 = vcombine.low %v402, %v409
    %v636 = vunpack.c.l.s4 1983009808
    %v637 = vunpack.c.0.s8 %v636
    %v638 = vlaneseq
    %v639 = vshrl.u32 %v638, 7
    %v640 = vsub.s32 %v637, %v639
    %v641 = vrot.slane %v634, %v640
    %v642 = vcombine.low %v426, %v427
    %v644 = vunpack.c.l.s4 1983009808
    %v645 = vunpack.c.0.s8 %v644
    %v646 = vlaneseq
    %v647 = vshrl.u32 %v646, 7
    %v648 = vsub.s32 %v645, %v647
    %v649 = vrot.slane %v642, %v648
    %v650 = vcombine.low %v418, %v425
    %v652 = vunpack.c.l.s4 1983009808
    %v653 = vunpack.c.0.s8 %v652
    %v654 = vlaneseq
    %v655 = vshrl.u32 %v654, 7
    %v656 = vsub.s32 %v653, %v655
    %v657 = vrot.slane %v650, %v656
    %v658 = vcombine.low %v428, %v429
    %v660 = vunpack.c.l.s4 1983009808
    %v661 = vunpack.c.0.s8 %v660
    %v662 = vlaneseq
    %v663 = vshrl.u32 %v662, 7
    %v664 = vsub.s32 %v661, %v663
    %v665 = vrot.slane %v658, %v664
    %v666 = vcombine.low %v641, %v649
    %v667 = vcombine.high %v641, %v649
    %v669 = vunpack.c.l.s4 1934713408
    %v670 = vunpack.c.0.s8 %v669
    %v671 = vlaneseq
    %v672 = vshrl.u32 %v671, 7
    %v673 = vsub.s32 %v670, %v672
    %v674 = vrot.slane %v666, %v673
    %v676 = vunpack.c.l.s4 1934713408
    %v677 = vunpack.c.0.s8 %v676
    %v678 = vlaneseq
    %v679 = vshrl.u32 %v678, 7
    %v680 = vsub.s32 %v677, %v679
    %v681 = vrot.slane %v667, %v680
    %v682 = vcombine.low %v657, %v665
    %v683 = vcombine.high %v657, %v665
    %v685 = vunpack.c.l.s4 1934713408
    %v686 = vunpack.c.0.s8 %v685
    %v687 = vlaneseq
    %v688 = vshrl.u32 %v687, 7
    %v689 = vsub.s32 %v686, %v688
    %v690 = vrot.slane %v682, %v689
    %v692 = vunpack.c.l.s4 1934713408
    %v693 = vunpack.c.0.s8 %v692
    %v694 = vlaneseq
    %v695 = vshrl.u32 %v694, 7
    %v696 = vsub.s32 %v693, %v695
    %v697 = vrot.slane %v683, %v696
    %v698 = vcombine.low %v674, %v690
    %v699 = vcombine.high %v674, %v690
    %v700 = vcombine.low %v681, %v697
    %v701 = vcombine.high %v681, %v697
    %v702 = vcombine.low %v470, %v477
    %v704 = vunpack.c.l.s4 1983009808
    %v705 = vunpack.c.0.s8 %v704
    %v706 = vlaneseq
    %v707 = vshrl.u32 %v706, 7
    %v708 = vsub.s32 %v705, %v707
    %v709 = vrot.slane %v702, %v708
    %v710 = vcombine.low %v494, %v495
    %v712 = vunpack.c.l.s4 1983009808
    %v713 = vunpack.c.0.s8 %v712
    %v714 = vlaneseq
    %v715 = vshrl.u32 %v714, 7
    %v716 = vsub.s32 %v713, %v715
    %v717 = vrot.slane %v710, %v716
    %v718 = vcombine.low %v486, %v493
    %v720 = vunpack.c.l.s4 1983009808
    %v721 = vunpack.c.0.s8 %v720
    %v722 = vlaneseq
    %v723 = vshrl.u32 %v722, 7
    %v724 = vsub.s32 %v721, %v723
    %v725 = vrot.slane %v718, %v724
    %v726 = vcombine.low %v496, %v497
    %v728 = vunpack.c.l.s4 1983009808
    %v729 = vunpack.c.0.s8 %v728
    %v730 = vlaneseq
    %v731 = vshrl.u32 %v730, 7
    %v732 = vsub.s32 %v729, %v731
    %v733 = vrot.slane %v726, %v732
    %v734 = vcombine.low %v709, %v717
    %v735 = vcombine.high %v709, %v717
    %v737 = vunpack.c.l.s4 1934713408
    %v738 = vunpack.c.0.s8 %v737
    %v739 = vlaneseq
    %v740 = vshrl.u32 %v739, 7
    %v741 = vsub.s32 %v738, %v740
    %v742 = vrot.slane %v734, %v741
    %v744 = vunpack.c.l.s4 1934713408
    %v745 = vunpack.c.0.s8 %v744
    %v746 = vlaneseq
    %v747 = vshrl.u32 %v746, 7
    %v748 = vsub.s32 %v745, %v747
    %v749 = vrot.slane %v735, %v748
    %v750 = vcombine.low %v725, %v733
    %v751 = vcombine.high %v725, %v733
    %v753 = vunpack.c.l.s4 1934713408
    %v754 = vunpack.c.0.s8 %v753
    %v755 = vlaneseq
    %v756 = vshrl.u32 %v755, 7
    %v757 = vsub.s32 %v754, %v756
    %v758 = vrot.slane %v750, %v757
    %v760 = vunpack.c.l.s4 1934713408
    %v761 = vunpack.c.0.s8 %v760
    %v762 = vlaneseq
    %v763 = vshrl.u32 %v762, 7
    %v764 = vsub.s32 %v761, %v763
    %v765 = vrot.slane %v751, %v764
    %v766 = vcombine.low %v742, %v758
    %v767 = vcombine.high %v742, %v758
    %v768 = vcombine.low %v749, %v765
    %v769 = vcombine.high %v749, %v765
    %v770 = vcombine.low %v538, %v545
    %v772 = vunpack.c.l.s4 1983009808
    %v773 = vunpack.c.0.s8 %v772
    %v774 = vlaneseq
    %v775 = vshrl.u32 %v774, 7
    %v776 = vsub.s32 %v773, %v775
    %v777 = vrot.slane %v770, %v776
    %v778 = vcombine.low %v562, %v563
    %v780 = vunpack.c.l.s4 1983009808
    %v781 = vunpack.c.0.s8 %v780
    %v782 = vlaneseq
    %v783 = vshrl.u32 %v782, 7
    %v784 = vsub.s32 %v781, %v783
    %v785 = vrot.slane %v778, %v784
    %v786 = vcombine.low %v554, %v561
    %v788 = vunpack.c.l.s4 1983009808
    %v789 = vunpack.c.0.s8 %v788
    %v790 = vlaneseq
    %v791 = vshrl.u32 %v790, 7
    %v792 = vsub.s32 %v789, %v791
    %v793 = vrot.slane %v786, %v792
    %v794 = vcombine.low %v564, %v565
    %v796 = vunpack.c.l.s4 1983009808
    %v797 = vunpack.c.0.s8 %v796
    %v798 = vlaneseq
    %v799 = vshrl.u32 %v798, 7
    %v800 = vsub.s32 %v797, %v799
    %v801 = vrot.slane %v794, %v800
    %v802 = vcombine.low %v777, %v785
    %v803 = vcombine.high %v777, %v785
    %v805 = vunpack.c.l.s4 1934713408
    %v806 = vunpack.c.0.s8 %v805
    %v807 = vlaneseq
    %v808 = vshrl.u32 %v807, 7
    %v809 = vsub.s32 %v806, %v808
    %v810 = vrot.slane %v802, %v809
    %v812 = vunpack.c.l.s4 1934713408
    %v813 = vunpack.c.0.s8 %v812
    %v814 = vlaneseq
    %v815 = vshrl.u32 %v814, 7
    %v816 = vsub.s32 %v813, %v815
    %v817 = vrot.slane %v803, %v816
    %v818 = vcombine.low %v793, %v801
    %v819 = vcombine.high %v793, %v801
    %v821 = vunpack.c.l.s4 1934713408
    %v822 = vunpack.c.0.s8 %v821
    %v823 = vlaneseq
    %v824 = vshrl.u32 %v823, 7
    %v825 = vsub.s32 %v822, %v824
    %v826 = vrot.slane %v818, %v825
    %v828 = vunpack.c.l.s4 1934713408
    %v829 = vunpack.c.0.s8 %v828
    %v830 = vlaneseq
    %v831 = vshrl.u32 %v830, 7
    %v832 = vsub.s32 %v829, %v831
    %v833 = vrot.slane %v819, %v832
    %v834 = vcombine.low %v810, %v826
    %v835 = vcombine.high %v810, %v826
    %v836 = vcombine.low %v817, %v833
    %v837 = vcombine.high %v817, %v833
    %838 = vrot.lane.b32.xlu0 %v232, 64
    %v839 = vpop.permute.xlu0 %838
    %840 = vrot.lane.b32.xlu0 %v238, 64
    %v841 = vpop.permute.xlu0 %840
    %842 = vrot.lane.b32.xlu0 %v244, 64
    %v843 = vpop.permute.xlu0 %842
    %844 = vrot.lane.b32.xlu0 %v250, 64
    %v845 = vpop.permute.xlu0 %844
    %846 = vrot.lane.b32.xlu0 %v259, 64
    %v847 = vpop.permute.xlu0 %846
    %848 = vrot.lane.b32.xlu0 %v261, 64
    %v849 = vpop.permute.xlu0 %848
    %850 = vrot.lane.b32.xlu0 %v263, 64
    %v851 = vpop.permute.xlu0 %850
    %852 = vrot.lane.b32.xlu0 %v265, 64
    %v853 = vpop.permute.xlu0 %852
    %854 = vrot.lane.b32.xlu0 %v271, 64
    %v855 = vpop.permute.xlu0 %854
    %856 = vrot.lane.b32.xlu0 %v273, 64
    %v857 = vpop.permute.xlu0 %856
    %858 = vrot.lane.b32.xlu0 %v275, 64
    %v859 = vpop.permute.xlu0 %858
    %860 = vrot.lane.b32.xlu0 %v277, 64
    %v861 = vpop.permute.xlu0 %860
    %862 = vrot.lane.b32.xlu0 %v283, 64
    %v863 = vpop.permute.xlu0 %862
    %864 = vrot.lane.b32.xlu0 %v285, 64
    %v865 = vpop.permute.xlu0 %864
    %866 = vrot.lane.b32.xlu0 %v287, 64
    %v867 = vpop.permute.xlu0 %866
    %868 = vrot.lane.b32.xlu0 %v289, 64
    %v869 = vpop.permute.xlu0 %868
    %v886 = vcombine.low %v839, %v855
    %v887 = vcombine.high %v839, %v855
    %v889 = vunpack.c.l.s4 1983009808
    %v890 = vunpack.c.0.s8 %v889
    %v891 = vlaneseq
    %v892 = vshrl.u32 %v891, 7
    %v893 = vsub.s32 %v890, %v892
    %v894 = vrot.slane %v886, %v893
    %v896 = vunpack.c.l.s4 1983009808
    %v897 = vunpack.c.0.s8 %v896
    %v898 = vlaneseq
    %v899 = vshrl.u32 %v898, 7
    %v900 = vsub.s32 %v897, %v899
    %v901 = vrot.slane %v887, %v900
    %v902 = vcombine.low %v847, %v863
    %v903 = vcombine.high %v847, %v863
    %v905 = vunpack.c.l.s4 1983009808
    %v906 = vunpack.c.0.s8 %v905
    %v907 = vlaneseq
    %v908 = vshrl.u32 %v907, 7
    %v909 = vsub.s32 %v906, %v908
    %v910 = vrot.slane %v902, %v909
    %v912 = vunpack.c.l.s4 1983009808
    %v913 = vunpack.c.0.s8 %v912
    %v914 = vlaneseq
    %v915 = vshrl.u32 %v914, 7
    %v916 = vsub.s32 %v913, %v915
    %v917 = vrot.slane %v903, %v916
    %v918 = vcombine.low %v894, %v910
    %v919 = vcombine.high %v894, %v910
    %v921 = vunpack.c.l.s4 1934713408
    %v922 = vunpack.c.0.s8 %v921
    %v923 = vlaneseq
    %v924 = vshrl.u32 %v923, 7
    %v925 = vsub.s32 %v922, %v924
    %v926 = vrot.slane %v918, %v925
    %v928 = vunpack.c.l.s4 1934713408
    %v929 = vunpack.c.0.s8 %v928
    %v930 = vlaneseq
    %v931 = vshrl.u32 %v930, 7
    %v932 = vsub.s32 %v929, %v931
    %v933 = vrot.slane %v919, %v932
    %v934 = vcombine.low %v901, %v917
    %v935 = vcombine.high %v901, %v917
    %v937 = vunpack.c.l.s4 1934713408
    %v938 = vunpack.c.0.s8 %v937
    %v939 = vlaneseq
    %v940 = vshrl.u32 %v939, 7
    %v941 = vsub.s32 %v938, %v940
    %v942 = vrot.slane %v934, %v941
    %v944 = vunpack.c.l.s4 1934713408
    %v945 = vunpack.c.0.s8 %v944
    %v946 = vlaneseq
    %v947 = vshrl.u32 %v946, 7
    %v948 = vsub.s32 %v945, %v947
    %v949 = vrot.slane %v935, %v948
    %v950 = vcombine.high %v926, 0.0
    %v951 = vcombine.high %v933, 0.0
    %v952 = vcombine.high %v942, 0.0
    %v953 = vcombine.high %v949, 0.0
    %v954 = vcombine.low %v841, %v857
    %v955 = vcombine.high %v841, %v857
    %v957 = vunpack.c.l.s4 1983009808
    %v958 = vunpack.c.0.s8 %v957
    %v959 = vlaneseq
    %v960 = vshrl.u32 %v959, 7
    %v961 = vsub.s32 %v958, %v960
    %v962 = vrot.slane %v954, %v961
    %v964 = vunpack.c.l.s4 1983009808
    %v965 = vunpack.c.0.s8 %v964
    %v966 = vlaneseq
    %v967 = vshrl.u32 %v966, 7
    %v968 = vsub.s32 %v965, %v967
    %v969 = vrot.slane %v955, %v968
    %v970 = vcombine.low %v849, %v865
    %v971 = vcombine.high %v849, %v865
    %v973 = vunpack.c.l.s4 1983009808
    %v974 = vunpack.c.0.s8 %v973
    %v975 = vlaneseq
    %v976 = vshrl.u32 %v975, 7
    %v977 = vsub.s32 %v974, %v976
    %v978 = vrot.slane %v970, %v977
    %v980 = vunpack.c.l.s4 1983009808
    %v981 = vunpack.c.0.s8 %v980
    %v982 = vlaneseq
    %v983 = vshrl.u32 %v982, 7
    %v984 = vsub.s32 %v981, %v983
    %v985 = vrot.slane %v971, %v984
    %v986 = vcombine.low %v962, %v978
    %v987 = vcombine.high %v962, %v978
    %v989 = vunpack.c.l.s4 1934713408
    %v990 = vunpack.c.0.s8 %v989
    %v991 = vlaneseq
    %v992 = vshrl.u32 %v991, 7
    %v993 = vsub.s32 %v990, %v992
    %v994 = vrot.slane %v986, %v993
    %v996 = vunpack.c.l.s4 1934713408
    %v997 = vunpack.c.0.s8 %v996
    %v998 = vlaneseq
    %v999 = vshrl.u32 %v998, 7
    %v1000 = vsub.s32 %v997, %v999
    %v1001 = vrot.slane %v987, %v1000
    %v1002 = vcombine.low %v969, %v985
    %v1003 = vcombine.high %v969, %v985
    %v1005 = vunpack.c.l.s4 1934713408
    %v1006 = vunpack.c.0.s8 %v1005
    %v1007 = vlaneseq
    %v1008 = vshrl.u32 %v1007, 7
    %v1009 = vsub.s32 %v1006, %v1008
    %v1010 = vrot.slane %v1002, %v1009
    %v1012 = vunpack.c.l.s4 1934713408
    %v1013 = vunpack.c.0.s8 %v1012
    %v1014 = vlaneseq
    %v1015 = vshrl.u32 %v1014, 7
    %v1016 = vsub.s32 %v1013, %v1015
    %v1017 = vrot.slane %v1003, %v1016
    %v1018 = vcombine.high %v994, 0.0
    %v1019 = vcombine.high %v1001, 0.0
    %v1020 = vcombine.high %v1010, 0.0
    %v1021 = vcombine.high %v1017, 0.0
    %v1022 = vcombine.low %v843, %v859
    %v1023 = vcombine.high %v843, %v859
    %v1025 = vunpack.c.l.s4 1983009808
    %v1026 = vunpack.c.0.s8 %v1025
    %v1027 = vlaneseq
    %v1028 = vshrl.u32 %v1027, 7
    %v1029 = vsub.s32 %v1026, %v1028
    %v1030 = vrot.slane %v1022, %v1029
    %v1032 = vunpack.c.l.s4 1983009808
    %v1033 = vunpack.c.0.s8 %v1032
    %v1034 = vlaneseq
    %v1035 = vshrl.u32 %v1034, 7
    %v1036 = vsub.s32 %v1033, %v1035
    %v1037 = vrot.slane %v1023, %v1036
    %v1038 = vcombine.low %v851, %v867
    %v1039 = vcombine.high %v851, %v867
    %v1041 = vunpack.c.l.s4 1983009808
    %v1042 = vunpack.c.0.s8 %v1041
    %v1043 = vlaneseq
    %v1044 = vshrl.u32 %v1043, 7
    %v1045 = vsub.s32 %v1042, %v1044
    %v1046 = vrot.slane %v1038, %v1045
    %v1048 = vunpack.c.l.s4 1983009808
    %v1049 = vunpack.c.0.s8 %v1048
    %v1050 = vlaneseq
    %v1051 = vshrl.u32 %v1050, 7
    %v1052 = vsub.s32 %v1049, %v1051
    %v1053 = vrot.slane %v1039, %v1052
    %v1054 = vcombine.low %v1030, %v1046
    %v1055 = vcombine.high %v1030, %v1046
    %v1057 = vunpack.c.l.s4 1934713408
    %v1058 = vunpack.c.0.s8 %v1057
    %v1059 = vlaneseq
    %v1060 = vshrl.u32 %v1059, 7
    %v1061 = vsub.s32 %v1058, %v1060
    %v1062 = vrot.slane %v1054, %v1061
    %v1064 = vunpack.c.l.s4 1934713408
    %v1065 = vunpack.c.0.s8 %v1064
    %v1066 = vlaneseq
    %v1067 = vshrl.u32 %v1066, 7
    %v1068 = vsub.s32 %v1065, %v1067
    %v1069 = vrot.slane %v1055, %v1068
    %v1070 = vcombine.low %v1037, %v1053
    %v1071 = vcombine.high %v1037, %v1053
    %v1073 = vunpack.c.l.s4 1934713408
    %v1074 = vunpack.c.0.s8 %v1073
    %v1075 = vlaneseq
    %v1076 = vshrl.u32 %v1075, 7
    %v1077 = vsub.s32 %v1074, %v1076
    %v1078 = vrot.slane %v1070, %v1077
    %v1080 = vunpack.c.l.s4 1934713408
    %v1081 = vunpack.c.0.s8 %v1080
    %v1082 = vlaneseq
    %v1083 = vshrl.u32 %v1082, 7
    %v1084 = vsub.s32 %v1081, %v1083
    %v1085 = vrot.slane %v1071, %v1084
    %v1086 = vcombine.high %v1062, 0.0
    %v1087 = vcombine.high %v1069, 0.0
    %v1088 = vcombine.high %v1078, 0.0
    %v1089 = vcombine.high %v1085, 0.0
    %v1090 = vcombine.low %v845, %v861
    %v1091 = vcombine.high %v845, %v861
    %v1093 = vunpack.c.l.s4 1983009808
    %v1094 = vunpack.c.0.s8 %v1093
    %v1095 = vlaneseq
    %v1096 = vshrl.u32 %v1095, 7
    %v1097 = vsub.s32 %v1094, %v1096
    %v1098 = vrot.slane %v1090, %v1097
    %v1100 = vunpack.c.l.s4 1983009808
    %v1101 = vunpack.c.0.s8 %v1100
    %v1102 = vlaneseq
    %v1103 = vshrl.u32 %v1102, 7
    %v1104 = vsub.s32 %v1101, %v1103
    %v1105 = vrot.slane %v1091, %v1104
    %v1106 = vcombine.low %v853, %v869
    %v1107 = vcombine.high %v853, %v869
    %v1109 = vunpack.c.l.s4 1983009808
    %v1110 = vunpack.c.0.s8 %v1109
    %v1111 = vlaneseq
    %v1112 = vshrl.u32 %v1111, 7
    %v1113 = vsub.s32 %v1110, %v1112
    %v1114 = vrot.slane %v1106, %v1113
    %v1116 = vunpack.c.l.s4 1983009808
    %v1117 = vunpack.c.0.s8 %v1116
    %v1118 = vlaneseq
    %v1119 = vshrl.u32 %v1118, 7
    %v1120 = vsub.s32 %v1117, %v1119
    %v1121 = vrot.slane %v1107, %v1120
    %v1122 = vcombine.low %v1098, %v1114
    %v1123 = vcombine.high %v1098, %v1114
    %v1125 = vunpack.c.l.s4 1934713408
    %v1126 = vunpack.c.0.s8 %v1125
    %v1127 = vlaneseq
    %v1128 = vshrl.u32 %v1127, 7
    %v1129 = vsub.s32 %v1126, %v1128
    %v1130 = vrot.slane %v1122, %v1129
    %v1132 = vunpack.c.l.s4 1934713408
    %v1133 = vunpack.c.0.s8 %v1132
    %v1134 = vlaneseq
    %v1135 = vshrl.u32 %v1134, 7
    %v1136 = vsub.s32 %v1133, %v1135
    %v1137 = vrot.slane %v1123, %v1136
    %v1138 = vcombine.low %v1105, %v1121
    %v1139 = vcombine.high %v1105, %v1121
    %v1141 = vunpack.c.l.s4 1934713408
    %v1142 = vunpack.c.0.s8 %v1141
    %v1143 = vlaneseq
    %v1144 = vshrl.u32 %v1143, 7
    %v1145 = vsub.s32 %v1142, %v1144
    %v1146 = vrot.slane %v1138, %v1145
    %v1148 = vunpack.c.l.s4 1934713408
    %v1149 = vunpack.c.0.s8 %v1148
    %v1150 = vlaneseq
    %v1151 = vshrl.u32 %v1150, 7
    %v1152 = vsub.s32 %v1149, %v1151
    %v1153 = vrot.slane %v1139, %v1152
    %v1154 = vcombine.high %v1130, 0.0
    %v1155 = vcombine.high %v1137, 0.0
    %v1156 = vcombine.high %v1146, 0.0
    %v1157 = vcombine.high %v1153, 0.0
    %v1158 = vcombine.low %v926, %v933
    %v1160 = vunpack.c.l.s4 1983009808
    %v1161 = vunpack.c.0.s8 %v1160
    %v1162 = vlaneseq
    %v1163 = vshrl.u32 %v1162, 7
    %v1164 = vsub.s32 %v1161, %v1163
    %v1165 = vrot.slane %v1158, %v1164
    %v1166 = vcombine.low %v950, %v951
    %v1168 = vunpack.c.l.s4 1983009808
    %v1169 = vunpack.c.0.s8 %v1168
    %v1170 = vlaneseq
    %v1171 = vshrl.u32 %v1170, 7
    %v1172 = vsub.s32 %v1169, %v1171
    %v1173 = vrot.slane %v1166, %v1172
    %v1174 = vcombine.low %v942, %v949
    %v1176 = vunpack.c.l.s4 1983009808
    %v1177 = vunpack.c.0.s8 %v1176
    %v1178 = vlaneseq
    %v1179 = vshrl.u32 %v1178, 7
    %v1180 = vsub.s32 %v1177, %v1179
    %v1181 = vrot.slane %v1174, %v1180
    %v1182 = vcombine.low %v952, %v953
    %v1184 = vunpack.c.l.s4 1983009808
    %v1185 = vunpack.c.0.s8 %v1184
    %v1186 = vlaneseq
    %v1187 = vshrl.u32 %v1186, 7
    %v1188 = vsub.s32 %v1185, %v1187
    %v1189 = vrot.slane %v1182, %v1188
    %v1190 = vcombine.low %v1165, %v1173
    %v1191 = vcombine.high %v1165, %v1173
    %v1193 = vunpack.c.l.s4 1934713408
    %v1194 = vunpack.c.0.s8 %v1193
    %v1195 = vlaneseq
    %v1196 = vshrl.u32 %v1195, 7
    %v1197 = vsub.s32 %v1194, %v1196
    %v1198 = vrot.slane %v1190, %v1197
    %v1200 = vunpack.c.l.s4 1934713408
    %v1201 = vunpack.c.0.s8 %v1200
    %v1202 = vlaneseq
    %v1203 = vshrl.u32 %v1202, 7
    %v1204 = vsub.s32 %v1201, %v1203
    %v1205 = vrot.slane %v1191, %v1204
    %v1206 = vcombine.low %v1181, %v1189
    %v1207 = vcombine.high %v1181, %v1189
    %v1209 = vunpack.c.l.s4 1934713408
    %v1210 = vunpack.c.0.s8 %v1209
    %v1211 = vlaneseq
    %v1212 = vshrl.u32 %v1211, 7
    %v1213 = vsub.s32 %v1210, %v1212
    %v1214 = vrot.slane %v1206, %v1213
    %v1216 = vunpack.c.l.s4 1934713408
    %v1217 = vunpack.c.0.s8 %v1216
    %v1218 = vlaneseq
    %v1219 = vshrl.u32 %v1218, 7
    %v1220 = vsub.s32 %v1217, %v1219
    %v1221 = vrot.slane %v1207, %v1220
    %v1222 = vcombine.low %v1198, %v1214
    %v1223 = vcombine.high %v1198, %v1214
    %v1224 = vcombine.low %v1205, %v1221
    %v1225 = vcombine.high %v1205, %v1221
    %v1226 = vcombine.low %v994, %v1001
    %v1228 = vunpack.c.l.s4 1983009808
    %v1229 = vunpack.c.0.s8 %v1228
    %v1230 = vlaneseq
    %v1231 = vshrl.u32 %v1230, 7
    %v1232 = vsub.s32 %v1229, %v1231
    %v1233 = vrot.slane %v1226, %v1232
    %v1234 = vcombine.low %v1018, %v1019
    %v1236 = vunpack.c.l.s4 1983009808
    %v1237 = vunpack.c.0.s8 %v1236
    %v1238 = vlaneseq
    %v1239 = vshrl.u32 %v1238, 7
    %v1240 = vsub.s32 %v1237, %v1239
    %v1241 = vrot.slane %v1234, %v1240
    %v1242 = vcombine.low %v1010, %v1017
    %v1244 = vunpack.c.l.s4 1983009808
    %v1245 = vunpack.c.0.s8 %v1244
    %v1246 = vlaneseq
    %v1247 = vshrl.u32 %v1246, 7
    %v1248 = vsub.s32 %v1245, %v1247
    %v1249 = vrot.slane %v1242, %v1248
    %v1250 = vcombine.low %v1020, %v1021
    %v1252 = vunpack.c.l.s4 1983009808
    %v1253 = vunpack.c.0.s8 %v1252
    %v1254 = vlaneseq
    %v1255 = vshrl.u32 %v1254, 7
    %v1256 = vsub.s32 %v1253, %v1255
    %v1257 = vrot.slane %v1250, %v1256
    %v1258 = vcombine.low %v1233, %v1241
    %v1259 = vcombine.high %v1233, %v1241
    %v1261 = vunpack.c.l.s4 1934713408
    %v1262 = vunpack.c.0.s8 %v1261
    %v1263 = vlaneseq
    %v1264 = vshrl.u32 %v1263, 7
    %v1265 = vsub.s32 %v1262, %v1264
    %v1266 = vrot.slane %v1258, %v1265
    %v1268 = vunpack.c.l.s4 1934713408
    %v1269 = vunpack.c.0.s8 %v1268
    %v1270 = vlaneseq
    %v1271 = vshrl.u32 %v1270, 7
    %v1272 = vsub.s32 %v1269, %v1271
    %v1273 = vrot.slane %v1259, %v1272
    %v1274 = vcombine.low %v1249, %v1257
    %v1275 = vcombine.high %v1249, %v1257
    %v1277 = vunpack.c.l.s4 1934713408
    %v1278 = vunpack.c.0.s8 %v1277
    %v1279 = vlaneseq
    %v1280 = vshrl.u32 %v1279, 7
    %v1281 = vsub.s32 %v1278, %v1280
    %v1282 = vrot.slane %v1274, %v1281
    %v1284 = vunpack.c.l.s4 1934713408
    %v1285 = vunpack.c.0.s8 %v1284
    %v1286 = vlaneseq
    %v1287 = vshrl.u32 %v1286, 7
    %v1288 = vsub.s32 %v1285, %v1287
    %v1289 = vrot.slane %v1275, %v1288
    %v1290 = vcombine.low %v1266, %v1282
    %v1291 = vcombine.high %v1266, %v1282
    %v1292 = vcombine.low %v1273, %v1289
    %v1293 = vcombine.high %v1273, %v1289
    %v1294 = vcombine.low %v1062, %v1069
    %v1296 = vunpack.c.l.s4 1983009808
    %v1297 = vunpack.c.0.s8 %v1296
    %v1298 = vlaneseq
    %v1299 = vshrl.u32 %v1298, 7
    %v1300 = vsub.s32 %v1297, %v1299
    %v1301 = vrot.slane %v1294, %v1300
    %v1302 = vcombine.low %v1086, %v1087
    %v1304 = vunpack.c.l.s4 1983009808
    %v1305 = vunpack.c.0.s8 %v1304
    %v1306 = vlaneseq
    %v1307 = vshrl.u32 %v1306, 7
    %v1308 = vsub.s32 %v1305, %v1307
    %v1309 = vrot.slane %v1302, %v1308
    %v1310 = vcombine.low %v1078, %v1085
    %v1312 = vunpack.c.l.s4 1983009808
    %v1313 = vunpack.c.0.s8 %v1312
    %v1314 = vlaneseq
    %v1315 = vshrl.u32 %v1314, 7
    %v1316 = vsub.s32 %v1313, %v1315
    %v1317 = vrot.slane %v1310, %v1316
    %v1318 = vcombine.low %v1088, %v1089
    %v1320 = vunpack.c.l.s4 1983009808
    %v1321 = vunpack.c.0.s8 %v1320
    %v1322 = vlaneseq
    %v1323 = vshrl.u32 %v1322, 7
    %v1324 = vsub.s32 %v1321, %v1323
    %v1325 = vrot.slane %v1318, %v1324
    %v1326 = vcombine.low %v1301, %v1309
    %v1327 = vcombine.high %v1301, %v1309
    %v1329 = vunpack.c.l.s4 1934713408
    %v1330 = vunpack.c.0.s8 %v1329
    %v1331 = vlaneseq
    %v1332 = vshrl.u32 %v1331, 7
    %v1333 = vsub.s32 %v1330, %v1332
    %v1334 = vrot.slane %v1326, %v1333
    %v1336 = vunpack.c.l.s4 1934713408
    %v1337 = vunpack.c.0.s8 %v1336
    %v1338 = vlaneseq
    %v1339 = vshrl.u32 %v1338, 7
    %v1340 = vsub.s32 %v1337, %v1339
    %v1341 = vrot.slane %v1327, %v1340
    %v1342 = vcombine.low %v1317, %v1325
    %v1343 = vcombine.high %v1317, %v1325
    %v1345 = vunpack.c.l.s4 1934713408
    %v1346 = vunpack.c.0.s8 %v1345
    %v1347 = vlaneseq
    %v1348 = vshrl.u32 %v1347, 7
    %v1349 = vsub.s32 %v1346, %v1348
    %v1350 = vrot.slane %v1342, %v1349
    %v1352 = vunpack.c.l.s4 1934713408
    %v1353 = vunpack.c.0.s8 %v1352
    %v1354 = vlaneseq
    %v1355 = vshrl.u32 %v1354, 7
    %v1356 = vsub.s32 %v1353, %v1355
    %v1357 = vrot.slane %v1343, %v1356
    %v1358 = vcombine.low %v1334, %v1350
    %v1359 = vcombine.high %v1334, %v1350
    %v1360 = vcombine.low %v1341, %v1357
    %v1361 = vcombine.high %v1341, %v1357
    %v1362 = vcombine.low %v1130, %v1137
    %v1364 = vunpack.c.l.s4 1983009808
    %v1365 = vunpack.c.0.s8 %v1364
    %v1366 = vlaneseq
    %v1367 = vshrl.u32 %v1366, 7
    %v1368 = vsub.s32 %v1365, %v1367
    %v1369 = vrot.slane %v1362, %v1368
    %v1370 = vcombine.low %v1154, %v1155
    %v1372 = vunpack.c.l.s4 1983009808
    %v1373 = vunpack.c.0.s8 %v1372
    %v1374 = vlaneseq
    %v1375 = vshrl.u32 %v1374, 7
    %v1376 = vsub.s32 %v1373, %v1375
    %v1377 = vrot.slane %v1370, %v1376
    %v1378 = vcombine.low %v1146, %v1153
    %v1380 = vunpack.c.l.s4 1983009808
    %v1381 = vunpack.c.0.s8 %v1380
    %v1382 = vlaneseq
    %v1383 = vshrl.u32 %v1382, 7
    %v1384 = vsub.s32 %v1381, %v1383
    %v1385 = vrot.slane %v1378, %v1384
    %v1386 = vcombine.low %v1156, %v1157
    %v1388 = vunpack.c.l.s4 1983009808
    %v1389 = vunpack.c.0.s8 %v1388
    %v1390 = vlaneseq
    %v1391 = vshrl.u32 %v1390, 7
    %v1392 = vsub.s32 %v1389, %v1391
    %v1393 = vrot.slane %v1386, %v1392
    %v1394 = vcombine.low %v1369, %v1377
    %v1395 = vcombine.high %v1369, %v1377
    %v1397 = vunpack.c.l.s4 1934713408
    %v1398 = vunpack.c.0.s8 %v1397
    %v1399 = vlaneseq
    %v1400 = vshrl.u32 %v1399, 7
    %v1401 = vsub.s32 %v1398, %v1400
    %v1402 = vrot.slane %v1394, %v1401
    %v1404 = vunpack.c.l.s4 1934713408
    %v1405 = vunpack.c.0.s8 %v1404
    %v1406 = vlaneseq
    %v1407 = vshrl.u32 %v1406, 7
    %v1408 = vsub.s32 %v1405, %v1407
    %v1409 = vrot.slane %v1395, %v1408
    %v1410 = vcombine.low %v1385, %v1393
    %v1411 = vcombine.high %v1385, %v1393
    %v1413 = vunpack.c.l.s4 1934713408
    %v1414 = vunpack.c.0.s8 %v1413
    %v1415 = vlaneseq
    %v1416 = vshrl.u32 %v1415, 7
    %v1417 = vsub.s32 %v1414, %v1416
    %v1418 = vrot.slane %v1410, %v1417
    %v1420 = vunpack.c.l.s4 1934713408
    %v1421 = vunpack.c.0.s8 %v1420
    %v1422 = vlaneseq
    %v1423 = vshrl.u32 %v1422, 7
    %v1424 = vsub.s32 %v1421, %v1423
    %v1425 = vrot.slane %v1411, %v1424
    %v1426 = vcombine.low %v1402, %v1418
    %v1427 = vcombine.high %v1402, %v1418
    %v1428 = vcombine.low %v1409, %v1425
    %v1429 = vcombine.high %v1409, %v1425
    %1434 = vrot.lane.b32.xlu0 %v234, 112
    %v1435 = vpop.permute.xlu0 %1434
    %1436 = vrot.lane.b32.xlu0 %v240, 112
    %v1437 = vpop.permute.xlu0 %1436
    %1438 = vrot.lane.b32.xlu0 %v246, 112
    %v1439 = vpop.permute.xlu0 %1438
    %1440 = vrot.lane.b32.xlu0 %v252, 112
    %v1441 = vpop.permute.xlu0 %1440
    %1446 = vrot.lane.b32.xlu0 %v234, 96
    %v1447 = vpop.permute.xlu0 %1446
    %1448 = vrot.lane.b32.xlu0 %v240, 96
    %v1449 = vpop.permute.xlu0 %1448
    %1450 = vrot.lane.b32.xlu0 %v246, 96
    %v1451 = vpop.permute.xlu0 %1450
    %1452 = vrot.lane.b32.xlu0 %v252, 96
    %v1453 = vpop.permute.xlu0 %1452
    %1458 = vrot.lane.b32.xlu0 %v234, 80
    %v1459 = vpop.permute.xlu0 %1458
    %1460 = vrot.lane.b32.xlu0 %v240, 80
    %v1461 = vpop.permute.xlu0 %1460
    %1462 = vrot.lane.b32.xlu0 %v246, 80
    %v1463 = vpop.permute.xlu0 %1462
    %1464 = vrot.lane.b32.xlu0 %v252, 80
    %v1465 = vpop.permute.xlu0 %1464
    %v1470 = vcombine.low %v234, %v1447
    %v1471 = vcombine.high %v234, %v1447
    %v1473 = vunpack.c.l.s4 1983009808
    %v1474 = vunpack.c.0.s8 %v1473
    %v1475 = vlaneseq
    %v1476 = vshrl.u32 %v1475, 7
    %v1477 = vsub.s32 %v1474, %v1476
    %v1478 = vrot.slane %v1470, %v1477
    %v1480 = vunpack.c.l.s4 1983009808
    %v1481 = vunpack.c.0.s8 %v1480
    %v1482 = vlaneseq
    %v1483 = vshrl.u32 %v1482, 7
    %v1484 = vsub.s32 %v1481, %v1483
    %v1485 = vrot.slane %v1471, %v1484
    %v1486 = vcombine.low %v1435, %v1459
    %v1487 = vcombine.high %v1435, %v1459
    %v1489 = vunpack.c.l.s4 1983009808
    %v1490 = vunpack.c.0.s8 %v1489
    %v1491 = vlaneseq
    %v1492 = vshrl.u32 %v1491, 7
    %v1493 = vsub.s32 %v1490, %v1492
    %v1494 = vrot.slane %v1486, %v1493
    %v1496 = vunpack.c.l.s4 1983009808
    %v1497 = vunpack.c.0.s8 %v1496
    %v1498 = vlaneseq
    %v1499 = vshrl.u32 %v1498, 7
    %v1500 = vsub.s32 %v1497, %v1499
    %v1501 = vrot.slane %v1487, %v1500
    %v1502 = vcombine.low %v1478, %v1494
    %v1503 = vcombine.high %v1478, %v1494
    %v1505 = vunpack.c.l.s4 1934713408
    %v1506 = vunpack.c.0.s8 %v1505
    %v1507 = vlaneseq
    %v1508 = vshrl.u32 %v1507, 7
    %v1509 = vsub.s32 %v1506, %v1508
    %v1510 = vrot.slane %v1502, %v1509
    %v1512 = vunpack.c.l.s4 1934713408
    %v1513 = vunpack.c.0.s8 %v1512
    %v1514 = vlaneseq
    %v1515 = vshrl.u32 %v1514, 7
    %v1516 = vsub.s32 %v1513, %v1515
    %v1517 = vrot.slane %v1503, %v1516
    %v1518 = vcombine.low %v1485, %v1501
    %v1519 = vcombine.high %v1485, %v1501
    %v1521 = vunpack.c.l.s4 1934713408
    %v1522 = vunpack.c.0.s8 %v1521
    %v1523 = vlaneseq
    %v1524 = vshrl.u32 %v1523, 7
    %v1525 = vsub.s32 %v1522, %v1524
    %v1526 = vrot.slane %v1518, %v1525
    %v1528 = vunpack.c.l.s4 1934713408
    %v1529 = vunpack.c.0.s8 %v1528
    %v1530 = vlaneseq
    %v1531 = vshrl.u32 %v1530, 7
    %v1532 = vsub.s32 %v1529, %v1531
    %v1533 = vrot.slane %v1519, %v1532
    %v1534 = vcombine.high %v1510, 0.0
    %v1535 = vcombine.high %v1517, 0.0
    %v1536 = vcombine.high %v1526, 0.0
    %v1537 = vcombine.high %v1533, 0.0
    %v1538 = vcombine.low %v240, %v1449
    %v1539 = vcombine.high %v240, %v1449
    %v1541 = vunpack.c.l.s4 1983009808
    %v1542 = vunpack.c.0.s8 %v1541
    %v1543 = vlaneseq
    %v1544 = vshrl.u32 %v1543, 7
    %v1545 = vsub.s32 %v1542, %v1544
    %v1546 = vrot.slane %v1538, %v1545
    %v1548 = vunpack.c.l.s4 1983009808
    %v1549 = vunpack.c.0.s8 %v1548
    %v1550 = vlaneseq
    %v1551 = vshrl.u32 %v1550, 7
    %v1552 = vsub.s32 %v1549, %v1551
    %v1553 = vrot.slane %v1539, %v1552
    %v1554 = vcombine.low %v1437, %v1461
    %v1555 = vcombine.high %v1437, %v1461
    %v1557 = vunpack.c.l.s4 1983009808
    %v1558 = vunpack.c.0.s8 %v1557
    %v1559 = vlaneseq
    %v1560 = vshrl.u32 %v1559, 7
    %v1561 = vsub.s32 %v1558, %v1560
    %v1562 = vrot.slane %v1554, %v1561
    %v1564 = vunpack.c.l.s4 1983009808
    %v1565 = vunpack.c.0.s8 %v1564
    %v1566 = vlaneseq
    %v1567 = vshrl.u32 %v1566, 7
    %v1568 = vsub.s32 %v1565, %v1567
    %v1569 = vrot.slane %v1555, %v1568
    %v1570 = vcombine.low %v1546, %v1562
    %v1571 = vcombine.high %v1546, %v1562
    %v1573 = vunpack.c.l.s4 1934713408
    %v1574 = vunpack.c.0.s8 %v1573
    %v1575 = vlaneseq
    %v1576 = vshrl.u32 %v1575, 7
    %v1577 = vsub.s32 %v1574, %v1576
    %v1578 = vrot.slane %v1570, %v1577
    %v1580 = vunpack.c.l.s4 1934713408
    %v1581 = vunpack.c.0.s8 %v1580
    %v1582 = vlaneseq
    %v1583 = vshrl.u32 %v1582, 7
    %v1584 = vsub.s32 %v1581, %v1583
    %v1585 = vrot.slane %v1571, %v1584
    %v1586 = vcombine.low %v1553, %v1569
    %v1587 = vcombine.high %v1553, %v1569
    %v1589 = vunpack.c.l.s4 1934713408
    %v1590 = vunpack.c.0.s8 %v1589
    %v1591 = vlaneseq
    %v1592 = vshrl.u32 %v1591, 7
    %v1593 = vsub.s32 %v1590, %v1592
    %v1594 = vrot.slane %v1586, %v1593
    %v1596 = vunpack.c.l.s4 1934713408
    %v1597 = vunpack.c.0.s8 %v1596
    %v1598 = vlaneseq
    %v1599 = vshrl.u32 %v1598, 7
    %v1600 = vsub.s32 %v1597, %v1599
    %v1601 = vrot.slane %v1587, %v1600
    %v1602 = vcombine.high %v1578, 0.0
    %v1603 = vcombine.high %v1585, 0.0
    %v1604 = vcombine.high %v1594, 0.0
    %v1605 = vcombine.high %v1601, 0.0
    %v1606 = vcombine.low %v246, %v1451
    %v1607 = vcombine.high %v246, %v1451
    %v1609 = vunpack.c.l.s4 1983009808
    %v1610 = vunpack.c.0.s8 %v1609
    %v1611 = vlaneseq
    %v1612 = vshrl.u32 %v1611, 7
    %v1613 = vsub.s32 %v1610, %v1612
    %v1614 = vrot.slane %v1606, %v1613
    %v1616 = vunpack.c.l.s4 1983009808
    %v1617 = vunpack.c.0.s8 %v1616
    %v1618 = vlaneseq
    %v1619 = vshrl.u32 %v1618, 7
    %v1620 = vsub.s32 %v1617, %v1619
    %v1621 = vrot.slane %v1607, %v1620
    %v1622 = vcombine.low %v1439, %v1463
    %v1623 = vcombine.high %v1439, %v1463
    %v1625 = vunpack.c.l.s4 1983009808
    %v1626 = vunpack.c.0.s8 %v1625
    %v1627 = vlaneseq
    %v1628 = vshrl.u32 %v1627, 7
    %v1629 = vsub.s32 %v1626, %v1628
    %v1630 = vrot.slane %v1622, %v1629
    %v1632 = vunpack.c.l.s4 1983009808
    %v1633 = vunpack.c.0.s8 %v1632
    %v1634 = vlaneseq
    %v1635 = vshrl.u32 %v1634, 7
    %v1636 = vsub.s32 %v1633, %v1635
    %v1637 = vrot.slane %v1623, %v1636
    %v1638 = vcombine.low %v1614, %v1630
    %v1639 = vcombine.high %v1614, %v1630
    %v1641 = vunpack.c.l.s4 1934713408
    %v1642 = vunpack.c.0.s8 %v1641
    %v1643 = vlaneseq
    %v1644 = vshrl.u32 %v1643, 7
    %v1645 = vsub.s32 %v1642, %v1644
    %v1646 = vrot.slane %v1638, %v1645
    %v1648 = vunpack.c.l.s4 1934713408
    %v1649 = vunpack.c.0.s8 %v1648
    %v1650 = vlaneseq
    %v1651 = vshrl.u32 %v1650, 7
    %v1652 = vsub.s32 %v1649, %v1651
    %v1653 = vrot.slane %v1639, %v1652
    %v1654 = vcombine.low %v1621, %v1637
    %v1655 = vcombine.high %v1621, %v1637
    %v1657 = vunpack.c.l.s4 1934713408
    %v1658 = vunpack.c.0.s8 %v1657
    %v1659 = vlaneseq
    %v1660 = vshrl.u32 %v1659, 7
    %v1661 = vsub.s32 %v1658, %v1660
    %v1662 = vrot.slane %v1654, %v1661
    %v1664 = vunpack.c.l.s4 1934713408
    %v1665 = vunpack.c.0.s8 %v1664
    %v1666 = vlaneseq
    %v1667 = vshrl.u32 %v1666, 7
    %v1668 = vsub.s32 %v1665, %v1667
    %v1669 = vrot.slane %v1655, %v1668
    %v1670 = vcombine.high %v1646, 0.0
    %v1671 = vcombine.high %v1653, 0.0
    %v1672 = vcombine.high %v1662, 0.0
    %v1673 = vcombine.high %v1669, 0.0
    %v1674 = vcombine.low %v252, %v1453
    %v1675 = vcombine.high %v252, %v1453
    %v1677 = vunpack.c.l.s4 1983009808
    %v1678 = vunpack.c.0.s8 %v1677
    %v1679 = vlaneseq
    %v1680 = vshrl.u32 %v1679, 7
    %v1681 = vsub.s32 %v1678, %v1680
    %v1682 = vrot.slane %v1674, %v1681
    %v1684 = vunpack.c.l.s4 1983009808
    %v1685 = vunpack.c.0.s8 %v1684
    %v1686 = vlaneseq
    %v1687 = vshrl.u32 %v1686, 7
    %v1688 = vsub.s32 %v1685, %v1687
    %v1689 = vrot.slane %v1675, %v1688
    %v1690 = vcombine.low %v1441, %v1465
    %v1691 = vcombine.high %v1441, %v1465
    %v1693 = vunpack.c.l.s4 1983009808
    %v1694 = vunpack.c.0.s8 %v1693
    %v1695 = vlaneseq
    %v1696 = vshrl.u32 %v1695, 7
    %v1697 = vsub.s32 %v1694, %v1696
    %v1698 = vrot.slane %v1690, %v1697
    %v1700 = vunpack.c.l.s4 1983009808
    %v1701 = vunpack.c.0.s8 %v1700
    %v1702 = vlaneseq
    %v1703 = vshrl.u32 %v1702, 7
    %v1704 = vsub.s32 %v1701, %v1703
    %v1705 = vrot.slane %v1691, %v1704
    %v1706 = vcombine.low %v1682, %v1698
    %v1707 = vcombine.high %v1682, %v1698
    %v1709 = vunpack.c.l.s4 1934713408
    %v1710 = vunpack.c.0.s8 %v1709
    %v1711 = vlaneseq
    %v1712 = vshrl.u32 %v1711, 7
    %v1713 = vsub.s32 %v1710, %v1712
    %v1714 = vrot.slane %v1706, %v1713
    %v1716 = vunpack.c.l.s4 1934713408
    %v1717 = vunpack.c.0.s8 %v1716
    %v1718 = vlaneseq
    %v1719 = vshrl.u32 %v1718, 7
    %v1720 = vsub.s32 %v1717, %v1719
    %v1721 = vrot.slane %v1707, %v1720
    %v1722 = vcombine.low %v1689, %v1705
    %v1723 = vcombine.high %v1689, %v1705
    %v1725 = vunpack.c.l.s4 1934713408
    %v1726 = vunpack.c.0.s8 %v1725
    %v1727 = vlaneseq
    %v1728 = vshrl.u32 %v1727, 7
    %v1729 = vsub.s32 %v1726, %v1728
    %v1730 = vrot.slane %v1722, %v1729
    %v1732 = vunpack.c.l.s4 1934713408
    %v1733 = vunpack.c.0.s8 %v1732
    %v1734 = vlaneseq
    %v1735 = vshrl.u32 %v1734, 7
    %v1736 = vsub.s32 %v1733, %v1735
    %v1737 = vrot.slane %v1723, %v1736
    %v1738 = vcombine.high %v1714, 0.0
    %v1739 = vcombine.high %v1721, 0.0
    %v1740 = vcombine.high %v1730, 0.0
    %v1741 = vcombine.high %v1737, 0.0
    %v1742 = vcombine.low %v1510, %v1517
    %v1744 = vunpack.c.l.s4 1983009808
    %v1745 = vunpack.c.0.s8 %v1744
    %v1746 = vlaneseq
    %v1747 = vshrl.u32 %v1746, 7
    %v1748 = vsub.s32 %v1745, %v1747
    %v1749 = vrot.slane %v1742, %v1748
    %v1750 = vcombine.low %v1534, %v1535
    %v1752 = vunpack.c.l.s4 1983009808
    %v1753 = vunpack.c.0.s8 %v1752
    %v1754 = vlaneseq
    %v1755 = vshrl.u32 %v1754, 7
    %v1756 = vsub.s32 %v1753, %v1755
    %v1757 = vrot.slane %v1750, %v1756
    %v1758 = vcombine.low %v1526, %v1533
    %v1760 = vunpack.c.l.s4 1983009808
    %v1761 = vunpack.c.0.s8 %v1760
    %v1762 = vlaneseq
    %v1763 = vshrl.u32 %v1762, 7
    %v1764 = vsub.s32 %v1761, %v1763
    %v1765 = vrot.slane %v1758, %v1764
    %v1766 = vcombine.low %v1536, %v1537
    %v1768 = vunpack.c.l.s4 1983009808
    %v1769 = vunpack.c.0.s8 %v1768
    %v1770 = vlaneseq
    %v1771 = vshrl.u32 %v1770, 7
    %v1772 = vsub.s32 %v1769, %v1771
    %v1773 = vrot.slane %v1766, %v1772
    %v1774 = vcombine.low %v1749, %v1757
    %v1775 = vcombine.high %v1749, %v1757
    %v1777 = vunpack.c.l.s4 1934713408
    %v1778 = vunpack.c.0.s8 %v1777
    %v1779 = vlaneseq
    %v1780 = vshrl.u32 %v1779, 7
    %v1781 = vsub.s32 %v1778, %v1780
    %v1782 = vrot.slane %v1774, %v1781
    %v1784 = vunpack.c.l.s4 1934713408
    %v1785 = vunpack.c.0.s8 %v1784
    %v1786 = vlaneseq
    %v1787 = vshrl.u32 %v1786, 7
    %v1788 = vsub.s32 %v1785, %v1787
    %v1789 = vrot.slane %v1775, %v1788
    %v1790 = vcombine.low %v1765, %v1773
    %v1791 = vcombine.high %v1765, %v1773
    %v1793 = vunpack.c.l.s4 1934713408
    %v1794 = vunpack.c.0.s8 %v1793
    %v1795 = vlaneseq
    %v1796 = vshrl.u32 %v1795, 7
    %v1797 = vsub.s32 %v1794, %v1796
    %v1798 = vrot.slane %v1790, %v1797
    %v1800 = vunpack.c.l.s4 1934713408
    %v1801 = vunpack.c.0.s8 %v1800
    %v1802 = vlaneseq
    %v1803 = vshrl.u32 %v1802, 7
    %v1804 = vsub.s32 %v1801, %v1803
    %v1805 = vrot.slane %v1791, %v1804
    %v1806 = vcombine.low %v1782, %v1798
    %v1807 = vcombine.high %v1782, %v1798
    %v1808 = vcombine.low %v1789, %v1805
    %v1809 = vcombine.high %v1789, %v1805
    %v1810 = vcombine.low %v1578, %v1585
    %v1812 = vunpack.c.l.s4 1983009808
    %v1813 = vunpack.c.0.s8 %v1812
    %v1814 = vlaneseq
    %v1815 = vshrl.u32 %v1814, 7
    %v1816 = vsub.s32 %v1813, %v1815
    %v1817 = vrot.slane %v1810, %v1816
    %v1818 = vcombine.low %v1602, %v1603
    %v1820 = vunpack.c.l.s4 1983009808
    %v1821 = vunpack.c.0.s8 %v1820
    %v1822 = vlaneseq
    %v1823 = vshrl.u32 %v1822, 7
    %v1824 = vsub.s32 %v1821, %v1823
    %v1825 = vrot.slane %v1818, %v1824
    %v1826 = vcombine.low %v1594, %v1601
    %v1828 = vunpack.c.l.s4 1983009808
    %v1829 = vunpack.c.0.s8 %v1828
    %v1830 = vlaneseq
    %v1831 = vshrl.u32 %v1830, 7
    %v1832 = vsub.s32 %v1829, %v1831
    %v1833 = vrot.slane %v1826, %v1832
    %v1834 = vcombine.low %v1604, %v1605
    %v1836 = vunpack.c.l.s4 1983009808
    %v1837 = vunpack.c.0.s8 %v1836
    %v1838 = vlaneseq
    %v1839 = vshrl.u32 %v1838, 7
    %v1840 = vsub.s32 %v1837, %v1839
    %v1841 = vrot.slane %v1834, %v1840
    %v1842 = vcombine.low %v1817, %v1825
    %v1843 = vcombine.high %v1817, %v1825
    %v1845 = vunpack.c.l.s4 1934713408
    %v1846 = vunpack.c.0.s8 %v1845
    %v1847 = vlaneseq
    %v1848 = vshrl.u32 %v1847, 7
    %v1849 = vsub.s32 %v1846, %v1848
    %v1850 = vrot.slane %v1842, %v1849
    %v1852 = vunpack.c.l.s4 1934713408
    %v1853 = vunpack.c.0.s8 %v1852
    %v1854 = vlaneseq
    %v1855 = vshrl.u32 %v1854, 7
    %v1856 = vsub.s32 %v1853, %v1855
    %v1857 = vrot.slane %v1843, %v1856
    %v1858 = vcombine.low %v1833, %v1841
    %v1859 = vcombine.high %v1833, %v1841
    %v1861 = vunpack.c.l.s4 1934713408
    %v1862 = vunpack.c.0.s8 %v1861
    %v1863 = vlaneseq
    %v1864 = vshrl.u32 %v1863, 7
    %v1865 = vsub.s32 %v1862, %v1864
    %v1866 = vrot.slane %v1858, %v1865
    %v1868 = vunpack.c.l.s4 1934713408
    %v1869 = vunpack.c.0.s8 %v1868
    %v1870 = vlaneseq
    %v1871 = vshrl.u32 %v1870, 7
    %v1872 = vsub.s32 %v1869, %v1871
    %v1873 = vrot.slane %v1859, %v1872
    %v1874 = vcombine.low %v1850, %v1866
    %v1875 = vcombine.high %v1850, %v1866
    %v1876 = vcombine.low %v1857, %v1873
    %v1877 = vcombine.high %v1857, %v1873
    %v1878 = vcombine.low %v1646, %v1653
    %v1880 = vunpack.c.l.s4 1983009808
    %v1881 = vunpack.c.0.s8 %v1880
    %v1882 = vlaneseq
    %v1883 = vshrl.u32 %v1882, 7
    %v1884 = vsub.s32 %v1881, %v1883
    %v1885 = vrot.slane %v1878, %v1884
    %v1886 = vcombine.low %v1670, %v1671
    %v1888 = vunpack.c.l.s4 1983009808
    %v1889 = vunpack.c.0.s8 %v1888
    %v1890 = vlaneseq
    %v1891 = vshrl.u32 %v1890, 7
    %v1892 = vsub.s32 %v1889, %v1891
    %v1893 = vrot.slane %v1886, %v1892
    %v1894 = vcombine.low %v1662, %v1669
    %v1896 = vunpack.c.l.s4 1983009808
    %v1897 = vunpack.c.0.s8 %v1896
    %v1898 = vlaneseq
    %v1899 = vshrl.u32 %v1898, 7
    %v1900 = vsub.s32 %v1897, %v1899
    %v1901 = vrot.slane %v1894, %v1900
    %v1902 = vcombine.low %v1672, %v1673
    %v1904 = vunpack.c.l.s4 1983009808
    %v1905 = vunpack.c.0.s8 %v1904
    %v1906 = vlaneseq
    %v1907 = vshrl.u32 %v1906, 7
    %v1908 = vsub.s32 %v1905, %v1907
    %v1909 = vrot.slane %v1902, %v1908
    %v1910 = vcombine.low %v1885, %v1893
    %v1911 = vcombine.high %v1885, %v1893
    %v1913 = vunpack.c.l.s4 1934713408
    %v1914 = vunpack.c.0.s8 %v1913
    %v1915 = vlaneseq
    %v1916 = vshrl.u32 %v1915, 7
    %v1917 = vsub.s32 %v1914, %v1916
    %v1918 = vrot.slane %v1910, %v1917
    %v1920 = vunpack.c.l.s4 1934713408
    %v1921 = vunpack.c.0.s8 %v1920
    %v1922 = vlaneseq
    %v1923 = vshrl.u32 %v1922, 7
    %v1924 = vsub.s32 %v1921, %v1923
    %v1925 = vrot.slane %v1911, %v1924
    %v1926 = vcombine.low %v1901, %v1909
    %v1927 = vcombine.high %v1901, %v1909
    %v1929 = vunpack.c.l.s4 1934713408
    %v1930 = vunpack.c.0.s8 %v1929
    %v1931 = vlaneseq
    %v1932 = vshrl.u32 %v1931, 7
    %v1933 = vsub.s32 %v1930, %v1932
    %v1934 = vrot.slane %v1926, %v1933
    %v1936 = vunpack.c.l.s4 1934713408
    %v1937 = vunpack.c.0.s8 %v1936
    %v1938 = vlaneseq
    %v1939 = vshrl.u32 %v1938, 7
    %v1940 = vsub.s32 %v1937, %v1939
    %v1941 = vrot.slane %v1927, %v1940
    %v1942 = vcombine.low %v1918, %v1934
    %v1943 = vcombine.high %v1918, %v1934
    %v1944 = vcombine.low %v1925, %v1941
    %v1945 = vcombine.high %v1925, %v1941
    %v1946 = vcombine.low %v1714, %v1721
    %v1948 = vunpack.c.l.s4 1983009808
    %v1949 = vunpack.c.0.s8 %v1948
    %v1950 = vlaneseq
    %v1951 = vshrl.u32 %v1950, 7
    %v1952 = vsub.s32 %v1949, %v1951
    %v1953 = vrot.slane %v1946, %v1952
    %v1954 = vcombine.low %v1738, %v1739
    %v1956 = vunpack.c.l.s4 1983009808
    %v1957 = vunpack.c.0.s8 %v1956
    %v1958 = vlaneseq
    %v1959 = vshrl.u32 %v1958, 7
    %v1960 = vsub.s32 %v1957, %v1959
    %v1961 = vrot.slane %v1954, %v1960
    %v1962 = vcombine.low %v1730, %v1737
    %v1964 = vunpack.c.l.s4 1983009808
    %v1965 = vunpack.c.0.s8 %v1964
    %v1966 = vlaneseq
    %v1967 = vshrl.u32 %v1966, 7
    %v1968 = vsub.s32 %v1965, %v1967
    %v1969 = vrot.slane %v1962, %v1968
    %v1970 = vcombine.low %v1740, %v1741
    %v1972 = vunpack.c.l.s4 1983009808
    %v1973 = vunpack.c.0.s8 %v1972
    %v1974 = vlaneseq
    %v1975 = vshrl.u32 %v1974, 7
    %v1976 = vsub.s32 %v1973, %v1975
    %v1977 = vrot.slane %v1970, %v1976
    %v1978 = vcombine.low %v1953, %v1961
    %v1979 = vcombine.high %v1953, %v1961
    %v1981 = vunpack.c.l.s4 1934713408
    %v1982 = vunpack.c.0.s8 %v1981
    %v1983 = vlaneseq
    %v1984 = vshrl.u32 %v1983, 7
    %v1985 = vsub.s32 %v1982, %v1984
    %v1986 = vrot.slane %v1978, %v1985
    %v1988 = vunpack.c.l.s4 1934713408
    %v1989 = vunpack.c.0.s8 %v1988
    %v1990 = vlaneseq
    %v1991 = vshrl.u32 %v1990, 7
    %v1992 = vsub.s32 %v1989, %v1991
    %v1993 = vrot.slane %v1979, %v1992
    %v1994 = vcombine.low %v1969, %v1977
    %v1995 = vcombine.high %v1969, %v1977
    %v1997 = vunpack.c.l.s4 1934713408
    %v1998 = vunpack.c.0.s8 %v1997
    %v1999 = vlaneseq
    %v2000 = vshrl.u32 %v1999, 7
    %v2001 = vsub.s32 %v1998, %v2000
    %v2002 = vrot.slane %v1994, %v2001
    %v2004 = vunpack.c.l.s4 1934713408
    %v2005 = vunpack.c.0.s8 %v2004
    %v2006 = vlaneseq
    %v2007 = vshrl.u32 %v2006, 7
    %v2008 = vsub.s32 %v2005, %v2007
    %v2009 = vrot.slane %v1995, %v2008
    %v2010 = vcombine.low %v1986, %v2002
    %v2011 = vcombine.high %v1986, %v2002
    %v2012 = vcombine.low %v1993, %v2009
    %v2013 = vcombine.high %v1993, %v2009
    %v2014 = vlaneseq
    %v2015 = vshrl.u32 %v2014, 7
    %v2016 = vadd.s32 %v2015, 8
    %v2017 = vlaneseq
    %v2018 = vand.u32 %v2017, 127
    %vm2019 = vcmp.le.s32.totalorder %v2018, %v2015
    %vm2020 = vcmp.le.s32.totalorder %v2018, %v2016
    %vm2021 = vcmask 130048
    %v2023 = vsel %vm2021, %v630, 0
    %v2026 = vsel %vm2021, %v698, 0
    %v2029 = vsel %vm2021, %v1222, 0
    %v2032 = vsel %vm2021, %v1290, 0
    %2034 = vmatprep.subr.mxu0 0.0
    %2035 = vmatpush1.xpose.msra.mxu0 %v2029
    %2036 = vmatprep.subr.mxu0 0.0
    %2037 = vmatpush1.xpose.msra.mxu0 %v2032
    %2038 = vmatprep.subr.mxu0 0.0
    %2039 = vmatpush1.xpose.msra.mxu0 0.0
    %2040 = vmatprep.subr.mxu0 0.0
    %2041 = vmatpush1.xpose.msra.mxu0 0.0
    %2042 = vmatprep.subr.mxu0 0.0
    %2043 = vmatpush1.xpose.msra.mxu0 0.0
    %2044 = vmatprep.subr.mxu0 0.0
    %2045 = vmatpush1.xpose.msra.mxu0 0.0
    %2046 = vmatprep.subr.mxu0 0.0
    %2047 = vmatpush1.xpose.msra.mxu0 0.0
    %2048 = vmatprep.subr.mxu0 0.0
    %2049 = vmatpush1.xpose.msra.mxu0 0.0
    %2050 = vmatprep.subr.mxu0 0.0
    %2051 = vmatpush1.xpose.msra.mxu0 0.0
    %2052 = vmatprep.subr.mxu0 0.0
    %2053 = vmatpush1.xpose.msra.mxu0 0.0
    %2054 = vmatprep.subr.mxu0 0.0
    %2055 = vmatpush1.xpose.msra.mxu0 0.0
    %2056 = vmatprep.subr.mxu0 0.0
    %2057 = vmatpush1.xpose.msra.mxu0 0.0
    %2058 = vmatprep.subr.mxu0 0.0
    %2059 = vmatpush1.xpose.msra.mxu0 0.0
    %2060 = vmatprep.subr.mxu0 0.0
    %2061 = vmatpush1.xpose.msra.mxu0 0.0
    %2062 = vmatprep.subr.mxu0 0.0
    %2063 = vmatpush1.xpose.msra.mxu0 0.0
    %2064 = vmatprep.subr.mxu0 0.0
    %2065 = vmatpush1.xpose.msra.mxu0 0.0
    %2066 = vmatprep.subr.mxu0 0.0
    %2067 = vmatpush1.xpose.msra.mxu0 0.0
    %2068 = vmatprep.subr.mxu0 0.0
    %2069 = vmatpush1.xpose.msra.mxu0 0.0
    %2070 = vmatprep.subr.mxu0 0.0
    %2071 = vmatpush1.xpose.msra.mxu0 0.0
    %2072 = vmatprep.subr.mxu0 0.0
    %2073 = vmatpush1.xpose.msra.mxu0 0.0
    %2074 = vmatprep.subr.mxu0 0.0
    %2075 = vmatpush1.xpose.msra.mxu0 0.0
    %2076 = vmatprep.subr.mxu0 0.0
    %2077 = vmatpush1.xpose.msra.mxu0 0.0
    %2078 = vmatprep.subr.mxu0 0.0
    %2079 = vmatpush1.xpose.msra.mxu0 0.0
    %2080 = vmatprep.subr.mxu0 0.0
    %2081 = vmatpush1.xpose.msra.mxu0 0.0
    %2082 = vmatprep.subr.mxu0 0.0
    %2083 = vmatpush1.xpose.msra.mxu0 0.0
    %2084 = vmatprep.subr.mxu0 0.0
    %2085 = vmatpush1.xpose.msra.mxu0 0.0
    %2086 = vmatprep.subr.mxu0 0.0
    %2087 = vmatpush1.xpose.msra.mxu0 0.0
    %2088 = vmatprep.subr.mxu0 0.0
    %2089 = vmatpush1.xpose.msra.mxu0 0.0
    %2090 = vmatprep.subr.mxu0 0.0
    %2091 = vmatpush1.xpose.msra.mxu0 0.0
    %2092 = vmatprep.subr.mxu0 0.0
    %2093 = vmatpush1.xpose.msra.mxu0 0.0
    %2094 = vmatprep.subr.mxu0 0.0
    %2095 = vmatpush1.xpose.msra.mxu0 0.0
    %2096 = vmatprep.subr.mxu0 0.0
    %2097 = vmatpush1.xpose.msra.mxu0 0.0
    %2098 = vmatprep.mubr.f32.mxu0 0.0
    %2099 = vmatmul.mubr.f32.gmra.mrb[0].mxu0 %v2023
    %v2100 = vpop.f32.mrb[0].mxu0
    %v2101 = vadd.f32 0.0, %v2100
    %v2102 = vpop.f32.mrb[0].mxu0
    %2103 = vmatprep.mubr.f32.mxu0 0.0
    %2104 = vmatmul.mubr.f32.gmra.mrb[0].mxu0 %v2026
    %v2105 = vpop.f32.mrb[0].mxu0
    %v2106 = vadd.f32 0.0, %v2105
    %v2107 = vpop.f32.mrb[0].mxu0
    %2108 = vdwg.mxu0
    %v2110 = vsel %vm2021, %v631, 0
    %v2113 = vsel %vm2021, %v699, 0
    %v2116 = vsel %vm2021, %v1223, 0
    %v2119 = vsel %vm2021, %v1291, 0
    %2121 = vmatprep.subr.mxu0 0.0
    %2122 = vmatpush1.xpose.msra.mxu0 %v2116
    %2123 = vmatprep.subr.mxu0 0.0
    %2124 = vmatpush1.xpose.msra.mxu0 %v2119
    %2125 = vmatprep.subr.mxu0 0.0
    %2126 = vmatpush1.xpose.msra.mxu0 0.0
    %2127 = vmatprep.subr.mxu0 0.0
    %2128 = vmatpush1.xpose.msra.mxu0 0.0
    %2129 = vmatprep.subr.mxu0 0.0
    %2130 = vmatpush1.xpose.msra.mxu0 0.0
    %2131 = vmatprep.subr.mxu0 0.0
    %2132 = vmatpush1.xpose.msra.mxu0 0.0
    %2133 = vmatprep.subr.mxu0 0.0
    %2134 = vmatpush1.xpose.msra.mxu0 0.0
    %2135 = vmatprep.subr.mxu0 0.0
    %2136 = vmatpush1.xpose.msra.mxu0 0.0
    %2137 = vmatprep.subr.mxu0 0.0
    %2138 = vmatpush1.xpose.msra.mxu0 0.0
    %2139 = vmatprep.subr.mxu0 0.0
    %2140 = vmatpush1.xpose.msra.mxu0 0.0
    %2141 = vmatprep.subr.mxu0 0.0
    %2142 = vmatpush1.xpose.msra.mxu0 0.0
    %2143 = vmatprep.subr.mxu0 0.0
    %2144 = vmatpush1.xpose.msra.mxu0 0.0
    %2145 = vmatprep.subr.mxu0 0.0
    %2146 = vmatpush1.xpose.msra.mxu0 0.0
    %2147 = vmatprep.subr.mxu0 0.0
    %2148 = vmatpush1.xpose.msra.mxu0 0.0
    %2149 = vmatprep.subr.mxu0 0.0
    %2150 = vmatpush1.xpose.msra.mxu0 0.0
    %2151 = vmatprep.subr.mxu0 0.0
    %2152 = vmatpush1.xpose.msra.mxu0 0.0
    %2153 = vmatprep.subr.mxu0 0.0
    %2154 = vmatpush1.xpose.msra.mxu0 0.0
    %2155 = vmatprep.subr.mxu0 0.0
    %2156 = vmatpush1.xpose.msra.mxu0 0.0
    %2157 = vmatprep.subr.mxu0 0.0
    %2158 = vmatpush1.xpose.msra.mxu0 0.0
    %2159 = vmatprep.subr.mxu0 0.0
    %2160 = vmatpush1.xpose.msra.mxu0 0.0
    %2161 = vmatprep.subr.mxu0 0.0
    %2162 = vmatpush1.xpose.msra.mxu0 0.0
    %2163 = vmatprep.subr.mxu0 0.0
    %2164 = vmatpush1.xpose.msra.mxu0 0.0
    %2165 = vmatprep.subr.mxu0 0.0
    %2166 = vmatpush1.xpose.msra.mxu0 0.0
    %2167 = vmatprep.subr.mxu0 0.0
    %2168 = vmatpush1.xpose.msra.mxu0 0.0
    %2169 = vmatprep.subr.mxu0 0.0
    %2170 = vmatpush1.xpose.msra.mxu0 0.0
    %2171 = vmatprep.subr.mxu0 0.0
    %2172 = vmatpush1.xpose.msra.mxu0 0.0
    %2173 = vmatprep.subr.mxu0 0.0
    %2174 = vmatpush1.xpose.msra.mxu0 0.0
    %2175 = vmatprep.subr.mxu0 0.0
    %2176 = vmatpush1.xpose.msra.mxu0 0.0
    %2177 = vmatprep.subr.mxu0 0.0
    %2178 = vmatpush1.xpose.msra.mxu0 0.0
    %2179 = vmatprep.subr.mxu0 0.0
    %2180 = vmatpush1.xpose.msra.mxu0 0.0
    %2181 = vmatprep.subr.mxu0 0.0
    %2182 = vmatpush1.xpose.msra.mxu0 0.0
    %2183 = vmatprep.subr.mxu0 0.0
    %2184 = vmatpush1.xpose.msra.mxu0 0.0
    %2185 = vmatprep.mubr.f32.mxu0 0.0
    %2186 = vmatmul.mubr.f32.gmra.mrb[0].mxu0 %v2110
    %v2187 = vpop.f32.mrb[0].mxu0
    %v2188 = vadd.f32 0.0, %v2187
    %v2189 = vpop.f32.mrb[0].mxu0
    %2190 = vmatprep.mubr.f32.mxu0 0.0
    %2191 = vmatmul.mubr.f32.gmra.mrb[0].mxu0 %v2113
    %v2192 = vpop.f32.mrb[0].mxu0
    %v2193 = vadd.f32 0.0, %v2192
    %v2194 = vpop.f32.mrb[0].mxu0
    %2195 = vdwg.mxu0
    %v2197 = vsel %vm2021, %v632, 0
    %v2200 = vsel %vm2021, %v700, 0
    %v2203 = vsel %vm2021, %v1224, 0
    %v2206 = vsel %vm2021, %v1292, 0
    %2208 = vmatprep.subr.mxu0 0.0
    %2209 = vmatpush1.xpose.msra.mxu0 %v2203
    %2210 = vmatprep.subr.mxu0 0.0
    %2211 = vmatpush1.xpose.msra.mxu0 %v2206
    %2212 = vmatprep.subr.mxu0 0.0
    %2213 = vmatpush1.xpose.msra.mxu0 0.0
    %2214 = vmatprep.subr.mxu0 0.0
    %2215 = vmatpush1.xpose.msra.mxu0 0.0
    %2216 = vmatprep.subr.mxu0 0.0
    %2217 = vmatpush1.xpose.msra.mxu0 0.0
    %2218 = vmatprep.subr.mxu0 0.0
    %2219 = vmatpush1.xpose.msra.mxu0 0.0
    %2220 = vmatprep.subr.mxu0 0.0
    %2221 = vmatpush1.xpose.msra.mxu0 0.0
    %2222 = vmatprep.subr.mxu0 0.0
    %2223 = vmatpush1.xpose.msra.mxu0 0.0
    %2224 = vmatprep.subr.mxu0 0.0
    %2225 = vmatpush1.xpose.msra.mxu0 0.0
    %2226 = vmatprep.subr.mxu0 0.0
    %2227 = vmatpush1.xpose.msra.mxu0 0.0
    %2228 = vmatprep.subr.mxu0 0.0
    %2229 = vmatpush1.xpose.msra.mxu0 0.0
    %2230 = vmatprep.subr.mxu0 0.0
    %2231 = vmatpush1.xpose.msra.mxu0 0.0
    %2232 = vmatprep.subr.mxu0 0.0
    %2233 = vmatpush1.xpose.msra.mxu0 0.0
    %2234 = vmatprep.subr.mxu0 0.0
    %2235 = vmatpush1.xpose.msra.mxu0 0.0
    %2236 = vmatprep.subr.mxu0 0.0
    %2237 = vmatpush1.xpose.msra.mxu0 0.0
    %2238 = vmatprep.subr.mxu0 0.0
    %2239 = vmatpush1.xpose.msra.mxu0 0.0
    %2240 = vmatprep.subr.mxu0 0.0
    %2241 = vmatpush1.xpose.msra.mxu0 0.0
    %2242 = vmatprep.subr.mxu0 0.0
    %2243 = vmatpush1.xpose.msra.mxu0 0.0
    %2244 = vmatprep.subr.mxu0 0.0
    %2245 = vmatpush1.xpose.msra.mxu0 0.0
    %2246 = vmatprep.subr.mxu0 0.0
    %2247 = vmatpush1.xpose.msra.mxu0 0.0
    %2248 = vmatprep.subr.mxu0 0.0
    %2249 = vmatpush1.xpose.msra.mxu0 0.0
    %2250 = vmatprep.subr.mxu0 0.0
    %2251 = vmatpush1.xpose.msra.mxu0 0.0
    %2252 = vmatprep.subr.mxu0 0.0
    %2253 = vmatpush1.xpose.msra.mxu0 0.0
    %2254 = vmatprep.subr.mxu0 0.0
    %2255 = vmatpush1.xpose.msra.mxu0 0.0
    %2256 = vmatprep.subr.mxu0 0.0
    %2257 = vmatpush1.xpose.msra.mxu0 0.0
    %2258 = vmatprep.subr.mxu0 0.0
    %2259 = vmatpush1.xpose.msra.mxu0 0.0
    %2260 = vmatprep.subr.mxu0 0.0
    %2261 = vmatpush1.xpose.msra.mxu0 0.0
    %2262 = vmatprep.subr.mxu0 0.0
    %2263 = vmatpush1.xpose.msra.mxu0 0.0
    %2264 = vmatprep.subr.mxu0 0.0
    %2265 = vmatpush1.xpose.msra.mxu0 0.0
    %2266 = vmatprep.subr.mxu0 0.0
    %2267 = vmatpush1.xpose.msra.mxu0 0.0
    %2268 = vmatprep.subr.mxu0 0.0
    %2269 = vmatpush1.xpose.msra.mxu0 0.0
    %2270 = vmatprep.subr.mxu0 0.0
    %2271 = vmatpush1.xpose.msra.mxu0 0.0
    %2272 = vmatprep.mubr.f32.mxu0 0.0
    %2273 = vmatmul.mubr.f32.gmra.mrb[0].mxu0 %v2197
    %v2274 = vpop.f32.mrb[0].mxu0
    %v2275 = vadd.f32 0.0, %v2274
    %v2276 = vpop.f32.mrb[0].mxu0
    %2277 = vmatprep.mubr.f32.mxu0 0.0
    %2278 = vmatmul.mubr.f32.gmra.mrb[0].mxu0 %v2200
    %v2279 = vpop.f32.mrb[0].mxu0
    %v2280 = vadd.f32 0.0, %v2279
    %v2281 = vpop.f32.mrb[0].mxu0
    %2282 = vdwg.mxu0
    %v2284 = vsel %vm2021, %v633, 0
    %v2287 = vsel %vm2021, %v701, 0
    %v2290 = vsel %vm2021, %v1225, 0
    %v2293 = vsel %vm2021, %v1293, 0
    %2295 = vmatprep.subr.mxu0 0.0
    %2296 = vmatpush1.xpose.msra.mxu0 %v2290
    %2297 = vmatprep.subr.mxu0 0.0
    %2298 = vmatpush1.xpose.msra.mxu0 %v2293
    %2299 = vmatprep.subr.mxu0 0.0
    %2300 = vmatpush1.xpose.msra.mxu0 0.0
    %2301 = vmatprep.subr.mxu0 0.0
    %2302 = vmatpush1.xpose.msra.mxu0 0.0
    %2303 = vmatprep.subr.mxu0 0.0
    %2304 = vmatpush1.xpose.msra.mxu0 0.0
    %2305 = vmatprep.subr.mxu0 0.0
    %2306 = vmatpush1.xpose.msra.mxu0 0.0
    %2307 = vmatprep.subr.mxu0 0.0
    %2308 = vmatpush1.xpose.msra.mxu0 0.0
    %2309 = vmatprep.subr.mxu0 0.0
    %2310 = vmatpush1.xpose.msra.mxu0 0.0
    %2311 = vmatprep.subr.mxu0 0.0
    %2312 = vmatpush1.xpose.msra.mxu0 0.0
    %2313 = vmatprep.subr.mxu0 0.0
    %2314 = vmatpush1.xpose.msra.mxu0 0.0
    %2315 = vmatprep.subr.mxu0 0.0
    %2316 = vmatpush1.xpose.msra.mxu0 0.0
    %2317 = vmatprep.subr.mxu0 0.0
    %2318 = vmatpush1.xpose.msra.mxu0 0.0
    %2319 = vmatprep.subr.mxu0 0.0
    %2320 = vmatpush1.xpose.msra.mxu0 0.0
    %2321 = vmatprep.subr.mxu0 0.0
    %2322 = vmatpush1.xpose.msra.mxu0 0.0
    %2323 = vmatprep.subr.mxu0 0.0
    %2324 = vmatpush1.xpose.msra.mxu0 0.0
    %2325 = vmatprep.subr.mxu0 0.0
    %2326 = vmatpush1.xpose.msra.mxu0 0.0
    %2327 = vmatprep.subr.mxu0 0.0
    %2328 = vmatpush1.xpose.msra.mxu0 0.0
    %2329 = vmatprep.subr.mxu0 0.0
    %2330 = vmatpush1.xpose.msra.mxu0 0.0
    %2331 = vmatprep.subr.mxu0 0.0
    %2332 = vmatpush1.xpose.msra.mxu0 0.0
    %2333 = vmatprep.subr.mxu0 0.0
    %2334 = vmatpush1.xpose.msra.mxu0 0.0
    %2335 = vmatprep.subr.mxu0 0.0
    %2336 = vmatpush1.xpose.msra.mxu0 0.0
    %2337 = vmatprep.subr.mxu0 0.0
    %2338 = vmatpush1.xpose.msra.mxu0 0.0
    %2339 = vmatprep.subr.mxu0 0.0
    %2340 = vmatpush1.xpose.msra.mxu0 0.0
    %2341 = vmatprep.subr.mxu0 0.0
    %2342 = vmatpush1.xpose.msra.mxu0 0.0
    %2343 = vmatprep.subr.mxu0 0.0
    %2344 = vmatpush1.xpose.msra.mxu0 0.0
    %2345 = vmatprep.subr.mxu0 0.0
    %2346 = vmatpush1.xpose.msra.mxu0 0.0
    %2347 = vmatprep.subr.mxu0 0.0
    %2348 = vmatpush1.xpose.msra.mxu0 0.0
    %2349 = vmatprep.subr.mxu0 0.0
    %2350 = vmatpush1.xpose.msra.mxu0 0.0
    %2351 = vmatprep.subr.mxu0 0.0
    %2352 = vmatpush1.xpose.msra.mxu0 0.0
    %2353 = vmatprep.subr.mxu0 0.0
    %2354 = vmatpush1.xpose.msra.mxu0 0.0
    %2355 = vmatprep.subr.mxu0 0.0
    %2356 = vmatpush1.xpose.msra.mxu0 0.0
    %2357 = vmatprep.subr.mxu0 0.0
    %2358 = vmatpush1.xpose.msra.mxu0 0.0
    %2359 = vmatprep.mubr.f32.mxu0 0.0
    %2360 = vmatmul.mubr.f32.gmra.mrb[0].mxu0 %v2284
    %v2361 = vpop.f32.mrb[0].mxu0
    %v2362 = vadd.f32 0.0, %v2361
    %v2363 = vpop.f32.mrb[0].mxu0
    %2364 = vmatprep.mubr.f32.mxu0 0.0
    %2365 = vmatmul.mubr.f32.gmra.mrb[0].mxu0 %v2287
    %v2366 = vpop.f32.mrb[0].mxu0
    %v2367 = vadd.f32 0.0, %v2366
    %v2368 = vpop.f32.mrb[0].mxu0
    %2369 = vdwg.mxu0
    %v2371 = vsel %vm2021, %v766, 0
    %v2374 = vsel %vm2021, %v834, 0
    %v2377 = vsel %vm2021, %v1358, 0
    %v2380 = vsel %vm2021, %v1426, 0
    %2382 = vmatprep.subr.mxu0 0.0
    %2383 = vmatpush1.xpose.msra.mxu0 %v2377
    %2384 = vmatprep.subr.mxu0 0.0
    %2385 = vmatpush1.xpose.msra.mxu0 %v2380
    %2386 = vmatprep.subr.mxu0 0.0
    %2387 = vmatpush1.xpose.msra.mxu0 0.0
    %2388 = vmatprep.subr.mxu0 0.0
    %2389 = vmatpush1.xpose.msra.mxu0 0.0
    %2390 = vmatprep.subr.mxu0 0.0
    %2391 = vmatpush1.xpose.msra.mxu0 0.0
    %2392 = vmatprep.subr.mxu0 0.0
    %2393 = vmatpush1.xpose.msra.mxu0 0.0
    %2394 = vmatprep.subr.mxu0 0.0
    %2395 = vmatpush1.xpose.msra.mxu0 0.0
    %2396 = vmatprep.subr.mxu0 0.0
    %2397 = vmatpush1.xpose.msra.mxu0 0.0
    %2398 = vmatprep.subr.mxu0 0.0
    %2399 = vmatpush1.xpose.msra.mxu0 0.0
    %2400 = vmatprep.subr.mxu0 0.0
    %2401 = vmatpush1.xpose.msra.mxu0 0.0
    %2402 = vmatprep.subr.mxu0 0.0
    %2403 = vmatpush1.xpose.msra.mxu0 0.0
    %2404 = vmatprep.subr.mxu0 0.0
    %2405 = vmatpush1.xpose.msra.mxu0 0.0
    %2406 = vmatprep.subr.mxu0 0.0
    %2407 = vmatpush1.xpose.msra.mxu0 0.0
    %2408 = vmatprep.subr.mxu0 0.0
    %2409 = vmatpush1.xpose.msra.mxu0 0.0
    %2410 = vmatprep.subr.mxu0 0.0
    %2411 = vmatpush1.xpose.msra.mxu0 0.0
    %2412 = vmatprep.subr.mxu0 0.0
    %2413 = vmatpush1.xpose.msra.mxu0 0.0
    %2414 = vmatprep.subr.mxu0 0.0
    %2415 = vmatpush1.xpose.msra.mxu0 0.0
    %2416 = vmatprep.subr.mxu0 0.0
    %2417 = vmatpush1.xpose.msra.mxu0 0.0
    %2418 = vmatprep.subr.mxu0 0.0
    %2419 = vmatpush1.xpose.msra.mxu0 0.0
    %2420 = vmatprep.subr.mxu0 0.0
    %2421 = vmatpush1.xpose.msra.mxu0 0.0
    %2422 = vmatprep.subr.mxu0 0.0
    %2423 = vmatpush1.xpose.msra.mxu0 0.0
    %2424 = vmatprep.subr.mxu0 0.0
    %2425 = vmatpush1.xpose.msra.mxu0 0.0
    %2426 = vmatprep.subr.mxu0 0.0
    %2427 = vmatpush1.xpose.msra.mxu0 0.0
    %2428 = vmatprep.subr.mxu0 0.0
    %2429 = vmatpush1.xpose.msra.mxu0 0.0
    %2430 = vmatprep.subr.mxu0 0.0
    %2431 = vmatpush1.xpose.msra.mxu0 0.0
    %2432 = vmatprep.subr.mxu0 0.0
    %2433 = vmatpush1.xpose.msra.mxu0 0.0
    %2434 = vmatprep.subr.mxu0 0.0
    %2435 = vmatpush1.xpose.msra.mxu0 0.0
    %2436 = vmatprep.subr.mxu0 0.0
    %2437 = vmatpush1.xpose.msra.mxu0 0.0
    %2438 = vmatprep.subr.mxu0 0.0
    %2439 = vmatpush1.xpose.msra.mxu0 0.0
    %2440 = vmatprep.subr.mxu0 0.0
    %2441 = vmatpush1.xpose.msra.mxu0 0.0
    %2442 = vmatprep.subr.mxu0 0.0
    %2443 = vmatpush1.xpose.msra.mxu0 0.0
    %2444 = vmatprep.subr.mxu0 0.0
    %2445 = vmatpush1.xpose.msra.mxu0 0.0
    %2446 = vmatprep.mubr.f32.mxu0 0.0
    %2447 = vmatmul.mubr.f32.gmra.mrb[0].mxu0 %v2371
    %v2448 = vpop.f32.mrb[0].mxu0
    %v2449 = vadd.f32 0.0, %v2448
    %v2450 = vpop.f32.mrb[0].mxu0
    %2451 = vmatprep.mubr.f32.mxu0 0.0
    %2452 = vmatmul.mubr.f32.gmra.mrb[0].mxu0 %v2374
    %v2453 = vpop.f32.mrb[0].mxu0
    %v2454 = vadd.f32 0.0, %v2453
    %v2455 = vpop.f32.mrb[0].mxu0
    %2456 = vdwg.mxu0
    %v2458 = vsel %vm2021, %v767, 0
    %v2461 = vsel %vm2021, %v835, 0
    %v2464 = vsel %vm2021, %v1359, 0
    %v2467 = vsel %vm2021, %v1427, 0
    %2469 = vmatprep.subr.mxu0 0.0
    %2470 = vmatpush1.xpose.msra.mxu0 %v2464
    %2471 = vmatprep.subr.mxu0 0.0
    %2472 = vmatpush1.xpose.msra.mxu0 %v2467
    %2473 = vmatprep.subr.mxu0 0.0
    %2474 = vmatpush1.xpose.msra.mxu0 0.0
    %2475 = vmatprep.subr.mxu0 0.0
    %2476 = vmatpush1.xpose.msra.mxu0 0.0
    %2477 = vmatprep.subr.mxu0 0.0
    %2478 = vmatpush1.xpose.msra.mxu0 0.0
    %2479 = vmatprep.subr.mxu0 0.0
    %2480 = vmatpush1.xpose.msra.mxu0 0.0
    %2481 = vmatprep.subr.mxu0 0.0
    %2482 = vmatpush1.xpose.msra.mxu0 0.0
    %2483 = vmatprep.subr.mxu0 0.0
    %2484 = vmatpush1.xpose.msra.mxu0 0.0
    %2485 = vmatprep.subr.mxu0 0.0
    %2486 = vmatpush1.xpose.msra.mxu0 0.0
    %2487 = vmatprep.subr.mxu0 0.0
    %2488 = vmatpush1.xpose.msra.mxu0 0.0
    %2489 = vmatprep.subr.mxu0 0.0
    %2490 = vmatpush1.xpose.msra.mxu0 0.0
    %2491 = vmatprep.subr.mxu0 0.0
    %2492 = vmatpush1.xpose.msra.mxu0 0.0
    %2493 = vmatprep.subr.mxu0 0.0
    %2494 = vmatpush1.xpose.msra.mxu0 0.0
    %2495 = vmatprep.subr.mxu0 0.0
    %2496 = vmatpush1.xpose.msra.mxu0 0.0
    %2497 = vmatprep.subr.mxu0 0.0
    %2498 = vmatpush1.xpose.msra.mxu0 0.0
    %2499 = vmatprep.subr.mxu0 0.0
    %2500 = vmatpush1.xpose.msra.mxu0 0.0
    %2501 = vmatprep.subr.mxu0 0.0
    %2502 = vmatpush1.xpose.msra.mxu0 0.0
    %2503 = vmatprep.subr.mxu0 0.0
    %2504 = vmatpush1.xpose.msra.mxu0 0.0
    %2505 = vmatprep.subr.mxu0 0.0
    %2506 = vmatpush1.xpose.msra.mxu0 0.0
    %2507 = vmatprep.subr.mxu0 0.0
    %2508 = vmatpush1.xpose.msra.mxu0 0.0
    %2509 = vmatprep.subr.mxu0 0.0
    %2510 = vmatpush1.xpose.msra.mxu0 0.0
    %2511 = vmatprep.subr.mxu0 0.0
    %2512 = vmatpush1.xpose.msra.mxu0 0.0
    %2513 = vmatprep.subr.mxu0 0.0
    %2514 = vmatpush1.xpose.msra.mxu0 0.0
    %2515 = vmatprep.subr.mxu0 0.0
    %2516 = vmatpush1.xpose.msra.mxu0 0.0
    %2517 = vmatprep.subr.mxu0 0.0
    %2518 = vmatpush1.xpose.msra.mxu0 0.0
    %2519 = vmatprep.subr.mxu0 0.0
    %2520 = vmatpush1.xpose.msra.mxu0 0.0
    %2521 = vmatprep.subr.mxu0 0.0
    %2522 = vmatpush1.xpose.msra.mxu0 0.0
    %2523 = vmatprep.subr.mxu0 0.0
    %2524 = vmatpush1.xpose.msra.mxu0 0.0
    %2525 = vmatprep.subr.mxu0 0.0
    %2526 = vmatpush1.xpose.msra.mxu0 0.0
    %2527 = vmatprep.subr.mxu0 0.0
    %2528 = vmatpush1.xpose.msra.mxu0 0.0
    %2529 = vmatprep.subr.mxu0 0.0
    %2530 = vmatpush1.xpose.msra.mxu0 0.0
    %2531 = vmatprep.subr.mxu0 0.0
    %2532 = vmatpush1.xpose.msra.mxu0 0.0
    %2533 = vmatprep.mubr.f32.mxu0 0.0
    %2534 = vmatmul.mubr.f32.gmra.mrb[0].mxu0 %v2458
    %v2535 = vpop.f32.mrb[0].mxu0
    %v2536 = vadd.f32 0.0, %v2535
    %v2537 = vpop.f32.mrb[0].mxu0
    %2538 = vmatprep.mubr.f32.mxu0 0.0
    %2539 = vmatmul.mubr.f32.gmra.mrb[0].mxu0 %v2461
    %v2540 = vpop.f32.mrb[0].mxu0
    %v2541 = vadd.f32 0.0, %v2540
    %v2542 = vpop.f32.mrb[0].mxu0
    %2543 = vdwg.mxu0
    %v2545 = vsel %vm2021, %v768, 0
    %v2548 = vsel %vm2021, %v836, 0
    %v2551 = vsel %vm2021, %v1360, 0
    %v2554 = vsel %vm2021, %v1428, 0
    %2556 = vmatprep.subr.mxu0 0.0
    %2557 = vmatpush1.xpose.msra.mxu0 %v2551
    %2558 = vmatprep.subr.mxu0 0.0
    %2559 = vmatpush1.xpose.msra.mxu0 %v2554
    %2560 = vmatprep.subr.mxu0 0.0
    %2561 = vmatpush1.xpose.msra.mxu0 0.0
    %2562 = vmatprep.subr.mxu0 0.0
    %2563 = vmatpush1.xpose.msra.mxu0 0.0
    %2564 = vmatprep.subr.mxu0 0.0
    %2565 = vmatpush1.xpose.msra.mxu0 0.0
    %2566 = vmatprep.subr.mxu0 0.0
    %2567 = vmatpush1.xpose.msra.mxu0 0.0
    %2568 = vmatprep.subr.mxu0 0.0
    %2569 = vmatpush1.xpose.msra.mxu0 0.0
    %2570 = vmatprep.subr.mxu0 0.0
    %2571 = vmatpush1.xpose.msra.mxu0 0.0
    %2572 = vmatprep.subr.mxu0 0.0
    %2573 = vmatpush1.xpose.msra.mxu0 0.0
    %2574 = vmatprep.subr.mxu0 0.0
    %2575 = vmatpush1.xpose.msra.mxu0 0.0
    %2576 = vmatprep.subr.mxu0 0.0
    %2577 = vmatpush1.xpose.msra.mxu0 0.0
    %2578 = vmatprep.subr.mxu0 0.0
    %2579 = vmatpush1.xpose.msra.mxu0 0.0
    %2580 = vmatprep.subr.mxu0 0.0
    %2581 = vmatpush1.xpose.msra.mxu0 0.0
    %2582 = vmatprep.subr.mxu0 0.0
    %2583 = vmatpush1.xpose.msra.mxu0 0.0
    %2584 = vmatprep.subr.mxu0 0.0
    %2585 = vmatpush1.xpose.msra.mxu0 0.0
    %2586 = vmatprep.subr.mxu0 0.0
    %2587 = vmatpush1.xpose.msra.mxu0 0.0
    %2588 = vmatprep.subr.mxu0 0.0
    %2589 = vmatpush1.xpose.msra.mxu0 0.0
    %2590 = vmatprep.subr.mxu0 0.0
    %2591 = vmatpush1.xpose.msra.mxu0 0.0
    %2592 = vmatprep.subr.mxu0 0.0
    %2593 = vmatpush1.xpose.msra.mxu0 0.0
    %2594 = vmatprep.subr.mxu0 0.0
    %2595 = vmatpush1.xpose.msra.mxu0 0.0
    %2596 = vmatprep.subr.mxu0 0.0
    %2597 = vmatpush1.xpose.msra.mxu0 0.0
    %2598 = vmatprep.subr.mxu0 0.0
    %2599 = vmatpush1.xpose.msra.mxu0 0.0
    %2600 = vmatprep.subr.mxu0 0.0
    %2601 = vmatpush1.xpose.msra.mxu0 0.0
    %2602 = vmatprep.subr.mxu0 0.0
    %2603 = vmatpush1.xpose.msra.mxu0 0.0
    %2604 = vmatprep.subr.mxu0 0.0
    %2605 = vmatpush1.xpose.msra.mxu0 0.0
    %2606 = vmatprep.subr.mxu0 0.0
    %2607 = vmatpush1.xpose.msra.mxu0 0.0
    %2608 = vmatprep.subr.mxu0 0.0
    %2609 = vmatpush1.xpose.msra.mxu0 0.0
    %2610 = vmatprep.subr.mxu0 0.0
    %2611 = vmatpush1.xpose.msra.mxu0 0.0
    %2612 = vmatprep.subr.mxu0 0.0
    %2613 = vmatpush1.xpose.msra.mxu0 0.0
    %2614 = vmatprep.subr.mxu0 0.0
    %2615 = vmatpush1.xpose.msra.mxu0 0.0
    %2616 = vmatprep.subr.mxu0 0.0
    %2617 = vmatpush1.xpose.msra.mxu0 0.0
    %2618 = vmatprep.subr.mxu0 0.0
    %2619 = vmatpush1.xpose.msra.mxu0 0.0
    %2620 = vmatprep.mubr.f32.mxu0 0.0
    %2621 = vmatmul.mubr.f32.gmra.mrb[0].mxu0 %v2545
    %v2622 = vpop.f32.mrb[0].mxu0
    %v2623 = vadd.f32 0.0, %v2622
    %v2624 = vpop.f32.mrb[0].mxu0
    %2625 = vmatprep.mubr.f32.mxu0 0.0
    %2626 = vmatmul.mubr.f32.gmra.mrb[0].mxu0 %v2548
    %v2627 = vpop.f32.mrb[0].mxu0
    %v2628 = vadd.f32 0.0, %v2627
    %v2629 = vpop.f32.mrb[0].mxu0
    %2630 = vdwg.mxu0
    %v2632 = vsel %vm2021, %v769, 0
    %v2635 = vsel %vm2021, %v837, 0
    %v2638 = vsel %vm2021, %v1361, 0
    %v2641 = vsel %vm2021, %v1429, 0
    %2643 = vmatprep.subr.mxu0 0.0
    %2644 = vmatpush1.xpose.msra.mxu0 %v2638
    %2645 = vmatprep.subr.mxu0 0.0
    %2646 = vmatpush1.xpose.msra.mxu0 %v2641
    %2647 = vmatprep.subr.mxu0 0.0
    %2648 = vmatpush1.xpose.msra.mxu0 0.0
    %2649 = vmatprep.subr.mxu0 0.0
    %2650 = vmatpush1.xpose.msra.mxu0 0.0
    %2651 = vmatprep.subr.mxu0 0.0
    %2652 = vmatpush1.xpose.msra.mxu0 0.0
    %2653 = vmatprep.subr.mxu0 0.0
    %2654 = vmatpush1.xpose.msra.mxu0 0.0
    %2655 = vmatprep.subr.mxu0 0.0
    %2656 = vmatpush1.xpose.msra.mxu0 0.0
    %2657 = vmatprep.subr.mxu0 0.0
    %2658 = vmatpush1.xpose.msra.mxu0 0.0
    %2659 = vmatprep.subr.mxu0 0.0
    %2660 = vmatpush1.xpose.msra.mxu0 0.0
    %2661 = vmatprep.subr.mxu0 0.0
    %2662 = vmatpush1.xpose.msra.mxu0 0.0
    %2663 = vmatprep.subr.mxu0 0.0
    %2664 = vmatpush1.xpose.msra.mxu0 0.0
    %2665 = vmatprep.subr.mxu0 0.0
    %2666 = vmatpush1.xpose.msra.mxu0 0.0
    %2667 = vmatprep.subr.mxu0 0.0
    %2668 = vmatpush1.xpose.msra.mxu0 0.0
    %2669 = vmatprep.subr.mxu0 0.0
    %2670 = vmatpush1.xpose.msra.mxu0 0.0
    %2671 = vmatprep.subr.mxu0 0.0
    %2672 = vmatpush1.xpose.msra.mxu0 0.0
    %2673 = vmatprep.subr.mxu0 0.0
    %2674 = vmatpush1.xpose.msra.mxu0 0.0
    %2675 = vmatprep.subr.mxu0 0.0
    %2676 = vmatpush1.xpose.msra.mxu0 0.0
    %2677 = vmatprep.subr.mxu0 0.0
    %2678 = vmatpush1.xpose.msra.mxu0 0.0
    %2679 = vmatprep.subr.mxu0 0.0
    %2680 = vmatpush1.xpose.msra.mxu0 0.0
    %2681 = vmatprep.subr.mxu0 0.0
    %2682 = vmatpush1.xpose.msra.mxu0 0.0
    %2683 = vmatprep.subr.mxu0 0.0
    %2684 = vmatpush1.xpose.msra.mxu0 0.0
    %2685 = vmatprep.subr.mxu0 0.0
    %2686 = vmatpush1.xpose.msra.mxu0 0.0
    %2687 = vmatprep.subr.mxu0 0.0
    %2688 = vmatpush1.xpose.msra.mxu0 0.0
    %2689 = vmatprep.subr.mxu0 0.0
    %2690 = vmatpush1.xpose.msra.mxu0 0.0
    %2691 = vmatprep.subr.mxu0 0.0
    %2692 = vmatpush1.xpose.msra.mxu0 0.0
    %2693 = vmatprep.subr.mxu0 0.0
    %2694 = vmatpush1.xpose.msra.mxu0 0.0
    %2695 = vmatprep.subr.mxu0 0.0
    %2696 = vmatpush1.xpose.msra.mxu0 0.0
    %2697 = vmatprep.subr.mxu0 0.0
    %2698 = vmatpush1.xpose.msra.mxu0 0.0
    %2699 = vmatprep.subr.mxu0 0.0
    %2700 = vmatpush1.xpose.msra.mxu0 0.0
    %2701 = vmatprep.subr.mxu0 0.0
    %2702 = vmatpush1.xpose.msra.mxu0 0.0
    %2703 = vmatprep.subr.mxu0 0.0
    %2704 = vmatpush1.xpose.msra.mxu0 0.0
    %2705 = vmatprep.subr.mxu0 0.0
    %2706 = vmatpush1.xpose.msra.mxu0 0.0
    %2707 = vmatprep.mubr.f32.mxu0 0.0
    %2708 = vmatmul.mubr.f32.gmra.mrb[0].mxu0 %v2632
    %v2709 = vpop.f32.mrb[0].mxu0
    %v2710 = vadd.f32 0.0, %v2709
    %v2711 = vpop.f32.mrb[0].mxu0
    %2712 = vmatprep.mubr.f32.mxu0 0.0
    %2713 = vmatmul.mubr.f32.gmra.mrb[0].mxu0 %v2635
    %v2714 = vpop.f32.mrb[0].mxu0
    %v2715 = vadd.f32 0.0, %v2714
    %v2716 = vpop.f32.mrb[0].mxu0
    %2717 = vdwg.mxu0
    %v2718 = vsel %vm2019, 1, 0
    %v2719 = vsel %vm2020, 1, 0
    %vm2720 = vcmp.eq.s32.totalorder %v2718, 1
    %vm2721 = vcmp.eq.s32.totalorder %v2719, 1
    %v2722 = vsel %vm2720, %v2101, -1e+30
    %v2723 = vsel %vm2721, %v2106, -1e+30
    %v2724 = vsel %vm2720, %v2188, -1e+30
    %v2725 = vsel %vm2721, %v2193, -1e+30
    %v2726 = vsel %vm2720, %v2275, -1e+30
    %v2727 = vsel %vm2721, %v2280, -1e+30
    %v2728 = vsel %vm2720, %v2362, -1e+30
    %v2729 = vsel %vm2721, %v2367, -1e+30
    %v2730 = vsel %vm2720, %v2449, -1e+30
    %v2731 = vsel %vm2721, %v2454, -1e+30
    %v2732 = vsel %vm2720, %v2536, -1e+30
    %v2733 = vsel %vm2721, %v2541, -1e+30
    %v2734 = vsel %vm2720, %v2623, -1e+30
    %v2735 = vsel %vm2721, %v2628, -1e+30
    %v2736 = vsel %vm2720, %v2710, -1e+30
    %v2737 = vsel %vm2721, %v2715, -1e+30
    %v2738 = vsel %vm2021, %v2722, -inf
    %2739 = vmax.xlane.f32.xlu0 %v2738
    %v2740 = vpop.xlane.xlu0 %2739
    %v2741 = vsel %vm2021, %v2723, -inf
    %2742 = vmax.xlane.f32.xlu0 %v2741
    %v2743 = vpop.xlane.xlu0 %2742
    %v2744 = vsel %vm2021, %v2724, -inf
    %2745 = vmax.xlane.f32.xlu0 %v2744
    %v2746 = vpop.xlane.xlu0 %2745
    %v2747 = vsel %vm2021, %v2725, -inf
    %2748 = vmax.xlane.f32.xlu0 %v2747
    %v2749 = vpop.xlane.xlu0 %2748
    %v2750 = vsel %vm2021, %v2726, -inf
    %2751 = vmax.xlane.f32.xlu0 %v2750
    %v2752 = vpop.xlane.xlu0 %2751
    %v2753 = vsel %vm2021, %v2727, -inf
    %2754 = vmax.xlane.f32.xlu0 %v2753
    %v2755 = vpop.xlane.xlu0 %2754
    %v2756 = vsel %vm2021, %v2728, -inf
    %2757 = vmax.xlane.f32.xlu0 %v2756
    %v2758 = vpop.xlane.xlu0 %2757
    %v2759 = vsel %vm2021, %v2729, -inf
    %2760 = vmax.xlane.f32.xlu0 %v2759
    %v2761 = vpop.xlane.xlu0 %2760
    %v2762 = vsel %vm2021, %v2730, -inf
    %2763 = vmax.xlane.f32.xlu0 %v2762
    %v2764 = vpop.xlane.xlu0 %2763
    %v2765 = vsel %vm2021, %v2731, -inf
    %2766 = vmax.xlane.f32.xlu0 %v2765
    %v2767 = vpop.xlane.xlu0 %2766
    %v2768 = vsel %vm2021, %v2732, -inf
    %2769 = vmax.xlane.f32.xlu0 %v2768
    %v2770 = vpop.xlane.xlu0 %2769
    %v2771 = vsel %vm2021, %v2733, -inf
    %2772 = vmax.xlane.f32.xlu0 %v2771
    %v2773 = vpop.xlane.xlu0 %2772
    %v2774 = vsel %vm2021, %v2734, -inf
    %2775 = vmax.xlane.f32.xlu0 %v2774
    %v2776 = vpop.xlane.xlu0 %2775
    %v2777 = vsel %vm2021, %v2735, -inf
    %2778 = vmax.xlane.f32.xlu0 %v2777
    %v2779 = vpop.xlane.xlu0 %2778
    %v2780 = vsel %vm2021, %v2736, -inf
    %2781 = vmax.xlane.f32.xlu0 %v2780
    %v2782 = vpop.xlane.xlu0 %2781
    %v2783 = vsel %vm2021, %v2737, -inf
    %2784 = vmax.xlane.f32.xlu0 %v2783
    %v2785 = vpop.xlane.xlu0 %2784
    %v2786 = vsub.f32 %v2722, %v2740
    %v2787 = vsub.f32 %v2723, %v2743
    %v2788 = vsub.f32 %v2724, %v2746
    %v2789 = vsub.f32 %v2725, %v2749
    %v2790 = vsub.f32 %v2726, %v2752
    %v2791 = vsub.f32 %v2727, %v2755
    %v2792 = vsub.f32 %v2728, %v2758
    %v2793 = vsub.f32 %v2729, %v2761
    %v2794 = vsub.f32 %v2730, %v2764
    %v2795 = vsub.f32 %v2731, %v2767
    %v2796 = vsub.f32 %v2732, %v2770
    %v2797 = vsub.f32 %v2733, %v2773
    %v2798 = vsub.f32 %v2734, %v2776
    %v2799 = vsub.f32 %v2735, %v2779
    %v2800 = vsub.f32 %v2736, %v2782
    %v2801 = vsub.f32 %v2737, %v2785
    %v2802 = vmul.f32 %v2786, 1.442695
    %v2803 = vpow.pop %v2802
    %v2804 = vmul.f32 %v2787, 1.442695
    %v2805 = vpow.pop %v2804
    %v2806 = vmul.f32 %v2788, 1.442695
    %v2807 = vpow.pop %v2806
    %v2808 = vmul.f32 %v2789, 1.442695
    %v2809 = vpow.pop %v2808
    %v2810 = vmul.f32 %v2790, 1.442695
    %v2811 = vpow.pop %v2810
    %v2812 = vmul.f32 %v2791, 1.442695
    %v2813 = vpow.pop %v2812
    %v2814 = vmul.f32 %v2792, 1.442695
    %v2815 = vpow.pop %v2814
    %v2816 = vmul.f32 %v2793, 1.442695
    %v2817 = vpow.pop %v2816
    %v2818 = vmul.f32 %v2794, 1.442695
    %v2819 = vpow.pop %v2818
    %v2820 = vmul.f32 %v2795, 1.442695
    %v2821 = vpow.pop %v2820
    %v2822 = vmul.f32 %v2796, 1.442695
    %v2823 = vpow.pop %v2822
    %v2824 = vmul.f32 %v2797, 1.442695
    %v2825 = vpow.pop %v2824
    %v2826 = vmul.f32 %v2798, 1.442695
    %v2827 = vpow.pop %v2826
    %v2828 = vmul.f32 %v2799, 1.442695
    %v2829 = vpow.pop %v2828
    %v2830 = vmul.f32 %v2800, 1.442695
    %v2831 = vpow.pop %v2830
    %v2832 = vmul.f32 %v2801, 1.442695
    %v2833 = vpow.pop %v2832
    %v2834 = vsel %vm2021, %v2803, 0.0
    %2835 = vadd.xlane.f32.xlu0 %v2834
    %v2836 = vpop.xlane.xlu0 %2835
    %v2837 = vsel %vm2021, %v2805, 0.0
    %2838 = vadd.xlane.f32.xlu0 %v2837
    %v2839 = vpop.xlane.xlu0 %2838
    %v2840 = vsel %vm2021, %v2807, 0.0
    %2841 = vadd.xlane.f32.xlu0 %v2840
    %v2842 = vpop.xlane.xlu0 %2841
    %v2843 = vsel %vm2021, %v2809, 0.0
    %2844 = vadd.xlane.f32.xlu0 %v2843
    %v2845 = vpop.xlane.xlu0 %2844
    %v2846 = vsel %vm2021, %v2811, 0.0
    %2847 = vadd.xlane.f32.xlu0 %v2846
    %v2848 = vpop.xlane.xlu0 %2847
    %v2849 = vsel %vm2021, %v2813, 0.0
    %2850 = vadd.xlane.f32.xlu0 %v2849
    %v2851 = vpop.xlane.xlu0 %2850
    %v2852 = vsel %vm2021, %v2815, 0.0
    %2853 = vadd.xlane.f32.xlu0 %v2852
    %v2854 = vpop.xlane.xlu0 %2853
    %v2855 = vsel %vm2021, %v2817, 0.0
    %2856 = vadd.xlane.f32.xlu0 %v2855
    %v2857 = vpop.xlane.xlu0 %2856
    %v2858 = vsel %vm2021, %v2819, 0.0
    %2859 = vadd.xlane.f32.xlu0 %v2858
    %v2860 = vpop.xlane.xlu0 %2859
    %v2861 = vsel %vm2021, %v2821, 0.0
    %2862 = vadd.xlane.f32.xlu0 %v2861
    %v2863 = vpop.xlane.xlu0 %2862
    %v2864 = vsel %vm2021, %v2823, 0.0
    %2865 = vadd.xlane.f32.xlu0 %v2864
    %v2866 = vpop.xlane.xlu0 %2865
    %v2867 = vsel %vm2021, %v2825, 0.0
    %2868 = vadd.xlane.f32.xlu0 %v2867
    %v2869 = vpop.xlane.xlu0 %2868
    %v2870 = vsel %vm2021, %v2827, 0.0
    %2871 = vadd.xlane.f32.xlu0 %v2870
    %v2872 = vpop.xlane.xlu0 %2871
    %v2873 = vsel %vm2021, %v2829, 0.0
    %2874 = vadd.xlane.f32.xlu0 %v2873
    %v2875 = vpop.xlane.xlu0 %2874
    %v2876 = vsel %vm2021, %v2831, 0.0
    %2877 = vadd.xlane.f32.xlu0 %v2876
    %v2878 = vpop.xlane.xlu0 %2877
    %v2879 = vsel %vm2021, %v2833, 0.0
    %2880 = vadd.xlane.f32.xlu0 %v2879
    %v2881 = vpop.xlane.xlu0 %2880
    %v2882 = vrcp.pop %v2836
    %v2883 = vrcp.pop %v2839
    %v2884 = vrcp.pop %v2842
    %v2885 = vrcp.pop %v2845
    %v2886 = vrcp.pop %v2848
    %v2887 = vrcp.pop %v2851
    %v2888 = vrcp.pop %v2854
    %v2889 = vrcp.pop %v2857
    %v2890 = vrcp.pop %v2860
    %v2891 = vrcp.pop %v2863
    %v2892 = vrcp.pop %v2866
    %v2893 = vrcp.pop %v2869
    %v2894 = vrcp.pop %v2872
    %v2895 = vrcp.pop %v2875
    %v2896 = vrcp.pop %v2878
    %v2897 = vrcp.pop %v2881
    %v2898 = vmul.f32 %v2803, %v2882
    %v2899 = vmul.f32 %v2805, %v2883
    %v2900 = vmul.f32 %v2807, %v2884
    %v2901 = vmul.f32 %v2809, %v2885
    %v2902 = vmul.f32 %v2811, %v2886
    %v2903 = vmul.f32 %v2813, %v2887
    %v2904 = vmul.f32 %v2815, %v2888
    %v2905 = vmul.f32 %v2817, %v2889
    %v2906 = vmul.f32 %v2819, %v2890
    %v2907 = vmul.f32 %v2821, %v2891
    %v2908 = vmul.f32 %v2823, %v2892
    %v2909 = vmul.f32 %v2825, %v2893
    %v2910 = vmul.f32 %v2827, %v2894
    %v2911 = vmul.f32 %v2829, %v2895
    %v2912 = vmul.f32 %v2831, %v2896
    %v2913 = vmul.f32 %v2833, %v2897
    %v2915 = vsel %vm2021, %v2898, 0
    %v2918 = vsel %vm2021, %v2899, 0
    %2920 = vmatprep.subr.mxu0 0.0
    %2921 = vmatpush1.msra.mxu0 %v1806
    %2922 = vmatprep.subr.mxu0 0.0
    %2923 = vmatpush1.msra.mxu0 %v1874
    %2924 = vmatprep.subr.mxu0 0.0
    %2925 = vmatpush1.msra.mxu0 0.0
    %2926 = vmatprep.subr.mxu0 0.0
    %2927 = vmatpush1.msra.mxu0 0.0
    %2928 = vmatprep.subr.mxu0 0.0
    %2929 = vmatpush1.msra.mxu0 0.0
    %2930 = vmatprep.subr.mxu0 0.0
    %2931 = vmatpush1.msra.mxu0 0.0
    %2932 = vmatprep.subr.mxu0 0.0
    %2933 = vmatpush1.msra.mxu0 0.0
    %2934 = vmatprep.subr.mxu0 0.0
    %2935 = vmatpush1.msra.mxu0 0.0
    %2936 = vmatprep.subr.mxu0 0.0
    %2937 = vmatpush1.msra.mxu0 0.0
    %2938 = vmatprep.subr.mxu0 0.0
    %2939 = vmatpush1.msra.mxu0 0.0
    %2940 = vmatprep.subr.mxu0 0.0
    %2941 = vmatpush1.msra.mxu0 0.0
    %2942 = vmatprep.subr.mxu0 0.0
    %2943 = vmatpush1.msra.mxu0 0.0
    %2944 = vmatprep.subr.mxu0 0.0
    %2945 = vmatpush1.msra.mxu0 0.0
    %2946 = vmatprep.subr.mxu0 0.0
    %2947 = vmatpush1.msra.mxu0 0.0
    %2948 = vmatprep.subr.mxu0 0.0
    %2949 = vmatpush1.msra.mxu0 0.0
    %2950 = vmatprep.subr.mxu0 0.0
    %2951 = vmatpush1.msra.mxu0 0.0
    %2952 = vmatprep.subr.mxu0 0.0
    %2953 = vmatpush1.msra.mxu0 0.0
    %2954 = vmatprep.subr.mxu0 0.0
    %2955 = vmatpush1.msra.mxu0 0.0
    %2956 = vmatprep.subr.mxu0 0.0
    %2957 = vmatpush1.msra.mxu0 0.0
    %2958 = vmatprep.subr.mxu0 0.0
    %2959 = vmatpush1.msra.mxu0 0.0
    %2960 = vmatprep.subr.mxu0 0.0
    %2961 = vmatpush1.msra.mxu0 0.0
    %2962 = vmatprep.subr.mxu0 0.0
    %2963 = vmatpush1.msra.mxu0 0.0
    %2964 = vmatprep.subr.mxu0 0.0
    %2965 = vmatpush1.msra.mxu0 0.0
    %2966 = vmatprep.subr.mxu0 0.0
    %2967 = vmatpush1.msra.mxu0 0.0
    %2968 = vmatprep.subr.mxu0 0.0
    %2969 = vmatpush1.msra.mxu0 0.0
    %2970 = vmatprep.subr.mxu0 0.0
    %2971 = vmatpush1.msra.mxu0 0.0
    %2972 = vmatprep.subr.mxu0 0.0
    %2973 = vmatpush1.msra.mxu0 0.0
    %2974 = vmatprep.subr.mxu0 0.0
    %2975 = vmatpush1.msra.mxu0 0.0
    %2976 = vmatprep.subr.mxu0 0.0
    %2977 = vmatpush1.msra.mxu0 0.0
    %2978 = vmatprep.subr.mxu0 0.0
    %2979 = vmatpush1.msra.mxu0 0.0
    %2980 = vmatprep.subr.mxu0 0.0
    %2981 = vmatpush1.msra.mxu0 0.0
    %2982 = vmatprep.subr.mxu0 0.0
    %2983 = vmatpush1.msra.mxu0 0.0
    %2984 = vmatprep.mubr.f32.mxu0 0.0
    %2985 = vmatmul.mubr.f32.gmra.mrb[0].mxu0 %v2915
    %v2986 = vpop.f32.mrb[0].mxu0
    %v2987 = vadd.f32 0.0, %v2986
    %v2988 = vpop.f32.mrb[0].mxu0
    %2989 = vmatprep.mubr.f32.mxu0 0.0
    %2990 = vmatmul.mubr.f32.gmra.mrb[0].mxu0 %v2918
    %v2991 = vpop.f32.mrb[0].mxu0
    %v2992 = vadd.f32 0.0, %v2991
    %v2993 = vpop.f32.mrb[0].mxu0
    %2994 = vdwg.mxu0
    %v2996 = vsel %vm2021, %v2900, 0
    %v2999 = vsel %vm2021, %v2901, 0
    %3001 = vmatprep.subr.mxu0 0.0
    %3002 = vmatpush1.msra.mxu0 %v1807
    %3003 = vmatprep.subr.mxu0 0.0
    %3004 = vmatpush1.msra.mxu0 %v1875
    %3005 = vmatprep.subr.mxu0 0.0
    %3006 = vmatpush1.msra.mxu0 0.0
    %3007 = vmatprep.subr.mxu0 0.0
    %3008 = vmatpush1.msra.mxu0 0.0
    %3009 = vmatprep.subr.mxu0 0.0
    %3010 = vmatpush1.msra.mxu0 0.0
    %3011 = vmatprep.subr.mxu0 0.0
    %3012 = vmatpush1.msra.mxu0 0.0
    %3013 = vmatprep.subr.mxu0 0.0
    %3014 = vmatpush1.msra.mxu0 0.0
    %3015 = vmatprep.subr.mxu0 0.0
    %3016 = vmatpush1.msra.mxu0 0.0
    %3017 = vmatprep.subr.mxu0 0.0
    %3018 = vmatpush1.msra.mxu0 0.0
    %3019 = vmatprep.subr.mxu0 0.0
    %3020 = vmatpush1.msra.mxu0 0.0
    %3021 = vmatprep.subr.mxu0 0.0
    %3022 = vmatpush1.msra.mxu0 0.0
    %3023 = vmatprep.subr.mxu0 0.0
    %3024 = vmatpush1.msra.mxu0 0.0
    %3025 = vmatprep.subr.mxu0 0.0
    %3026 = vmatpush1.msra.mxu0 0.0
    %3027 = vmatprep.subr.mxu0 0.0
    %3028 = vmatpush1.msra.mxu0 0.0
    %3029 = vmatprep.subr.mxu0 0.0
    %3030 = vmatpush1.msra.mxu0 0.0
    %3031 = vmatprep.subr.mxu0 0.0
    %3032 = vmatpush1.msra.mxu0 0.0
    %3033 = vmatprep.subr.mxu0 0.0
    %3034 = vmatpush1.msra.mxu0 0.0
    %3035 = vmatprep.subr.mxu0 0.0
    %3036 = vmatpush1.msra.mxu0 0.0
    %3037 = vmatprep.subr.mxu0 0.0
    %3038 = vmatpush1.msra.mxu0 0.0
    %3039 = vmatprep.subr.mxu0 0.0
    %3040 = vmatpush1.msra.mxu0 0.0
    %3041 = vmatprep.subr.mxu0 0.0
    %3042 = vmatpush1.msra.mxu0 0.0
    %3043 = vmatprep.subr.mxu0 0.0
    %3044 = vmatpush1.msra.mxu0 0.0
    %3045 = vmatprep.subr.mxu0 0.0
    %3046 = vmatpush1.msra.mxu0 0.0
    %3047 = vmatprep.subr.mxu0 0.0
    %3048 = vmatpush1.msra.mxu0 0.0
    %3049 = vmatprep.subr.mxu0 0.0
    %3050 = vmatpush1.msra.mxu0 0.0
    %3051 = vmatprep.subr.mxu0 0.0
    %3052 = vmatpush1.msra.mxu0 0.0
    %3053 = vmatprep.subr.mxu0 0.0
    %3054 = vmatpush1.msra.mxu0 0.0
    %3055 = vmatprep.subr.mxu0 0.0
    %3056 = vmatpush1.msra.mxu0 0.0
    %3057 = vmatprep.subr.mxu0 0.0
    %3058 = vmatpush1.msra.mxu0 0.0
    %3059 = vmatprep.subr.mxu0 0.0
    %3060 = vmatpush1.msra.mxu0 0.0
    %3061 = vmatprep.subr.mxu0 0.0
    %3062 = vmatpush1.msra.mxu0 0.0
    %3063 = vmatprep.subr.mxu0 0.0
    %3064 = vmatpush1.msra.mxu0 0.0
    %3065 = vmatprep.mubr.f32.mxu0 0.0
    %3066 = vmatmul.mubr.f32.gmra.mrb[0].mxu0 %v2996
    %v3067 = vpop.f32.mrb[0].mxu0
    %v3068 = vadd.f32 0.0, %v3067
    %v3069 = vpop.f32.mrb[0].mxu0
    %3070 = vmatprep.mubr.f32.mxu0 0.0
    %3071 = vmatmul.mubr.f32.gmra.mrb[0].mxu0 %v2999
    %v3072 = vpop.f32.mrb[0].mxu0
    %v3073 = vadd.f32 0.0, %v3072
    %v3074 = vpop.f32.mrb[0].mxu0
    %3075 = vdwg.mxu0
    %v3077 = vsel %vm2021, %v2902, 0
    %v3080 = vsel %vm2021, %v2903, 0
    %3082 = vmatprep.subr.mxu0 0.0
    %3083 = vmatpush1.msra.mxu0 %v1808
    %3084 = vmatprep.subr.mxu0 0.0
    %3085 = vmatpush1.msra.mxu0 %v1876
    %3086 = vmatprep.subr.mxu0 0.0
    %3087 = vmatpush1.msra.mxu0 0.0
    %3088 = vmatprep.subr.mxu0 0.0
    %3089 = vmatpush1.msra.mxu0 0.0
    %3090 = vmatprep.subr.mxu0 0.0
    %3091 = vmatpush1.msra.mxu0 0.0
    %3092 = vmatprep.subr.mxu0 0.0
    %3093 = vmatpush1.msra.mxu0 0.0
    %3094 = vmatprep.subr.mxu0 0.0
    %3095 = vmatpush1.msra.mxu0 0.0
    %3096 = vmatprep.subr.mxu0 0.0
    %3097 = vmatpush1.msra.mxu0 0.0
    %3098 = vmatprep.subr.mxu0 0.0
    %3099 = vmatpush1.msra.mxu0 0.0
    %3100 = vmatprep.subr.mxu0 0.0
    %3101 = vmatpush1.msra.mxu0 0.0
    %3102 = vmatprep.subr.mxu0 0.0
    %3103 = vmatpush1.msra.mxu0 0.0
    %3104 = vmatprep.subr.mxu0 0.0
    %3105 = vmatpush1.msra.mxu0 0.0
    %3106 = vmatprep.subr.mxu0 0.0
    %3107 = vmatpush1.msra.mxu0 0.0
    %3108 = vmatprep.subr.mxu0 0.0
    %3109 = vmatpush1.msra.mxu0 0.0
    %3110 = vmatprep.subr.mxu0 0.0
    %3111 = vmatpush1.msra.mxu0 0.0
    %3112 = vmatprep.subr.mxu0 0.0
    %3113 = vmatpush1.msra.mxu0 0.0
    %3114 = vmatprep.subr.mxu0 0.0
    %3115 = vmatpush1.msra.mxu0 0.0
    %3116 = vmatprep.subr.mxu0 0.0
    %3117 = vmatpush1.msra.mxu0 0.0
    %3118 = vmatprep.subr.mxu0 0.0
    %3119 = vmatpush1.msra.mxu0 0.0
    %3120 = vmatprep.subr.mxu0 0.0
    %3121 = vmatpush1.msra.mxu0 0.0
    %3122 = vmatprep.subr.mxu0 0.0
    %3123 = vmatpush1.msra.mxu0 0.0
    %3124 = vmatprep.subr.mxu0 0.0
    %3125 = vmatpush1.msra.mxu0 0.0
    %3126 = vmatprep.subr.mxu0 0.0
    %3127 = vmatpush1.msra.mxu0 0.0
    %3128 = vmatprep.subr.mxu0 0.0
    %3129 = vmatpush1.msra.mxu0 0.0
    %3130 = vmatprep.subr.mxu0 0.0
    %3131 = vmatpush1.msra.mxu0 0.0
    %3132 = vmatprep.subr.mxu0 0.0
    %3133 = vmatpush1.msra.mxu0 0.0
    %3134 = vmatprep.subr.mxu0 0.0
    %3135 = vmatpush1.msra.mxu0 0.0
    %3136 = vmatprep.subr.mxu0 0.0
    %3137 = vmatpush1.msra.mxu0 0.0
    %3138 = vmatprep.subr.mxu0 0.0
    %3139 = vmatpush1.msra.mxu0 0.0
    %3140 = vmatprep.subr.mxu0 0.0
    %3141 = vmatpush1.msra.mxu0 0.0
    %3142 = vmatprep.subr.mxu0 0.0
    %3143 = vmatpush1.msra.mxu0 0.0
    %3144 = vmatprep.subr.mxu0 0.0
    %3145 = vmatpush1.msra.mxu0 0.0
    %3146 = vmatprep.mubr.f32.mxu0 0.0
    %3147 = vmatmul.mubr.f32.gmra.mrb[0].mxu0 %v3077
    %v3148 = vpop.f32.mrb[0].mxu0
    %v3149 = vadd.f32 0.0, %v3148
    %v3150 = vpop.f32.mrb[0].mxu0
    %3151 = vmatprep.mubr.f32.mxu0 0.0
    %3152 = vmatmul.mubr.f32.gmra.mrb[0].mxu0 %v3080
    %v3153 = vpop.f32.mrb[0].mxu0
    %v3154 = vadd.f32 0.0, %v3153
    %v3155 = vpop.f32.mrb[0].mxu0
    %3156 = vdwg.mxu0
    %v3158 = vsel %vm2021, %v2904, 0
    %v3161 = vsel %vm2021, %v2905, 0
    %3163 = vmatprep.subr.mxu0 0.0
    %3164 = vmatpush1.msra.mxu0 %v1809
    %3165 = vmatprep.subr.mxu0 0.0
    %3166 = vmatpush1.msra.mxu0 %v1877
    %3167 = vmatprep.subr.mxu0 0.0
    %3168 = vmatpush1.msra.mxu0 0.0
    %3169 = vmatprep.subr.mxu0 0.0
    %3170 = vmatpush1.msra.mxu0 0.0
    %3171 = vmatprep.subr.mxu0 0.0
    %3172 = vmatpush1.msra.mxu0 0.0
    %3173 = vmatprep.subr.mxu0 0.0
    %3174 = vmatpush1.msra.mxu0 0.0
    %3175 = vmatprep.subr.mxu0 0.0
    %3176 = vmatpush1.msra.mxu0 0.0
    %3177 = vmatprep.subr.mxu0 0.0
    %3178 = vmatpush1.msra.mxu0 0.0
    %3179 = vmatprep.subr.mxu0 0.0
    %3180 = vmatpush1.msra.mxu0 0.0
    %3181 = vmatprep.subr.mxu0 0.0
    %3182 = vmatpush1.msra.mxu0 0.0
    %3183 = vmatprep.subr.mxu0 0.0
    %3184 = vmatpush1.msra.mxu0 0.0
    %3185 = vmatprep.subr.mxu0 0.0
    %3186 = vmatpush1.msra.mxu0 0.0
    %3187 = vmatprep.subr.mxu0 0.0
    %3188 = vmatpush1.msra.mxu0 0.0
    %3189 = vmatprep.subr.mxu0 0.0
    %3190 = vmatpush1.msra.mxu0 0.0
    %3191 = vmatprep.subr.mxu0 0.0
    %3192 = vmatpush1.msra.mxu0 0.0
    %3193 = vmatprep.subr.mxu0 0.0
    %3194 = vmatpush1.msra.mxu0 0.0
    %3195 = vmatprep.subr.mxu0 0.0
    %3196 = vmatpush1.msra.mxu0 0.0
    %3197 = vmatprep.subr.mxu0 0.0
    %3198 = vmatpush1.msra.mxu0 0.0
    %3199 = vmatprep.subr.mxu0 0.0
    %3200 = vmatpush1.msra.mxu0 0.0
    %3201 = vmatprep.subr.mxu0 0.0
    %3202 = vmatpush1.msra.mxu0 0.0
    %3203 = vmatprep.subr.mxu0 0.0
    %3204 = vmatpush1.msra.mxu0 0.0
    %3205 = vmatprep.subr.mxu0 0.0
    %3206 = vmatpush1.msra.mxu0 0.0
    %3207 = vmatprep.subr.mxu0 0.0
    %3208 = vmatpush1.msra.mxu0 0.0
    %3209 = vmatprep.subr.mxu0 0.0
    %3210 = vmatpush1.msra.mxu0 0.0
    %3211 = vmatprep.subr.mxu0 0.0
    %3212 = vmatpush1.msra.mxu0 0.0
    %3213 = vmatprep.subr.mxu0 0.0
    %3214 = vmatpush1.msra.mxu0 0.0
    %3215 = vmatprep.subr.mxu0 0.0
    %3216 = vmatpush1.msra.mxu0 0.0
    %3217 = vmatprep.subr.mxu0 0.0
    %3218 = vmatpush1.msra.mxu0 0.0
    %3219 = vmatprep.subr.mxu0 0.0
    %3220 = vmatpush1.msra.mxu0 0.0
    %3221 = vmatprep.subr.mxu0 0.0
    %3222 = vmatpush1.msra.mxu0 0.0
    %3223 = vmatprep.subr.mxu0 0.0
    %3224 = vmatpush1.msra.mxu0 0.0
    %3225 = vmatprep.subr.mxu0 0.0
    %3226 = vmatpush1.msra.mxu0 0.0
    %3227 = vmatprep.mubr.f32.mxu0 0.0
    %3228 = vmatmul.mubr.f32.gmra.mrb[0].mxu0 %v3158
    %v3229 = vpop.f32.mrb[0].mxu0
    %v3230 = vadd.f32 0.0, %v3229
    %v3231 = vpop.f32.mrb[0].mxu0
    %3232 = vmatprep.mubr.f32.mxu0 0.0
    %3233 = vmatmul.mubr.f32.gmra.mrb[0].mxu0 %v3161
    %v3234 = vpop.f32.mrb[0].mxu0
    %v3235 = vadd.f32 0.0, %v3234
    %v3236 = vpop.f32.mrb[0].mxu0
    %3237 = vdwg.mxu0
    %v3239 = vsel %vm2021, %v2906, 0
    %v3242 = vsel %vm2021, %v2907, 0
    %3244 = vmatprep.subr.mxu0 0.0
    %3245 = vmatpush1.msra.mxu0 %v1942
    %3246 = vmatprep.subr.mxu0 0.0
    %3247 = vmatpush1.msra.mxu0 %v2010
    %3248 = vmatprep.subr.mxu0 0.0
    %3249 = vmatpush1.msra.mxu0 0.0
    %3250 = vmatprep.subr.mxu0 0.0
    %3251 = vmatpush1.msra.mxu0 0.0
    %3252 = vmatprep.subr.mxu0 0.0
    %3253 = vmatpush1.msra.mxu0 0.0
    %3254 = vmatprep.subr.mxu0 0.0
    %3255 = vmatpush1.msra.mxu0 0.0
    %3256 = vmatprep.subr.mxu0 0.0
    %3257 = vmatpush1.msra.mxu0 0.0
    %3258 = vmatprep.subr.mxu0 0.0
    %3259 = vmatpush1.msra.mxu0 0.0
    %3260 = vmatprep.subr.mxu0 0.0
    %3261 = vmatpush1.msra.mxu0 0.0
    %3262 = vmatprep.subr.mxu0 0.0
    %3263 = vmatpush1.msra.mxu0 0.0
    %3264 = vmatprep.subr.mxu0 0.0
    %3265 = vmatpush1.msra.mxu0 0.0
    %3266 = vmatprep.subr.mxu0 0.0
    %3267 = vmatpush1.msra.mxu0 0.0
    %3268 = vmatprep.subr.mxu0 0.0
    %3269 = vmatpush1.msra.mxu0 0.0
    %3270 = vmatprep.subr.mxu0 0.0
    %3271 = vmatpush1.msra.mxu0 0.0
    %3272 = vmatprep.subr.mxu0 0.0
    %3273 = vmatpush1.msra.mxu0 0.0
    %3274 = vmatprep.subr.mxu0 0.0
    %3275 = vmatpush1.msra.mxu0 0.0
    %3276 = vmatprep.subr.mxu0 0.0
    %3277 = vmatpush1.msra.mxu0 0.0
    %3278 = vmatprep.subr.mxu0 0.0
    %3279 = vmatpush1.msra.mxu0 0.0
    %3280 = vmatprep.subr.mxu0 0.0
    %3281 = vmatpush1.msra.mxu0 0.0
    %3282 = vmatprep.subr.mxu0 0.0
    %3283 = vmatpush1.msra.mxu0 0.0
    %3284 = vmatprep.subr.mxu0 0.0
    %3285 = vmatpush1.msra.mxu0 0.0
    %3286 = vmatprep.subr.mxu0 0.0
    %3287 = vmatpush1.msra.mxu0 0.0
    %3288 = vmatprep.subr.mxu0 0.0
    %3289 = vmatpush1.msra.mxu0 0.0
    %3290 = vmatprep.subr.mxu0 0.0
    %3291 = vmatpush1.msra.mxu0 0.0
    %3292 = vmatprep.subr.mxu0 0.0
    %3293 = vmatpush1.msra.mxu0 0.0
    %3294 = vmatprep.subr.mxu0 0.0
    %3295 = vmatpush1.msra.mxu0 0.0
    %3296 = vmatprep.subr.mxu0 0.0
    %3297 = vmatpush1.msra.mxu0 0.0
    %3298 = vmatprep.subr.mxu0 0.0
    %3299 = vmatpush1.msra.mxu0 0.0
    %3300 = vmatprep.subr.mxu0 0.0
    %3301 = vmatpush1.msra.mxu0 0.0
    %3302 = vmatprep.subr.mxu0 0.0
    %3303 = vmatpush1.msra.mxu0 0.0
    %3304 = vmatprep.subr.mxu0 0.0
    %3305 = vmatpush1.msra.mxu0 0.0
    %3306 = vmatprep.subr.mxu0 0.0
    %3307 = vmatpush1.msra.mxu0 0.0
    %3308 = vmatprep.mubr.f32.mxu0 0.0
    %3309 = vmatmul.mubr.f32.gmra.mrb[0].mxu0 %v3239
    %v3310 = vpop.f32.mrb[0].mxu0
    %v3311 = vadd.f32 0.0, %v3310
    %v3312 = vpop.f32.mrb[0].mxu0
    %3313 = vmatprep.mubr.f32.mxu0 0.0
    %3314 = vmatmul.mubr.f32.gmra.mrb[0].mxu0 %v3242
    %v3315 = vpop.f32.mrb[0].mxu0
    %v3316 = vadd.f32 0.0, %v3315
    %v3317 = vpop.f32.mrb[0].mxu0
    %3318 = vdwg.mxu0
    %v3320 = vsel %vm2021, %v2908, 0
    %v3323 = vsel %vm2021, %v2909, 0
    %3325 = vmatprep.subr.mxu0 0.0
    %3326 = vmatpush1.msra.mxu0 %v1943
    %3327 = vmatprep.subr.mxu0 0.0
    %3328 = vmatpush1.msra.mxu0 %v2011
    %3329 = vmatprep.subr.mxu0 0.0
    %3330 = vmatpush1.msra.mxu0 0.0
    %3331 = vmatprep.subr.mxu0 0.0
    %3332 = vmatpush1.msra.mxu0 0.0
    %3333 = vmatprep.subr.mxu0 0.0
    %3334 = vmatpush1.msra.mxu0 0.0
    %3335 = vmatprep.subr.mxu0 0.0
    %3336 = vmatpush1.msra.mxu0 0.0
    %3337 = vmatprep.subr.mxu0 0.0
    %3338 = vmatpush1.msra.mxu0 0.0
    %3339 = vmatprep.subr.mxu0 0.0
    %3340 = vmatpush1.msra.mxu0 0.0
    %3341 = vmatprep.subr.mxu0 0.0
    %3342 = vmatpush1.msra.mxu0 0.0
    %3343 = vmatprep.subr.mxu0 0.0
    %3344 = vmatpush1.msra.mxu0 0.0
    %3345 = vmatprep.subr.mxu0 0.0
    %3346 = vmatpush1.msra.mxu0 0.0
    %3347 = vmatprep.subr.mxu0 0.0
    %3348 = vmatpush1.msra.mxu0 0.0
    %3349 = vmatprep.subr.mxu0 0.0
    %3350 = vmatpush1.msra.mxu0 0.0
    %3351 = vmatprep.subr.mxu0 0.0
    %3352 = vmatpush1.msra.mxu0 0.0
    %3353 = vmatprep.subr.mxu0 0.0
    %3354 = vmatpush1.msra.mxu0 0.0
    %3355 = vmatprep.subr.mxu0 0.0
    %3356 = vmatpush1.msra.mxu0 0.0
    %3357 = vmatprep.subr.mxu0 0.0
    %3358 = vmatpush1.msra.mxu0 0.0
    %3359 = vmatprep.subr.mxu0 0.0
    %3360 = vmatpush1.msra.mxu0 0.0
    %3361 = vmatprep.subr.mxu0 0.0
    %3362 = vmatpush1.msra.mxu0 0.0
    %3363 = vmatprep.subr.mxu0 0.0
    %3364 = vmatpush1.msra.mxu0 0.0
    %3365 = vmatprep.subr.mxu0 0.0
    %3366 = vmatpush1.msra.mxu0 0.0
    %3367 = vmatprep.subr.mxu0 0.0
    %3368 = vmatpush1.msra.mxu0 0.0
    %3369 = vmatprep.subr.mxu0 0.0
    %3370 = vmatpush1.msra.mxu0 0.0
    %3371 = vmatprep.subr.mxu0 0.0
    %3372 = vmatpush1.msra.mxu0 0.0
    %3373 = vmatprep.subr.mxu0 0.0
    %3374 = vmatpush1.msra.mxu0 0.0
    %3375 = vmatprep.subr.mxu0 0.0
    %3376 = vmatpush1.msra.mxu0 0.0
    %3377 = vmatprep.subr.mxu0 0.0
    %3378 = vmatpush1.msra.mxu0 0.0
    %3379 = vmatprep.subr.mxu0 0.0
    %3380 = vmatpush1.msra.mxu0 0.0
    %3381 = vmatprep.subr.mxu0 0.0
    %3382 = vmatpush1.msra.mxu0 0.0
    %3383 = vmatprep.subr.mxu0 0.0
    %3384 = vmatpush1.msra.mxu0 0.0
    %3385 = vmatprep.subr.mxu0 0.0
    %3386 = vmatpush1.msra.mxu0 0.0
    %3387 = vmatprep.subr.mxu0 0.0
    %3388 = vmatpush1.msra.mxu0 0.0
    %3389 = vmatprep.mubr.f32.mxu0 0.0
    %3390 = vmatmul.mubr.f32.gmra.mrb[0].mxu0 %v3320
    %v3391 = vpop.f32.mrb[0].mxu0
    %v3392 = vadd.f32 0.0, %v3391
    %v3393 = vpop.f32.mrb[0].mxu0
    %3394 = vmatprep.mubr.f32.mxu0 0.0
    %3395 = vmatmul.mubr.f32.gmra.mrb[0].mxu0 %v3323
    %v3396 = vpop.f32.mrb[0].mxu0
    %v3397 = vadd.f32 0.0, %v3396
    %v3398 = vpop.f32.mrb[0].mxu0
    %3399 = vdwg.mxu0
    %v3401 = vsel %vm2021, %v2910, 0
    %v3404 = vsel %vm2021, %v2911, 0
    %3406 = vmatprep.subr.mxu0 0.0
    %3407 = vmatpush1.msra.mxu0 %v1944
    %3408 = vmatprep.subr.mxu0 0.0
    %3409 = vmatpush1.msra.mxu0 %v2012
    %3410 = vmatprep.subr.mxu0 0.0
    %3411 = vmatpush1.msra.mxu0 0.0
    %3412 = vmatprep.subr.mxu0 0.0
    %3413 = vmatpush1.msra.mxu0 0.0
    %3414 = vmatprep.subr.mxu0 0.0
    %3415 = vmatpush1.msra.mxu0 0.0
    %3416 = vmatprep.subr.mxu0 0.0
    %3417 = vmatpush1.msra.mxu0 0.0
    %3418 = vmatprep.subr.mxu0 0.0
    %3419 = vmatpush1.msra.mxu0 0.0
    %3420 = vmatprep.subr.mxu0 0.0
    %3421 = vmatpush1.msra.mxu0 0.0
    %3422 = vmatprep.subr.mxu0 0.0
    %3423 = vmatpush1.msra.mxu0 0.0
    %3424 = vmatprep.subr.mxu0 0.0
    %3425 = vmatpush1.msra.mxu0 0.0
    %3426 = vmatprep.subr.mxu0 0.0
    %3427 = vmatpush1.msra.mxu0 0.0
    %3428 = vmatprep.subr.mxu0 0.0
    %3429 = vmatpush1.msra.mxu0 0.0
    %3430 = vmatprep.subr.mxu0 0.0
    %3431 = vmatpush1.msra.mxu0 0.0
    %3432 = vmatprep.subr.mxu0 0.0
    %3433 = vmatpush1.msra.mxu0 0.0
    %3434 = vmatprep.subr.mxu0 0.0
    %3435 = vmatpush1.msra.mxu0 0.0
    %3436 = vmatprep.subr.mxu0 0.0
    %3437 = vmatpush1.msra.mxu0 0.0
    %3438 = vmatprep.subr.mxu0 0.0
    %3439 = vmatpush1.msra.mxu0 0.0
    %3440 = vmatprep.subr.mxu0 0.0
    %3441 = vmatpush1.msra.mxu0 0.0
    %3442 = vmatprep.subr.mxu0 0.0
    %3443 = vmatpush1.msra.mxu0 0.0
    %3444 = vmatprep.subr.mxu0 0.0
    %3445 = vmatpush1.msra.mxu0 0.0
    %3446 = vmatprep.subr.mxu0 0.0
    %3447 = vmatpush1.msra.mxu0 0.0
    %3448 = vmatprep.subr.mxu0 0.0
    %3449 = vmatpush1.msra.mxu0 0.0
    %3450 = vmatprep.subr.mxu0 0.0
    %3451 = vmatpush1.msra.mxu0 0.0
    %3452 = vmatprep.subr.mxu0 0.0
    %3453 = vmatpush1.msra.mxu0 0.0
    %3454 = vmatprep.subr.mxu0 0.0
    %3455 = vmatpush1.msra.mxu0 0.0
    %3456 = vmatprep.subr.mxu0 0.0
    %3457 = vmatpush1.msra.mxu0 0.0
    %3458 = vmatprep.subr.mxu0 0.0
    %3459 = vmatpush1.msra.mxu0 0.0
    %3460 = vmatprep.subr.mxu0 0.0
    %3461 = vmatpush1.msra.mxu0 0.0
    %3462 = vmatprep.subr.mxu0 0.0
    %3463 = vmatpush1.msra.mxu0 0.0
    %3464 = vmatprep.subr.mxu0 0.0
    %3465 = vmatpush1.msra.mxu0 0.0
    %3466 = vmatprep.subr.mxu0 0.0
    %3467 = vmatpush1.msra.mxu0 0.0
    %3468 = vmatprep.subr.mxu0 0.0
    %3469 = vmatpush1.msra.mxu0 0.0
    %3470 = vmatprep.mubr.f32.mxu0 0.0
    %3471 = vmatmul.mubr.f32.gmra.mrb[0].mxu0 %v3401
    %v3472 = vpop.f32.mrb[0].mxu0
    %v3473 = vadd.f32 0.0, %v3472
    %v3474 = vpop.f32.mrb[0].mxu0
    %3475 = vmatprep.mubr.f32.mxu0 0.0
    %3476 = vmatmul.mubr.f32.gmra.mrb[0].mxu0 %v3404
    %v3477 = vpop.f32.mrb[0].mxu0
    %v3478 = vadd.f32 0.0, %v3477
    %v3479 = vpop.f32.mrb[0].mxu0
    %3480 = vdwg.mxu0
    %v3482 = vsel %vm2021, %v2912, 0
    %v3485 = vsel %vm2021, %v2913, 0
    %3487 = vmatprep.subr.mxu0 0.0
    %3488 = vmatpush1.msra.mxu0 %v1945
    %3489 = vmatprep.subr.mxu0 0.0
    %3490 = vmatpush1.msra.mxu0 %v2013
    %3491 = vmatprep.subr.mxu0 0.0
    %3492 = vmatpush1.msra.mxu0 0.0
    %3493 = vmatprep.subr.mxu0 0.0
    %3494 = vmatpush1.msra.mxu0 0.0
    %3495 = vmatprep.subr.mxu0 0.0
    %3496 = vmatpush1.msra.mxu0 0.0
    %3497 = vmatprep.subr.mxu0 0.0
    %3498 = vmatpush1.msra.mxu0 0.0
    %3499 = vmatprep.subr.mxu0 0.0
    %3500 = vmatpush1.msra.mxu0 0.0
    %3501 = vmatprep.subr.mxu0 0.0
    %3502 = vmatpush1.msra.mxu0 0.0
    %3503 = vmatprep.subr.mxu0 0.0
    %3504 = vmatpush1.msra.mxu0 0.0
    %3505 = vmatprep.subr.mxu0 0.0
    %3506 = vmatpush1.msra.mxu0 0.0
    %3507 = vmatprep.subr.mxu0 0.0
    %3508 = vmatpush1.msra.mxu0 0.0
    %3509 = vmatprep.subr.mxu0 0.0
    %3510 = vmatpush1.msra.mxu0 0.0
    %3511 = vmatprep.subr.mxu0 0.0
    %3512 = vmatpush1.msra.mxu0 0.0
    %3513 = vmatprep.subr.mxu0 0.0
    %3514 = vmatpush1.msra.mxu0 0.0
    %3515 = vmatprep.subr.mxu0 0.0
    %3516 = vmatpush1.msra.mxu0 0.0
    %3517 = vmatprep.subr.mxu0 0.0
    %3518 = vmatpush1.msra.mxu0 0.0
    %3519 = vmatprep.subr.mxu0 0.0
    %3520 = vmatpush1.msra.mxu0 0.0
    %3521 = vmatprep.subr.mxu0 0.0
    %3522 = vmatpush1.msra.mxu0 0.0
    %3523 = vmatprep.subr.mxu0 0.0
    %3524 = vmatpush1.msra.mxu0 0.0
    %3525 = vmatprep.subr.mxu0 0.0
    %3526 = vmatpush1.msra.mxu0 0.0
    %3527 = vmatprep.subr.mxu0 0.0
    %3528 = vmatpush1.msra.mxu0 0.0
    %3529 = vmatprep.subr.mxu0 0.0
    %3530 = vmatpush1.msra.mxu0 0.0
    %3531 = vmatprep.subr.mxu0 0.0
    %3532 = vmatpush1.msra.mxu0 0.0
    %3533 = vmatprep.subr.mxu0 0.0
    %3534 = vmatpush1.msra.mxu0 0.0
    %3535 = vmatprep.subr.mxu0 0.0
    %3536 = vmatpush1.msra.mxu0 0.0
    %3537 = vmatprep.subr.mxu0 0.0
    %3538 = vmatpush1.msra.mxu0 0.0
    %3539 = vmatprep.subr.mxu0 0.0
    %3540 = vmatpush1.msra.mxu0 0.0
    %3541 = vmatprep.subr.mxu0 0.0
    %3542 = vmatpush1.msra.mxu0 0.0
    %3543 = vmatprep.subr.mxu0 0.0
    %3544 = vmatpush1.msra.mxu0 0.0
    %3545 = vmatprep.subr.mxu0 0.0
    %3546 = vmatpush1.msra.mxu0 0.0
    %3547 = vmatprep.subr.mxu0 0.0
    %3548 = vmatpush1.msra.mxu0 0.0
    %3549 = vmatprep.subr.mxu0 0.0
    %3550 = vmatpush1.msra.mxu0 0.0
    %3551 = vmatprep.mubr.f32.mxu0 0.0
    %3552 = vmatmul.mubr.f32.gmra.mrb[0].mxu0 %v3482
    %v3553 = vpop.f32.mrb[0].mxu0
    %v3554 = vadd.f32 0.0, %v3553
    %v3555 = vpop.f32.mrb[0].mxu0
    %3556 = vmatprep.mubr.f32.mxu0 0.0
    %3557 = vmatmul.mubr.f32.gmra.mrb[0].mxu0 %v3485
    %v3558 = vpop.f32.mrb[0].mxu0
    %v3559 = vadd.f32 0.0, %v3558
    %v3560 = vpop.f32.mrb[0].mxu0
    %3561 = vdwg.mxu0
    %v3562 = vcombine.low %v2987, %v3149
    %v3563 = vcombine.high %v2987, %v3149
    %v3565 = vunpack.c.l.s4 1983009808
    %v3566 = vunpack.c.0.s8 %v3565
    %v3567 = vlaneseq
    %v3568 = vshrl.u32 %v3567, 7
    %v3569 = vsub.s32 %v3566, %v3568
    %v3570 = vrot.slane %v3562, %v3569
    %v3572 = vunpack.c.l.s4 1983009808
    %v3573 = vunpack.c.0.s8 %v3572
    %v3574 = vlaneseq
    %v3575 = vshrl.u32 %v3574, 7
    %v3576 = vsub.s32 %v3573, %v3575
    %v3577 = vrot.slane %v3563, %v3576
    %v3578 = vcombine.low %v3068, %v3230
    %v3579 = vcombine.high %v3068, %v3230
    %v3581 = vunpack.c.l.s4 1983009808
    %v3582 = vunpack.c.0.s8 %v3581
    %v3583 = vlaneseq
    %v3584 = vshrl.u32 %v3583, 7
    %v3585 = vsub.s32 %v3582, %v3584
    %v3586 = vrot.slane %v3578, %v3585
    %v3588 = vunpack.c.l.s4 1983009808
    %v3589 = vunpack.c.0.s8 %v3588
    %v3590 = vlaneseq
    %v3591 = vshrl.u32 %v3590, 7
    %v3592 = vsub.s32 %v3589, %v3591
    %v3593 = vrot.slane %v3579, %v3592
    %v3594 = vcombine.low %v3570, %v3586
    %v3595 = vcombine.high %v3570, %v3586
    %v3597 = vunpack.c.l.s4 1934713408
    %v3598 = vunpack.c.0.s8 %v3597
    %v3599 = vlaneseq
    %v3600 = vshrl.u32 %v3599, 7
    %v3601 = vsub.s32 %v3598, %v3600
    %v3602 = vrot.slane %v3594, %v3601
    %v3604 = vunpack.c.l.s4 1934713408
    %v3605 = vunpack.c.0.s8 %v3604
    %v3606 = vlaneseq
    %v3607 = vshrl.u32 %v3606, 7
    %v3608 = vsub.s32 %v3605, %v3607
    %v3609 = vrot.slane %v3595, %v3608
    %v3610 = vcombine.low %v3577, %v3593
    %v3611 = vcombine.high %v3577, %v3593
    %v3613 = vunpack.c.l.s4 1934713408
    %v3614 = vunpack.c.0.s8 %v3613
    %v3615 = vlaneseq
    %v3616 = vshrl.u32 %v3615, 7
    %v3617 = vsub.s32 %v3614, %v3616
    %v3618 = vrot.slane %v3610, %v3617
    %v3620 = vunpack.c.l.s4 1934713408
    %v3621 = vunpack.c.0.s8 %v3620
    %v3622 = vlaneseq
    %v3623 = vshrl.u32 %v3622, 7
    %v3624 = vsub.s32 %v3621, %v3623
    %v3625 = vrot.slane %v3611, %v3624
    %v3626 = vcombine.high %v3602, 0.0
    %v3627 = vcombine.high %v3609, 0.0
    %v3628 = vcombine.high %v3618, 0.0
    %v3629 = vcombine.high %v3625, 0.0
    %v3630 = vcombine.low %v2992, %v3154
    %v3631 = vcombine.high %v2992, %v3154
    %v3633 = vunpack.c.l.s4 1983009808
    %v3634 = vunpack.c.0.s8 %v3633
    %v3635 = vlaneseq
    %v3636 = vshrl.u32 %v3635, 7
    %v3637 = vsub.s32 %v3634, %v3636
    %v3638 = vrot.slane %v3630, %v3637
    %v3640 = vunpack.c.l.s4 1983009808
    %v3641 = vunpack.c.0.s8 %v3640
    %v3642 = vlaneseq
    %v3643 = vshrl.u32 %v3642, 7
    %v3644 = vsub.s32 %v3641, %v3643
    %v3645 = vrot.slane %v3631, %v3644
    %v3646 = vcombine.low %v3073, %v3235
    %v3647 = vcombine.high %v3073, %v3235
    %v3649 = vunpack.c.l.s4 1983009808
    %v3650 = vunpack.c.0.s8 %v3649
    %v3651 = vlaneseq
    %v3652 = vshrl.u32 %v3651, 7
    %v3653 = vsub.s32 %v3650, %v3652
    %v3654 = vrot.slane %v3646, %v3653
    %v3656 = vunpack.c.l.s4 1983009808
    %v3657 = vunpack.c.0.s8 %v3656
    %v3658 = vlaneseq
    %v3659 = vshrl.u32 %v3658, 7
    %v3660 = vsub.s32 %v3657, %v3659
    %v3661 = vrot.slane %v3647, %v3660
    %v3662 = vcombine.low %v3638, %v3654
    %v3663 = vcombine.high %v3638, %v3654
    %v3665 = vunpack.c.l.s4 1934713408
    %v3666 = vunpack.c.0.s8 %v3665
    %v3667 = vlaneseq
    %v3668 = vshrl.u32 %v3667, 7
    %v3669 = vsub.s32 %v3666, %v3668
    %v3670 = vrot.slane %v3662, %v3669
    %v3672 = vunpack.c.l.s4 1934713408
    %v3673 = vunpack.c.0.s8 %v3672
    %v3674 = vlaneseq
    %v3675 = vshrl.u32 %v3674, 7
    %v3676 = vsub.s32 %v3673, %v3675
    %v3677 = vrot.slane %v3663, %v3676
    %v3678 = vcombine.low %v3645, %v3661
    %v3679 = vcombine.high %v3645, %v3661
    %v3681 = vunpack.c.l.s4 1934713408
    %v3682 = vunpack.c.0.s8 %v3681
    %v3683 = vlaneseq
    %v3684 = vshrl.u32 %v3683, 7
    %v3685 = vsub.s32 %v3682, %v3684
    %v3686 = vrot.slane %v3678, %v3685
    %v3688 = vunpack.c.l.s4 1934713408
    %v3689 = vunpack.c.0.s8 %v3688
    %v3690 = vlaneseq
    %v3691 = vshrl.u32 %v3690, 7
    %v3692 = vsub.s32 %v3689, %v3691
    %v3693 = vrot.slane %v3679, %v3692
    %v3694 = vcombine.high %v3670, 0.0
    %v3695 = vcombine.high %v3677, 0.0
    %v3696 = vcombine.high %v3686, 0.0
    %v3697 = vcombine.high %v3693, 0.0
    %v3698 = vcombine.low %v3311, %v3473
    %v3699 = vcombine.high %v3311, %v3473
    %v3701 = vunpack.c.l.s4 1983009808
    %v3702 = vunpack.c.0.s8 %v3701
    %v3703 = vlaneseq
    %v3704 = vshrl.u32 %v3703, 7
    %v3705 = vsub.s32 %v3702, %v3704
    %v3706 = vrot.slane %v3698, %v3705
    %v3708 = vunpack.c.l.s4 1983009808
    %v3709 = vunpack.c.0.s8 %v3708
    %v3710 = vlaneseq
    %v3711 = vshrl.u32 %v3710, 7
    %v3712 = vsub.s32 %v3709, %v3711
    %v3713 = vrot.slane %v3699, %v3712
    %v3714 = vcombine.low %v3392, %v3554
    %v3715 = vcombine.high %v3392, %v3554
    %v3717 = vunpack.c.l.s4 1983009808
    %v3718 = vunpack.c.0.s8 %v3717
    %v3719 = vlaneseq
    %v3720 = vshrl.u32 %v3719, 7
    %v3721 = vsub.s32 %v3718, %v3720
    %v3722 = vrot.slane %v3714, %v3721
    %v3724 = vunpack.c.l.s4 1983009808
    %v3725 = vunpack.c.0.s8 %v3724
    %v3726 = vlaneseq
    %v3727 = vshrl.u32 %v3726, 7
    %v3728 = vsub.s32 %v3725, %v3727
    %v3729 = vrot.slane %v3715, %v3728
    %v3730 = vcombine.low %v3706, %v3722
    %v3731 = vcombine.high %v3706, %v3722
    %v3733 = vunpack.c.l.s4 1934713408
    %v3734 = vunpack.c.0.s8 %v3733
    %v3735 = vlaneseq
    %v3736 = vshrl.u32 %v3735, 7
    %v3737 = vsub.s32 %v3734, %v3736
    %v3738 = vrot.slane %v3730, %v3737
    %v3740 = vunpack.c.l.s4 1934713408
    %v3741 = vunpack.c.0.s8 %v3740
    %v3742 = vlaneseq
    %v3743 = vshrl.u32 %v3742, 7
    %v3744 = vsub.s32 %v3741, %v3743
    %v3745 = vrot.slane %v3731, %v3744
    %v3746 = vcombine.low %v3713, %v3729
    %v3747 = vcombine.high %v3713, %v3729
    %v3749 = vunpack.c.l.s4 1934713408
    %v3750 = vunpack.c.0.s8 %v3749
    %v3751 = vlaneseq
    %v3752 = vshrl.u32 %v3751, 7
    %v3753 = vsub.s32 %v3750, %v3752
    %v3754 = vrot.slane %v3746, %v3753
    %v3756 = vunpack.c.l.s4 1934713408
    %v3757 = vunpack.c.0.s8 %v3756
    %v3758 = vlaneseq
    %v3759 = vshrl.u32 %v3758, 7
    %v3760 = vsub.s32 %v3757, %v3759
    %v3761 = vrot.slane %v3747, %v3760
    %v3762 = vcombine.high %v3738, 0.0
    %v3763 = vcombine.high %v3745, 0.0
    %v3764 = vcombine.high %v3754, 0.0
    %v3765 = vcombine.high %v3761, 0.0
    %v3766 = vcombine.low %v3316, %v3478
    %v3767 = vcombine.high %v3316, %v3478
    %v3769 = vunpack.c.l.s4 1983009808
    %v3770 = vunpack.c.0.s8 %v3769
    %v3771 = vlaneseq
    %v3772 = vshrl.u32 %v3771, 7
    %v3773 = vsub.s32 %v3770, %v3772
    %v3774 = vrot.slane %v3766, %v3773
    %v3776 = vunpack.c.l.s4 1983009808
    %v3777 = vunpack.c.0.s8 %v3776
    %v3778 = vlaneseq
    %v3779 = vshrl.u32 %v3778, 7
    %v3780 = vsub.s32 %v3777, %v3779
    %v3781 = vrot.slane %v3767, %v3780
    %v3782 = vcombine.low %v3397, %v3559
    %v3783 = vcombine.high %v3397, %v3559
    %v3785 = vunpack.c.l.s4 1983009808
    %v3786 = vunpack.c.0.s8 %v3785
    %v3787 = vlaneseq
    %v3788 = vshrl.u32 %v3787, 7
    %v3789 = vsub.s32 %v3786, %v3788
    %v3790 = vrot.slane %v3782, %v3789
    %v3792 = vunpack.c.l.s4 1983009808
    %v3793 = vunpack.c.0.s8 %v3792
    %v3794 = vlaneseq
    %v3795 = vshrl.u32 %v3794, 7
    %v3796 = vsub.s32 %v3793, %v3795
    %v3797 = vrot.slane %v3783, %v3796
    %v3798 = vcombine.low %v3774, %v3790
    %v3799 = vcombine.high %v3774, %v3790
    %v3801 = vunpack.c.l.s4 1934713408
    %v3802 = vunpack.c.0.s8 %v3801
    %v3803 = vlaneseq
    %v3804 = vshrl.u32 %v3803, 7
    %v3805 = vsub.s32 %v3802, %v3804
    %v3806 = vrot.slane %v3798, %v3805
    %v3808 = vunpack.c.l.s4 1934713408
    %v3809 = vunpack.c.0.s8 %v3808
    %v3810 = vlaneseq
    %v3811 = vshrl.u32 %v3810, 7
    %v3812 = vsub.s32 %v3809, %v3811
    %v3813 = vrot.slane %v3799, %v3812
    %v3814 = vcombine.low %v3781, %v3797
    %v3815 = vcombine.high %v3781, %v3797
    %v3817 = vunpack.c.l.s4 1934713408
    %v3818 = vunpack.c.0.s8 %v3817
    %v3819 = vlaneseq
    %v3820 = vshrl.u32 %v3819, 7
    %v3821 = vsub.s32 %v3818, %v3820
    %v3822 = vrot.slane %v3814, %v3821
    %v3824 = vunpack.c.l.s4 1934713408
    %v3825 = vunpack.c.0.s8 %v3824
    %v3826 = vlaneseq
    %v3827 = vshrl.u32 %v3826, 7
    %v3828 = vsub.s32 %v3825, %v3827
    %v3829 = vrot.slane %v3815, %v3828
    %v3830 = vcombine.high %v3806, 0.0
    %v3831 = vcombine.high %v3813, 0.0
    %v3832 = vcombine.high %v3822, 0.0
    %v3833 = vcombine.high %v3829, 0.0
    %v3834 = vcombine.low %v3602, %v3609
    %v3836 = vunpack.c.l.s4 1983009808
    %v3837 = vunpack.c.0.s8 %v3836
    %v3838 = vlaneseq
    %v3839 = vshrl.u32 %v3838, 7
    %v3840 = vsub.s32 %v3837, %v3839
    %v3841 = vrot.slane %v3834, %v3840
    %v3842 = vcombine.low %v3626, %v3627
    %v3844 = vunpack.c.l.s4 1983009808
    %v3845 = vunpack.c.0.s8 %v3844
    %v3846 = vlaneseq
    %v3847 = vshrl.u32 %v3846, 7
    %v3848 = vsub.s32 %v3845, %v3847
    %v3849 = vrot.slane %v3842, %v3848
    %v3850 = vcombine.low %v3618, %v3625
    %v3852 = vunpack.c.l.s4 1983009808
    %v3853 = vunpack.c.0.s8 %v3852
    %v3854 = vlaneseq
    %v3855 = vshrl.u32 %v3854, 7
    %v3856 = vsub.s32 %v3853, %v3855
    %v3857 = vrot.slane %v3850, %v3856
    %v3858 = vcombine.low %v3628, %v3629
    %v3860 = vunpack.c.l.s4 1983009808
    %v3861 = vunpack.c.0.s8 %v3860
    %v3862 = vlaneseq
    %v3863 = vshrl.u32 %v3862, 7
    %v3864 = vsub.s32 %v3861, %v3863
    %v3865 = vrot.slane %v3858, %v3864
    %v3866 = vcombine.low %v3841, %v3849
    %v3867 = vcombine.high %v3841, %v3849
    %v3869 = vunpack.c.l.s4 1934713408
    %v3870 = vunpack.c.0.s8 %v3869
    %v3871 = vlaneseq
    %v3872 = vshrl.u32 %v3871, 7
    %v3873 = vsub.s32 %v3870, %v3872
    %v3874 = vrot.slane %v3866, %v3873
    %v3876 = vunpack.c.l.s4 1934713408
    %v3877 = vunpack.c.0.s8 %v3876
    %v3878 = vlaneseq
    %v3879 = vshrl.u32 %v3878, 7
    %v3880 = vsub.s32 %v3877, %v3879
    %v3881 = vrot.slane %v3867, %v3880
    %v3882 = vcombine.low %v3857, %v3865
    %v3883 = vcombine.high %v3857, %v3865
    %v3885 = vunpack.c.l.s4 1934713408
    %v3886 = vunpack.c.0.s8 %v3885
    %v3887 = vlaneseq
    %v3888 = vshrl.u32 %v3887, 7
    %v3889 = vsub.s32 %v3886, %v3888
    %v3890 = vrot.slane %v3882, %v3889
    %v3892 = vunpack.c.l.s4 1934713408
    %v3893 = vunpack.c.0.s8 %v3892
    %v3894 = vlaneseq
    %v3895 = vshrl.u32 %v3894, 7
    %v3896 = vsub.s32 %v3893, %v3895
    %v3897 = vrot.slane %v3883, %v3896
    %v3898 = vcombine.low %v3874, %v3890
    %v3899 = vcombine.high %v3874, %v3890
    %v3900 = vcombine.low %v3881, %v3897
    %v3901 = vcombine.high %v3881, %v3897
    %v3902 = vcombine.low %v3670, %v3677
    %v3904 = vunpack.c.l.s4 1983009808
    %v3905 = vunpack.c.0.s8 %v3904
    %v3906 = vlaneseq
    %v3907 = vshrl.u32 %v3906, 7
    %v3908 = vsub.s32 %v3905, %v3907
    %v3909 = vrot.slane %v3902, %v3908
    %v3910 = vcombine.low %v3694, %v3695
    %v3912 = vunpack.c.l.s4 1983009808
    %v3913 = vunpack.c.0.s8 %v3912
    %v3914 = vlaneseq
    %v3915 = vshrl.u32 %v3914, 7
    %v3916 = vsub.s32 %v3913, %v3915
    %v3917 = vrot.slane %v3910, %v3916
    %v3918 = vcombine.low %v3686, %v3693
    %v3920 = vunpack.c.l.s4 1983009808
    %v3921 = vunpack.c.0.s8 %v3920
    %v3922 = vlaneseq
    %v3923 = vshrl.u32 %v3922, 7
    %v3924 = vsub.s32 %v3921, %v3923
    %v3925 = vrot.slane %v3918, %v3924
    %v3926 = vcombine.low %v3696, %v3697
    %v3928 = vunpack.c.l.s4 1983009808
    %v3929 = vunpack.c.0.s8 %v3928
    %v3930 = vlaneseq
    %v3931 = vshrl.u32 %v3930, 7
    %v3932 = vsub.s32 %v3929, %v3931
    %v3933 = vrot.slane %v3926, %v3932
    %v3934 = vcombine.low %v3909, %v3917
    %v3935 = vcombine.high %v3909, %v3917
    %v3937 = vunpack.c.l.s4 1934713408
    %v3938 = vunpack.c.0.s8 %v3937
    %v3939 = vlaneseq
    %v3940 = vshrl.u32 %v3939, 7
    %v3941 = vsub.s32 %v3938, %v3940
    %v3942 = vrot.slane %v3934, %v3941
    %v3944 = vunpack.c.l.s4 1934713408
    %v3945 = vunpack.c.0.s8 %v3944
    %v3946 = vlaneseq
    %v3947 = vshrl.u32 %v3946, 7
    %v3948 = vsub.s32 %v3945, %v3947
    %v3949 = vrot.slane %v3935, %v3948
    %v3950 = vcombine.low %v3925, %v3933
    %v3951 = vcombine.high %v3925, %v3933
    %v3953 = vunpack.c.l.s4 1934713408
    %v3954 = vunpack.c.0.s8 %v3953
    %v3955 = vlaneseq
    %v3956 = vshrl.u32 %v3955, 7
    %v3957 = vsub.s32 %v3954, %v3956
    %v3958 = vrot.slane %v3950, %v3957
    %v3960 = vunpack.c.l.s4 1934713408
    %v3961 = vunpack.c.0.s8 %v3960
    %v3962 = vlaneseq
    %v3963 = vshrl.u32 %v3962, 7
    %v3964 = vsub.s32 %v3961, %v3963
    %v3965 = vrot.slane %v3951, %v3964
    %v3966 = vcombine.low %v3942, %v3958
    %v3967 = vcombine.high %v3942, %v3958
    %v3968 = vcombine.low %v3949, %v3965
    %v3969 = vcombine.high %v3949, %v3965
    %v3970 = vcombine.low %v3738, %v3745
    %v3972 = vunpack.c.l.s4 1983009808
    %v3973 = vunpack.c.0.s8 %v3972
    %v3974 = vlaneseq
    %v3975 = vshrl.u32 %v3974, 7
    %v3976 = vsub.s32 %v3973, %v3975
    %v3977 = vrot.slane %v3970, %v3976
    %v3978 = vcombine.low %v3762, %v3763
    %v3980 = vunpack.c.l.s4 1983009808
    %v3981 = vunpack.c.0.s8 %v3980
    %v3982 = vlaneseq
    %v3983 = vshrl.u32 %v3982, 7
    %v3984 = vsub.s32 %v3981, %v3983
    %v3985 = vrot.slane %v3978, %v3984
    %v3986 = vcombine.low %v3754, %v3761
    %v3988 = vunpack.c.l.s4 1983009808
    %v3989 = vunpack.c.0.s8 %v3988
    %v3990 = vlaneseq
    %v3991 = vshrl.u32 %v3990, 7
    %v3992 = vsub.s32 %v3989, %v3991
    %v3993 = vrot.slane %v3986, %v3992
    %v3994 = vcombine.low %v3764, %v3765
    %v3996 = vunpack.c.l.s4 1983009808
    %v3997 = vunpack.c.0.s8 %v3996
    %v3998 = vlaneseq
    %v3999 = vshrl.u32 %v3998, 7
    %v4000 = vsub.s32 %v3997, %v3999
    %v4001 = vrot.slane %v3994, %v4000
    %v4002 = vcombine.low %v3977, %v3985
    %v4003 = vcombine.high %v3977, %v3985
    %v4005 = vunpack.c.l.s4 1934713408
    %v4006 = vunpack.c.0.s8 %v4005
    %v4007 = vlaneseq
    %v4008 = vshrl.u32 %v4007, 7
    %v4009 = vsub.s32 %v4006, %v4008
    %v4010 = vrot.slane %v4002, %v4009
    %v4012 = vunpack.c.l.s4 1934713408
    %v4013 = vunpack.c.0.s8 %v4012
    %v4014 = vlaneseq
    %v4015 = vshrl.u32 %v4014, 7
    %v4016 = vsub.s32 %v4013, %v4015
    %v4017 = vrot.slane %v4003, %v4016
    %v4018 = vcombine.low %v3993, %v4001
    %v4019 = vcombine.high %v3993, %v4001
    %v4021 = vunpack.c.l.s4 1934713408
    %v4022 = vunpack.c.0.s8 %v4021
    %v4023 = vlaneseq
    %v4024 = vshrl.u32 %v4023, 7
    %v4025 = vsub.s32 %v4022, %v4024
    %v4026 = vrot.slane %v4018, %v4025
    %v4028 = vunpack.c.l.s4 1934713408
    %v4029 = vunpack.c.0.s8 %v4028
    %v4030 = vlaneseq
    %v4031 = vshrl.u32 %v4030, 7
    %v4032 = vsub.s32 %v4029, %v4031
    %v4033 = vrot.slane %v4019, %v4032
    %v4034 = vcombine.low %v4010, %v4026
    %v4035 = vcombine.high %v4010, %v4026
    %v4036 = vcombine.low %v4017, %v4033
    %v4037 = vcombine.high %v4017, %v4033
    %v4038 = vcombine.low %v3806, %v3813
    %v4040 = vunpack.c.l.s4 1983009808
    %v4041 = vunpack.c.0.s8 %v4040
    %v4042 = vlaneseq
    %v4043 = vshrl.u32 %v4042, 7
    %v4044 = vsub.s32 %v4041, %v4043
    %v4045 = vrot.slane %v4038, %v4044
    %v4046 = vcombine.low %v3830, %v3831
    %v4048 = vunpack.c.l.s4 1983009808
    %v4049 = vunpack.c.0.s8 %v4048
    %v4050 = vlaneseq
    %v4051 = vshrl.u32 %v4050, 7
    %v4052 = vsub.s32 %v4049, %v4051
    %v4053 = vrot.slane %v4046, %v4052
    %v4054 = vcombine.low %v3822, %v3829
    %v4056 = vunpack.c.l.s4 1983009808
    %v4057 = vunpack.c.0.s8 %v4056
    %v4058 = vlaneseq
    %v4059 = vshrl.u32 %v4058, 7
    %v4060 = vsub.s32 %v4057, %v4059
    %v4061 = vrot.slane %v4054, %v4060
    %v4062 = vcombine.low %v3832, %v3833
    %v4064 = vunpack.c.l.s4 1983009808
    %v4065 = vunpack.c.0.s8 %v4064
    %v4066 = vlaneseq
    %v4067 = vshrl.u32 %v4066, 7
    %v4068 = vsub.s32 %v4065, %v4067
    %v4069 = vrot.slane %v4062, %v4068
    %v4070 = vcombine.low %v4045, %v4053
    %v4071 = vcombine.high %v4045, %v4053
    %v4073 = vunpack.c.l.s4 1934713408
    %v4074 = vunpack.c.0.s8 %v4073
    %v4075 = vlaneseq
    %v4076 = vshrl.u32 %v4075, 7
    %v4077 = vsub.s32 %v4074, %v4076
    %v4078 = vrot.slane %v4070, %v4077
    %v4080 = vunpack.c.l.s4 1934713408
    %v4081 = vunpack.c.0.s8 %v4080
    %v4082 = vlaneseq
    %v4083 = vshrl.u32 %v4082, 7
    %v4084 = vsub.s32 %v4081, %v4083
    %v4085 = vrot.slane %v4071, %v4084
    %v4086 = vcombine.low %v4061, %v4069
    %v4087 = vcombine.high %v4061, %v4069
    %v4089 = vunpack.c.l.s4 1934713408
    %v4090 = vunpack.c.0.s8 %v4089
    %v4091 = vlaneseq
    %v4092 = vshrl.u32 %v4091, 7
    %v4093 = vsub.s32 %v4090, %v4092
    %v4094 = vrot.slane %v4086, %v4093
    %v4096 = vunpack.c.l.s4 1934713408
    %v4097 = vunpack.c.0.s8 %v4096
    %v4098 = vlaneseq
    %v4099 = vshrl.u32 %v4098, 7
    %v4100 = vsub.s32 %v4097, %v4099
    %v4101 = vrot.slane %v4087, %v4100
    %v4102 = vcombine.low %v4078, %v4094
    %v4103 = vcombine.high %v4078, %v4094
    %v4104 = vcombine.low %v4085, %v4101
    %v4105 = vcombine.high %v4085, %v4101
    %4110 = vrot.lane.b32.xlu0 %v3899, 16
    %v4111 = vpop.permute.xlu0 %4110
    %4112 = vrot.lane.b32.xlu0 %v3967, 16
    %v4113 = vpop.permute.xlu0 %4112
    %4114 = vrot.lane.b32.xlu0 %v4035, 16
    %v4115 = vpop.permute.xlu0 %4114
    %4116 = vrot.lane.b32.xlu0 %v4103, 16
    %v4117 = vpop.permute.xlu0 %4116
    %4126 = vrot.lane.b32.xlu0 %v3900, 32
    %v4127 = vpop.permute.xlu0 %4126
    %4128 = vrot.lane.b32.xlu0 %v3968, 32
    %v4129 = vpop.permute.xlu0 %4128
    %4130 = vrot.lane.b32.xlu0 %v4036, 32
    %v4131 = vpop.permute.xlu0 %4130
    %4132 = vrot.lane.b32.xlu0 %v4104, 32
    %v4133 = vpop.permute.xlu0 %4132
    %4142 = vrot.lane.b32.xlu0 %v3901, 48
    %v4143 = vpop.permute.xlu0 %4142
    %4144 = vrot.lane.b32.xlu0 %v3969, 48
    %v4145 = vpop.permute.xlu0 %4144
    %4146 = vrot.lane.b32.xlu0 %v4037, 48
    %v4147 = vpop.permute.xlu0 %4146
    %4148 = vrot.lane.b32.xlu0 %v4105, 48
    %v4149 = vpop.permute.xlu0 %4148
    %v4154 = vsel %vm2021, %v3898, %v4111
    %v4155 = vsel %vm2021, %v3966, %v4113
    %v4156 = vsel %vm2021, %v4034, %v4115
    %v4157 = vsel %vm2021, %v4102, %v4117
    %vm4158 = vcmask 261120
    %v4159 = vsel %vm4158, %v4154, %v4127
    %v4160 = vsel %vm4158, %v4155, %v4129
    %v4161 = vsel %vm4158, %v4156, %v4131
    %v4162 = vsel %vm4158, %v4157, %v4133
    %vm4163 = vcmask 392192
    %v4164 = vsel %vm4163, %v4159, %v4143
    %v4165 = vsel %vm4163, %v4160, %v4145
    %v4166 = vsel %vm4163, %v4161, %v4147
    %v4167 = vsel %vm4163, %v4162, %v4149
    %v4168 = vld [vmem:[%s7] sm:$0xff]
    %v4169 = vld [vmem:[%s7 + $0x8] sm:$0xff]
    %v4170 = vld [vmem:[%s7 + $0x10] sm:$0xff]
    %v4171 = vld [vmem:[%s7 + $0x18] sm:$0xff]
    %v4172 = vld [vmem:[%s7 + $0x20] sm:$0xff]
    %v4173 = vld [vmem:[%s7 + $0x28] sm:$0xff]
    %v4174 = vld [vmem:[%s7 + $0x30] sm:$0xff]
    %v4175 = vld [vmem:[%s7 + $0x38] sm:$0xff]
    %v4176 = vld [vmem:[%s8] sm:$0x1]
    %v4178 = vlaneseq
    %v4179 = vshrl.u32 %v4178, 7
    %v4180 = vsub.s32 0, %v4179
    %v4181 = vrot.slane %v4176, %v4180
    %v4184 = vsel %vm51, %v4164, 0
    %v4187 = vsel %vm51, %v4165, 0
    %v4190 = vsel %vm51, %v4166, 0
    %v4193 = vsel %vm51, %v4167, 0
    %4195 = vmatprep.subr.mxu0 0.0
    %4196 = vmatpush1.msra.mxu0 %v4168
    %4197 = vmatprep.subr.mxu0 0.0
    %4198 = vmatpush1.msra.mxu0 %v4169
    %4199 = vmatprep.subr.mxu0 0.0
    %4200 = vmatpush1.msra.mxu0 %v4170
    %4201 = vmatprep.subr.mxu0 0.0
    %4202 = vmatpush1.msra.mxu0 %v4171
    %4203 = vmatprep.subr.mxu0 0.0
    %4204 = vmatpush1.msra.mxu0 %v4172
    %4205 = vmatprep.subr.mxu0 0.0
    %4206 = vmatpush1.msra.mxu0 %v4173
    %4207 = vmatprep.subr.mxu0 0.0
    %4208 = vmatpush1.msra.mxu0 %v4174
    %4209 = vmatprep.subr.mxu0 0.0
    %4210 = vmatpush1.msra.mxu0 %v4175
    %4211 = vmatprep.subr.mxu0 0.0
    %4212 = vmatpush1.msra.mxu0 0.0
    %4213 = vmatprep.subr.mxu0 0.0
    %4214 = vmatpush1.msra.mxu0 0.0
    %4215 = vmatprep.subr.mxu0 0.0
    %4216 = vmatpush1.msra.mxu0 0.0
    %4217 = vmatprep.subr.mxu0 0.0
    %4218 = vmatpush1.msra.mxu0 0.0
    %4219 = vmatprep.subr.mxu0 0.0
    %4220 = vmatpush1.msra.mxu0 0.0
    %4221 = vmatprep.subr.mxu0 0.0
    %4222 = vmatpush1.msra.mxu0 0.0
    %4223 = vmatprep.subr.mxu0 0.0
    %4224 = vmatpush1.msra.mxu0 0.0
    %4225 = vmatprep.subr.mxu0 0.0
    %4226 = vmatpush1.msra.mxu0 0.0
    %4227 = vmatprep.subr.mxu0 0.0
    %4228 = vmatpush1.msra.mxu0 0.0
    %4229 = vmatprep.subr.mxu0 0.0
    %4230 = vmatpush1.msra.mxu0 0.0
    %4231 = vmatprep.subr.mxu0 0.0
    %4232 = vmatpush1.msra.mxu0 0.0
    %4233 = vmatprep.subr.mxu0 0.0
    %4234 = vmatpush1.msra.mxu0 0.0
    %4235 = vmatprep.subr.mxu0 0.0
    %4236 = vmatpush1.msra.mxu0 0.0
    %4237 = vmatprep.subr.mxu0 0.0
    %4238 = vmatpush1.msra.mxu0 0.0
    %4239 = vmatprep.subr.mxu0 0.0
    %4240 = vmatpush1.msra.mxu0 0.0
    %4241 = vmatprep.subr.mxu0 0.0
    %4242 = vmatpush1.msra.mxu0 0.0
    %4243 = vmatprep.subr.mxu0 0.0
    %4244 = vmatpush1.msra.mxu0 0.0
    %4245 = vmatprep.subr.mxu0 0.0
    %4246 = vmatpush1.msra.mxu0 0.0
    %4247 = vmatprep.subr.mxu0 0.0
    %4248 = vmatpush1.msra.mxu0 0.0
    %4249 = vmatprep.subr.mxu0 0.0
    %4250 = vmatpush1.msra.mxu0 0.0
    %4251 = vmatprep.subr.mxu0 0.0
    %4252 = vmatpush1.msra.mxu0 0.0
    %4253 = vmatprep.subr.mxu0 0.0
    %4254 = vmatpush1.msra.mxu0 0.0
    %4255 = vmatprep.subr.mxu0 0.0
    %4256 = vmatpush1.msra.mxu0 0.0
    %4257 = vmatprep.subr.mxu0 0.0
    %4258 = vmatpush1.msra.mxu0 0.0
    %4259 = vmatprep.mubr.f32.mxu0 0.0
    %4260 = vmatmul.mubr.f32.gmra.mrb[0].mxu0 %v4184
    %v4261 = vpop.f32.mrb[0].mxu0
    %v4262 = vadd.f32 %v4181, %v4261
    %v4263 = vpop.f32.mrb[0].mxu0
    %4264 = vmatprep.mubr.f32.mxu0 0.0
    %4265 = vmatmul.mubr.f32.gmra.mrb[0].mxu0 %v4187
    %v4266 = vpop.f32.mrb[0].mxu0
    %v4267 = vadd.f32 %v4181, %v4266
    %v4268 = vpop.f32.mrb[0].mxu0
    %4269 = vmatprep.mubr.f32.mxu0 0.0
    %4270 = vmatmul.mubr.f32.gmra.mrb[0].mxu0 %v4190
    %v4271 = vpop.f32.mrb[0].mxu0
    %v4272 = vadd.f32 %v4181, %v4271
    %v4273 = vpop.f32.mrb[0].mxu0
    %4274 = vmatprep.mubr.f32.mxu0 0.0
    %4275 = vmatmul.mubr.f32.gmra.mrb[0].mxu0 %v4193
    %v4276 = vpop.f32.mrb[0].mxu0
    %v4277 = vadd.f32 %v4181, %v4276
    %v4278 = vpop.f32.mrb[0].mxu0
    %4279 = vdwg.mxu0
    %v4280 = vadd.f32 %v4262, %v45
    %v4281 = vadd.f32 %v4267, %v46
    %v4282 = vadd.f32 %v4272, %v47
    %v4283 = vadd.f32 %v4277, %v48
    %v4284 = vld [vmem:[%s3] sm:$0x1]
    %v4285 = vld [vmem:[%s4] sm:$0x1]
    %v4286 = vsel %vm51, %v4280, 0.0
    %4287 = vadd.xlane.f32.xlu0 %v4286
    %v4288 = vpop.xlane.xlu0 %4287
    %v4289 = vsel %vm51, %v4281, 0.0
    %4290 = vadd.xlane.f32.xlu0 %v4289
    %v4291 = vpop.xlane.xlu0 %4290
    %v4292 = vsel %vm51, %v4282, 0.0
    %4293 = vadd.xlane.f32.xlu0 %v4292
    %v4294 = vpop.xlane.xlu0 %4293
    %v4295 = vsel %vm51, %v4283, 0.0
    %4296 = vadd.xlane.f32.xlu0 %v4295
    %v4297 = vpop.xlane.xlu0 %4296
    %v4298 = vmul.f32 %v4288, %v64
    %v4299 = vmul.f32 %v4291, %v64
    %v4300 = vmul.f32 %v4294, %v64
    %v4301 = vmul.f32 %v4297, %v64
    %v4302 = vsub.f32 %v4280, %v4298
    %v4303 = vsub.f32 %v4281, %v4299
    %v4304 = vsub.f32 %v4282, %v4300
    %v4305 = vsub.f32 %v4283, %v4301
    %v4306 = vmul.f32 %v4302, %v4302
    %v4307 = vmul.f32 %v4303, %v4303
    %v4308 = vmul.f32 %v4304, %v4304
    %v4309 = vmul.f32 %v4305, %v4305
    %v4310 = vsel %vm51, %v4306, 0.0
    %4311 = vadd.xlane.f32.xlu0 %v4310
    %v4312 = vpop.xlane.xlu0 %4311
    %v4313 = vsel %vm51, %v4307, 0.0
    %4314 = vadd.xlane.f32.xlu0 %v4313
    %v4315 = vpop.xlane.xlu0 %4314
    %v4316 = vsel %vm51, %v4308, 0.0
    %4317 = vadd.xlane.f32.xlu0 %v4316
    %v4318 = vpop.xlane.xlu0 %4317
    %v4319 = vsel %vm51, %v4309, 0.0
    %4320 = vadd.xlane.f32.xlu0 %v4319
    %v4321 = vpop.xlane.xlu0 %4320
    %v4322 = vmul.f32 %v4312, %v64
    %v4323 = vmul.f32 %v4315, %v64
    %v4324 = vmul.f32 %v4318, %v64
    %v4325 = vmul.f32 %v4321, %v64
    %v4326 = vadd.f32 %v4322, 1e-05
    %v4327 = vadd.f32 %v4323, 1e-05
    %v4328 = vadd.f32 %v4324, 1e-05
    %v4329 = vadd.f32 %v4325, 1e-05
    %v4330 = vrsqrt.pop %v4326
    %v4331 = vrsqrt.pop %v4327
    %v4332 = vrsqrt.pop %v4328
    %v4333 = vrsqrt.pop %v4329
    %v4334 = vmul.f32 %v4302, %v4330
    %v4335 = vmul.f32 %v4303, %v4331
    %v4336 = vmul.f32 %v4304, %v4332
    %v4337 = vmul.f32 %v4305, %v4333
    %v4339 = vlaneseq
    %v4340 = vshrl.u32 %v4339, 7
    %v4341 = vsub.s32 0, %v4340
    %v4342 = vrot.slane %v4284, %v4341
    %v4344 = vmul.f32 %v4334, %v4342
    %v4345 = vmul.f32 %v4335, %v4342
    %v4346 = vmul.f32 %v4336, %v4342
    %v4347 = vmul.f32 %v4337, %v4342
    %v4349 = vlaneseq
    %v4350 = vshrl.u32 %v4349, 7
    %v4351 = vsub.s32 0, %v4350
    %v4352 = vrot.slane %v4285, %v4351
    %v4354 = vadd.f32 %v4344, %v4352
    %v4355 = vadd.f32 %v4345, %v4352
    %v4356 = vadd.f32 %v4346, %v4352
    %v4357 = vadd.f32 %v4347, %v4352
    %v4358 = vld [vmem:[%s9] sm:$0xff]
    %v4359 = vld [vmem:[%s9 + $0x8] sm:$0xff]
    %v4360 = vld [vmem:[%s9 + $0x10] sm:$0xff]
    %v4361 = vld [vmem:[%s9 + $0x18] sm:$0xff]
    %v4362 = vld [vmem:[%s9 + $0x20] sm:$0xff]
    %v4363 = vld [vmem:[%s9 + $0x28] sm:$0xff]
    %v4364 = vld [vmem:[%s9 + $0x30] sm:$0xff]
    %v4365 = vld [vmem:[%s9 + $0x38] sm:$0xff]
    %v4366 = vld [vmem:[%s9 + $0x40] sm:$0xff]
    %v4367 = vld [vmem:[%s9 + $0x48] sm:$0xff]
    %v4368 = vld [vmem:[%s9 + $0x50] sm:$0xff]
    %v4369 = vld [vmem:[%s9 + $0x58] sm:$0xff]
    %v4370 = vld [vmem:[%s9 + $0x60] sm:$0xff]
    %v4371 = vld [vmem:[%s9 + $0x68] sm:$0xff]
    %v4372 = vld [vmem:[%s9 + $0x70] sm:$0xff]
    %v4373 = vld [vmem:[%s9 + $0x78] sm:$0xff]
    %v4374 = vld [vmem:[%s10] sm:$0x3]
    %v4376 = vlaneseq
    %v4377 = vshrl.u32 %v4376, 7
    %v4378 = vsub.s32 0, %v4377
    %v4379 = vrot.slane %v4374, %v4378
    %v4380 = vlaneseq
    %v4381 = vshrl.u32 %v4380, 7
    %v4382 = vsub.s32 1, %v4381
    %v4383 = vrot.slane %v4374, %v4382
    %v4387 = vsel %vm51, %v4354, 0
    %v4390 = vsel %vm51, %v4355, 0
    %v4393 = vsel %vm51, %v4356, 0
    %v4396 = vsel %vm51, %v4357, 0
    %4398 = vmatprep.subr.mxu0 %v4359
    %4399 = vmatpush1.msra.mxu0 %v4358
    %4400 = vmatprep.subr.mxu0 %v4361
    %4401 = vmatpush1.msra.mxu0 %v4360
    %4402 = vmatprep.subr.mxu0 %v4363
    %4403 = vmatpush1.msra.mxu0 %v4362
    %4404 = vmatprep.subr.mxu0 %v4365
    %4405 = vmatpush1.msra.mxu0 %v4364
    %4406 = vmatprep.subr.mxu0 %v4367
    %4407 = vmatpush1.msra.mxu0 %v4366
    %4408 = vmatprep.subr.mxu0 %v4369
    %4409 = vmatpush1.msra.mxu0 %v4368
    %4410 = vmatprep.subr.mxu0 %v4371
    %4411 = vmatpush1.msra.mxu0 %v4370
    %4412 = vmatprep.subr.mxu0 %v4373
    %4413 = vmatpush1.msra.mxu0 %v4372
    %4414 = vmatprep.subr.mxu0 0.0
    %4415 = vmatpush1.msra.mxu0 0.0
    %4416 = vmatprep.subr.mxu0 0.0
    %4417 = vmatpush1.msra.mxu0 0.0
    %4418 = vmatprep.subr.mxu0 0.0
    %4419 = vmatpush1.msra.mxu0 0.0
    %4420 = vmatprep.subr.mxu0 0.0
    %4421 = vmatpush1.msra.mxu0 0.0
    %4422 = vmatprep.subr.mxu0 0.0
    %4423 = vmatpush1.msra.mxu0 0.0
    %4424 = vmatprep.subr.mxu0 0.0
    %4425 = vmatpush1.msra.mxu0 0.0
    %4426 = vmatprep.subr.mxu0 0.0
    %4427 = vmatpush1.msra.mxu0 0.0
    %4428 = vmatprep.subr.mxu0 0.0
    %4429 = vmatpush1.msra.mxu0 0.0
    %4430 = vmatprep.subr.mxu0 0.0
    %4431 = vmatpush1.msra.mxu0 0.0
    %4432 = vmatprep.subr.mxu0 0.0
    %4433 = vmatpush1.msra.mxu0 0.0
    %4434 = vmatprep.subr.mxu0 0.0
    %4435 = vmatpush1.msra.mxu0 0.0
    %4436 = vmatprep.subr.mxu0 0.0
    %4437 = vmatpush1.msra.mxu0 0.0
    %4438 = vmatprep.subr.mxu0 0.0
    %4439 = vmatpush1.msra.mxu0 0.0
    %4440 = vmatprep.subr.mxu0 0.0
    %4441 = vmatpush1.msra.mxu0 0.0
    %4442 = vmatprep.subr.mxu0 0.0
    %4443 = vmatpush1.msra.mxu0 0.0
    %4444 = vmatprep.subr.mxu0 0.0
    %4445 = vmatpush1.msra.mxu0 0.0
    %4446 = vmatprep.subr.mxu0 0.0
    %4447 = vmatpush1.msra.mxu0 0.0
    %4448 = vmatprep.subr.mxu0 0.0
    %4449 = vmatpush1.msra.mxu0 0.0
    %4450 = vmatprep.subr.mxu0 0.0
    %4451 = vmatpush1.msra.mxu0 0.0
    %4452 = vmatprep.subr.mxu0 0.0
    %4453 = vmatpush1.msra.mxu0 0.0
    %4454 = vmatprep.subr.mxu0 0.0
    %4455 = vmatpush1.msra.mxu0 0.0
    %4456 = vmatprep.subr.mxu0 0.0
    %4457 = vmatpush1.msra.mxu0 0.0
    %4458 = vmatprep.subr.mxu0 0.0
    %4459 = vmatpush1.msra.mxu0 0.0
    %4460 = vmatprep.subr.mxu0 0.0
    %4461 = vmatpush1.msra.mxu0 0.0
    %4462 = vmatprep.mubr.f32.mxu0 0.0
    %4463 = vmatmul.mubr.f32.gmra.mrb[0].mxu0 %v4387
    %v4464 = vpop.f32.mrb[0].mxu0
    %v4465 = vadd.f32 %v4379, %v4464
    %v4466 = vpop.f32.mrb[0].mxu0
    %v4467 = vadd.f32 %v4383, %v4466
    %4468 = vmatprep.mubr.f32.mxu0 0.0
    %4469 = vmatmul.mubr.f32.gmra.mrb[0].mxu0 %v4390
    %v4470 = vpop.f32.mrb[0].mxu0
    %v4471 = vadd.f32 %v4379, %v4470
    %v4472 = vpop.f32.mrb[0].mxu0
    %v4473 = vadd.f32 %v4383, %v4472
    %4474 = vmatprep.mubr.f32.mxu0 0.0
    %4475 = vmatmul.mubr.f32.gmra.mrb[0].mxu0 %v4393
    %v4476 = vpop.f32.mrb[0].mxu0
    %v4477 = vadd.f32 %v4379, %v4476
    %v4478 = vpop.f32.mrb[0].mxu0
    %v4479 = vadd.f32 %v4383, %v4478
    %4480 = vmatprep.mubr.f32.mxu0 0.0
    %4481 = vmatmul.mubr.f32.gmra.mrb[0].mxu0 %v4396
    %v4482 = vpop.f32.mrb[0].mxu0
    %v4483 = vadd.f32 %v4379, %v4482
    %v4484 = vpop.f32.mrb[0].mxu0
    %v4485 = vadd.f32 %v4383, %v4484
    %4486 = vdwg.mxu0
    %v4487 = vmul.f32 %v4465, 1.702
    %v4488 = vmul.f32 %v4467, 1.702
    %v4489 = vmul.f32 %v4471, 1.702
    %v4490 = vmul.f32 %v4473, 1.702
    %v4491 = vmul.f32 %v4477, 1.702
    %v4492 = vmul.f32 %v4479, 1.702
    %v4493 = vmul.f32 %v4483, 1.702
    %v4494 = vmul.f32 %v4485, 1.702
    %v4495 = vxor.u32 %v4487, 2147483648
    %v4496 = vxor.u32 %v4488, 2147483648
    %v4497 = vxor.u32 %v4489, 2147483648
    %v4498 = vxor.u32 %v4490, 2147483648
    %v4499 = vxor.u32 %v4491, 2147483648
    %v4500 = vxor.u32 %v4492, 2147483648
    %v4501 = vxor.u32 %v4493, 2147483648
    %v4502 = vxor.u32 %v4494, 2147483648
    %v4503 = vmul.f32 %v4495, 1.442695
    %v4504 = vpow.pop %v4503
    %v4505 = vmul.f32 %v4496, 1.442695
    %v4506 = vpow.pop %v4505
    %v4507 = vmul.f32 %v4497, 1.442695
    %v4508 = vpow.pop %v4507
    %v4509 = vmul.f32 %v4498, 1.442695
    %v4510 = vpow.pop %v4509
    %v4511 = vmul.f32 %v4499, 1.442695
    %v4512 = vpow.pop %v4511
    %v4513 = vmul.f32 %v4500, 1.442695
    %v4514 = vpow.pop %v4513
    %v4515 = vmul.f32 %v4501, 1.442695
    %v4516 = vpow.pop %v4515
    %v4517 = vmul.f32 %v4502, 1.442695
    %v4518 = vpow.pop %v4517
    %v4519 = vadd.f32 %v4504, 1.0
    %v4520 = vadd.f32 %v4506, 1.0
    %v4521 = vadd.f32 %v4508, 1.0
    %v4522 = vadd.f32 %v4510, 1.0
    %v4523 = vadd.f32 %v4512, 1.0
    %v4524 = vadd.f32 %v4514, 1.0
    %v4525 = vadd.f32 %v4516, 1.0
    %v4526 = vadd.f32 %v4518, 1.0
    %v4527 = vrcp.pop %v4519
    %v4528 = vmul.f32 1.0, %v4527
    %v4529 = vrcp.pop %v4520
    %v4530 = vmul.f32 1.0, %v4529
    %v4531 = vrcp.pop %v4521
    %v4532 = vmul.f32 1.0, %v4531
    %v4533 = vrcp.pop %v4522
    %v4534 = vmul.f32 1.0, %v4533
    %v4535 = vrcp.pop %v4523
    %v4536 = vmul.f32 1.0, %v4535
    %v4537 = vrcp.pop %v4524
    %v4538 = vmul.f32 1.0, %v4537
    %v4539 = vrcp.pop %v4525
    %v4540 = vmul.f32 1.0, %v4539
    %v4541 = vrcp.pop %v4526
    %v4542 = vmul.f32 1.0, %v4541
    %v4543 = vmul.f32 %v4465, %v4528
    %v4544 = vmul.f32 %v4467, %v4530
    %v4545 = vmul.f32 %v4471, %v4532
    %v4546 = vmul.f32 %v4473, %v4534
    %v4547 = vmul.f32 %v4477, %v4536
    %v4548 = vmul.f32 %v4479, %v4538
    %v4549 = vmul.f32 %v4483, %v4540
    %v4550 = vmul.f32 %v4485, %v4542
    %v4551 = vld [vmem:[%s11] sm:$0xff]
    %v4552 = vld [vmem:[%s11 + $0x8] sm:$0xff]
    %v4553 = vld [vmem:[%s11 + $0x10] sm:$0xff]
    %v4554 = vld [vmem:[%s11 + $0x18] sm:$0xff]
    %v4555 = vld [vmem:[%s11 + $0x20] sm:$0xff]
    %v4556 = vld [vmem:[%s11 + $0x28] sm:$0xff]
    %v4557 = vld [vmem:[%s11 + $0x30] sm:$0xff]
    %v4558 = vld [vmem:[%s11 + $0x38] sm:$0xff]
    %v4559 = vld [vmem:[%s11 + $0x40] sm:$0xff]
    %v4560 = vld [vmem:[%s11 + $0x48] sm:$0xff]
    %v4561 = vld [vmem:[%s11 + $0x50] sm:$0xff]
    %v4562 = vld [vmem:[%s11 + $0x58] sm:$0xff]
    %v4563 = vld [vmem:[%s11 + $0x60] sm:$0xff]
    %v4564 = vld [vmem:[%s11 + $0x68] sm:$0xff]
    %v4565 = vld [vmem:[%s11 + $0x70] sm:$0xff]
    %v4566 = vld [vmem:[%s11 + $0x78] sm:$0xff]
    %v4567 = vld [vmem:[%s11 + $0x80] sm:$0xff]
    %v4568 = vld [vmem:[%s11 + $0x88] sm:$0xff]
    %v4569 = vld [vmem:[%s11 + $0x90] sm:$0xff]
    %v4570 = vld [vmem:[%s11 + $0x98] sm:$0xff]
    %v4571 = vld [vmem:[%s11 + $0xa0] sm:$0xff]
    %v4572 = vld [vmem:[%s11 + $0xa8] sm:$0xff]
    %v4573 = vld [vmem:[%s11 + $0xb0] sm:$0xff]
    %v4574 = vld [vmem:[%s11 + $0xb8] sm:$0xff]
    %v4575 = vld [vmem:[%s11 + $0xc0] sm:$0xff]
    %v4576 = vld [vmem:[%s11 + $0xc8] sm:$0xff]
    %v4577 = vld [vmem:[%s11 + $0xd0] sm:$0xff]
    %v4578 = vld [vmem:[%s11 + $0xd8] sm:$0xff]
    %v4579 = vld [vmem:[%s11 + $0xe0] sm:$0xff]
    %v4580 = vld [vmem:[%s11 + $0xe8] sm:$0xff]
    %v4581 = vld [vmem:[%s11 + $0xf0] sm:$0xff]
    %v4582 = vld [vmem:[%s11 + $0xf8] sm:$0xff]
    %v4583 = vld [vmem:[%s12] sm:$0x1]
    %v4585 = vlaneseq
    %v4586 = vshrl.u32 %v4585, 7
    %v4587 = vsub.s32 0, %v4586
    %v4588 = vrot.slane %v4583, %v4587
    %4590 = vmatprep.subr.mxu0 0.0
    %4591 = vmatpush1.msra.mxu0 %v4551
    %4592 = vmatprep.subr.mxu0 0.0
    %4593 = vmatpush1.msra.mxu0 %v4552
    %4594 = vmatprep.subr.mxu0 0.0
    %4595 = vmatpush1.msra.mxu0 %v4553
    %4596 = vmatprep.subr.mxu0 0.0
    %4597 = vmatpush1.msra.mxu0 %v4554
    %4598 = vmatprep.subr.mxu0 0.0
    %4599 = vmatpush1.msra.mxu0 %v4555
    %4600 = vmatprep.subr.mxu0 0.0
    %4601 = vmatpush1.msra.mxu0 %v4556
    %4602 = vmatprep.subr.mxu0 0.0
    %4603 = vmatpush1.msra.mxu0 %v4557
    %4604 = vmatprep.subr.mxu0 0.0
    %4605 = vmatpush1.msra.mxu0 %v4558
    %4606 = vmatprep.subr.mxu0 0.0
    %4607 = vmatpush1.msra.mxu0 %v4559
    %4608 = vmatprep.subr.mxu0 0.0
    %4609 = vmatpush1.msra.mxu0 %v4560
    %4610 = vmatprep.subr.mxu0 0.0
    %4611 = vmatpush1.msra.mxu0 %v4561
    %4612 = vmatprep.subr.mxu0 0.0
    %4613 = vmatpush1.msra.mxu0 %v4562
    %4614 = vmatprep.subr.mxu0 0.0
    %4615 = vmatpush1.msra.mxu0 %v4563
    %4616 = vmatprep.subr.mxu0 0.0
    %4617 = vmatpush1.msra.mxu0 %v4564
    %4618 = vmatprep.subr.mxu0 0.0
    %4619 = vmatpush1.msra.mxu0 %v4565
    %4620 = vmatprep.subr.mxu0 0.0
    %4621 = vmatpush1.msra.mxu0 %v4566
    %4622 = vmatprep.subr.mxu0 0.0
    %4623 = vmatpush1.msra.mxu0 %v4567
    %4624 = vmatprep.subr.mxu0 0.0
    %4625 = vmatpush1.msra.mxu0 %v4568
    %4626 = vmatprep.subr.mxu0 0.0
    %4627 = vmatpush1.msra.mxu0 %v4569
    %4628 = vmatprep.subr.mxu0 0.0
    %4629 = vmatpush1.msra.mxu0 %v4570
    %4630 = vmatprep.subr.mxu0 0.0
    %4631 = vmatpush1.msra.mxu0 %v4571
    %4632 = vmatprep.subr.mxu0 0.0
    %4633 = vmatpush1.msra.mxu0 %v4572
    %4634 = vmatprep.subr.mxu0 0.0
    %4635 = vmatpush1.msra.mxu0 %v4573
    %4636 = vmatprep.subr.mxu0 0.0
    %4637 = vmatpush1.msra.mxu0 %v4574
    %4638 = vmatprep.subr.mxu0 0.0
    %4639 = vmatpush1.msra.mxu0 %v4575
    %4640 = vmatprep.subr.mxu0 0.0
    %4641 = vmatpush1.msra.mxu0 %v4576
    %4642 = vmatprep.subr.mxu0 0.0
    %4643 = vmatpush1.msra.mxu0 %v4577
    %4644 = vmatprep.subr.mxu0 0.0
    %4645 = vmatpush1.msra.mxu0 %v4578
    %4646 = vmatprep.subr.mxu0 0.0
    %4647 = vmatpush1.msra.mxu0 %v4579
    %4648 = vmatprep.subr.mxu0 0.0
    %4649 = vmatpush1.msra.mxu0 %v4580
    %4650 = vmatprep.subr.mxu0 0.0
    %4651 = vmatpush1.msra.mxu0 %v4581
    %4652 = vmatprep.subr.mxu0 0.0
    %4653 = vmatpush1.msra.mxu0 %v4582
    %4654 = vmatprep.mubr.f32.mxu0 %v4544
    %4655 = vmatmul.mubr.f32.gmra.mrb[0].mxu0 %v4543
    %v4656 = vpop.f32.mrb[0].mxu0
    %v4657 = vadd.f32 %v4588, %v4656
    %v4658 = vpop.f32.mrb[0].mxu0
    %4659 = vmatprep.mubr.f32.mxu0 %v4546
    %4660 = vmatmul.mubr.f32.gmra.mrb[0].mxu0 %v4545
    %v4661 = vpop.f32.mrb[0].mxu0
    %v4662 = vadd.f32 %v4588, %v4661
    %v4663 = vpop.f32.mrb[0].mxu0
    %4664 = vmatprep.mubr.f32.mxu0 %v4548
    %4665 = vmatmul.mubr.f32.gmra.mrb[0].mxu0 %v4547
    %v4666 = vpop.f32.mrb[0].mxu0
    %v4667 = vadd.f32 %v4588, %v4666
    %v4668 = vpop.f32.mrb[0].mxu0
    %4669 = vmatprep.mubr.f32.mxu0 %v4550
    %4670 = vmatmul.mubr.f32.gmra.mrb[0].mxu0 %v4549
    %v4671 = vpop.f32.mrb[0].mxu0
    %v4672 = vadd.f32 %v4588, %v4671
    %v4673 = vpop.f32.mrb[0].mxu0
    %4674 = vdwg.mxu0
    %v4675 = vadd.f32 %v4657, %v45
    %v4676 = vadd.f32 %v4662, %v46
    %v4677 = vadd.f32 %v4667, %v47
    %v4678 = vadd.f32 %v4672, %v48
    %4679 = vst.msk [vmem:[#allocation2] sm:$0xff] %vm51, %v4675
    %4680 = vst.msk [vmem:[#allocation2 + $0x8] sm:$0xff] %vm51, %v4676
    %4681 = vst.msk [vmem:[#allocation2 + $0x10] sm:$0xff] %vm51, %v4677
    %4682 = vst.msk [vmem:[#allocation2 + $0x18] sm:$0xff] %vm51, %v4678
    // Predicated region
    $region54: #{tpu_custom_call.1} parent=1 // pred_check
      _
    $region55: #{tpu_custom_call.1} parent=1 // pred_check_branch
      %4684 = sbr.rel (0) target = $region57
    $region56: #{tpu_custom_call.1} parent=1 // pred_region
      %s4686 = ssub.s32 512, 512
      %4687 = vsyncadd [#allocation3], %s4686
      %s4688 = sshll.u32 [#allocation2], 4
      %s4689 = int_to_ptr.vmem [resolvable:$true] %s4688
      %4694 = dma.vmem_to_hbm [thread:$0]  %s4689, 512, %s13, [#allocation3], 128, 128, 8
    $region57: #{tpu_custom_call.1} parent=1 // pred_fallthru
      _
    // Predicated region
    $region58: #{tpu_custom_call.1} parent=1 // pred_check
      _
    $region59: #{tpu_custom_call.1} parent=1 // pred_check_branch
      %4696 = sbr.rel (0) target = $region61
    $region60: #{tpu_custom_call.1} parent=1 // pred_region
      %4697 = dma.done [#allocation3], 512
    $region61: #{tpu_custom_call.1} parent=1 // pred_fallthru
      _
    %4698 = vsyncpa [#allocation3], 1

</llo_original>
